<compile_context>
chip_gen: v5e
topology: v5e:2x2
jax: 0.10.0
libtpu: 0.0.40
codegen_flags: <defaults>
</compile_context>

<pallas_src>
import numpy as np
import jax
import jax.numpy as jnp
from jax.experimental import pallas as pl
from jax.experimental.pallas import tpu as pltpu

# ---- sizes (hidden_size from the PyTorch script; others chosen lane-friendly)
INPUT = 128     # input_size
HIDDEN = 256    # hidden_size  (from the spec: hidden_size = 256)
OUTPUT = 128    # output_size
BATCH = 2
SEQ = 8


def _sigmoid(x):
    # explicit formula (exp + divide) — guaranteed Mosaic lowering, EUP exp
    return 1.0 / (1.0 + jnp.exp(-x))


# ---- fused LSTM + FC kernel --------------------------------------------------
def lstm_fc_kernel(x_ref, wih_ref, whh_ref, b_ref, fcw_ref, fcb_ref,
                   o_ref, hall_ref):
    """Single-layer LSTM (batch_first, h0=c0=0) followed by per-timestep Linear.

    x_ref    : (B, T, I)  f32
    wih_ref  : (I, 4H)    bf16   (PyTorch weight_ih_l0 transposed)
    whh_ref  : (H, 4H)    bf16   (PyTorch weight_hh_l0 transposed)
    b_ref    : (1, 4H)    f32    (bias_ih_l0 + bias_hh_l0)
    fcw_ref  : (H, O)     bf16   (fc.weight transposed)
    fcb_ref  : (1, O)     f32
    o_ref    : (B, T, O)  f32
    hall_ref : (B, T, H)  f32    VMEM scratch holding all hidden states
    """
    B, T, I = x_ref.shape
    H = HIDDEN

    # --- fused input projection: all gates x all timesteps in ONE matmul -----
    x = x_ref[...].reshape(B * T, I).astype(jnp.bfloat16)
    xg = jnp.dot(x, wih_ref[...], preferred_element_type=jnp.float32)      # (B*T, 4H)
    xg = (xg + b_ref[...]).reshape(B, T, 4 * H)

    whh = whh_ref[...]                                                      # (H, 4H) bf16

    # --- recurrence (inherently sequential over T; statically unrolled) ------
    h = jnp.zeros((B, H), jnp.float32)
    c = jnp.zeros((B, H), jnp.float32)
    for t in range(T):
        g = xg[:, t, :] + jnp.dot(h.astype(jnp.bfloat16), whh,
                                  preferred_element_type=jnp.float32)       # (B, 4H)
        # PyTorch gate order: i, f, g, o   (lane-aligned slices, H = 256)
        i_g = _sigmoid(g[:, 0 * H:1 * H])
        f_g = _sigmoid(g[:, 1 * H:2 * H])
        g_g = jnp.tanh(g[:, 2 * H:3 * H])
        o_g = _sigmoid(g[:, 3 * H:4 * H])
        c = f_g * c + i_g * g_g
        h = o_g * jnp.tanh(c)
        hall_ref[:, t:t + 1, :] = h.reshape(B, 1, H)

    # --- final Linear over all (B*T) rows in ONE matmul ----------------------
    h_all = hall_ref[...].reshape(B * T, H).astype(jnp.bfloat16)
    out = jnp.dot(h_all, fcw_ref[...], preferred_element_type=jnp.float32)  # (B*T, O)
    out = out + fcb_ref[...]
    o_ref[...] = out.reshape(B, T, OUTPUT)


# ---- wrapper -----------------------------------------------------------------
def rnn_forward(x, params):
    """x: (B, T, INPUT) f32  ->  (B, T, OUTPUT) f32  (== PyTorch RNNModel.forward)."""
    B, T, _ = x.shape
    return pl.pallas_call(
        lstm_fc_kernel,
        out_shape=jax.ShapeDtypeStruct((B, T, OUTPUT), jnp.float32),
        in_specs=[pl.BlockSpec(memory_space=pltpu.MemorySpace.VMEM)] * 6,
        out_specs=pl.BlockSpec(memory_space=pltpu.MemorySpace.VMEM),
        scratch_shapes=[pltpu.VMEM((B, T, HIDDEN), jnp.float32)],
    )(x, params['w_ih_t'], params['w_hh_t'], params['b'],
      params['fc_w_t'], params['fc_b'])


# ---- deterministic parameter init (PyTorch-style U(-1/sqrt(H), 1/sqrt(H))) ----
def init_params(key):
    ks = jax.random.split(key, 6)
    bound = 1.0 / float(np.sqrt(HIDDEN))

    def u(k, shape):
        return jax.random.uniform(k, shape, jnp.float32, -bound, bound)

    w_ih = u(ks[0], (4 * HIDDEN, INPUT))    # PyTorch weight_ih_l0
    w_hh = u(ks[1], (4 * HIDDEN, HIDDEN))   # PyTorch weight_hh_l0
    b_ih = u(ks[2], (4 * HIDDEN,))
    b_hh = u(ks[3], (4 * HIDDEN,))
    fc_w = u(ks[4], (OUTPUT, HIDDEN))       # nn.Linear weight
    fc_b = u(ks[5], (OUTPUT,))

    return {
        # pre-transposed, bf16 matmul operands (f32 accumulation in-kernel)
        'w_ih_t': jnp.asarray(w_ih.T, jnp.bfloat16),            # (I, 4H)
        'w_hh_t': jnp.asarray(w_hh.T, jnp.bfloat16),            # (H, 4H)
        'b':      (b_ih + b_hh).reshape(1, 4 * HIDDEN),         # f32, combined bias
        'fc_w_t': jnp.asarray(fc_w.T, jnp.bfloat16),            # (H, O)
        'fc_b':   fc_b.reshape(1, OUTPUT),                      # f32
    }


if __name__ == "__main__":
    key = jax.random.PRNGKey(0)
    pkey, dkey = jax.random.split(key)
    params = init_params(pkey)

    x = jax.random.normal(dkey, (BATCH, SEQ, INPUT), dtype=jnp.float32)

    out = rnn_forward(x, params)
    out = jax.block_until_ready(out)

    assert out.shape == (BATCH, SEQ, OUTPUT), out.shape
    assert bool(jnp.all(jnp.isfinite(out)))
    print("KERNEL_OK")
</pallas_src>

<mosaic_0001>
module attributes {stable_mosaic.version = 11 : i64} {
  func.func @lstm_fc_kernel(%arg0: memref<2x8x128xf32, #tpu.memory_space<vmem>>, %arg1: memref<128x1024xbf16, #tpu.memory_space<vmem>>, %arg2: memref<256x1024xbf16, #tpu.memory_space<vmem>>, %arg3: memref<1x1024xf32, #tpu.memory_space<vmem>>, %arg4: memref<256x128xbf16, #tpu.memory_space<vmem>>, %arg5: memref<1x128xf32, #tpu.memory_space<vmem>>, %arg6: memref<2x8x128xf32, #tpu.memory_space<vmem>>, %arg7: memref<2x8x256xf32, #tpu.memory_space<vmem>>) attributes {dimension_semantics = [], scalar_prefetch = 0 : i64, scratch_operands = 1 : i64, tpu.core_type = #tpu.core_type<tc>} {
    %c0 = arith.constant 0 : index
    %c0_0 = arith.constant 0 : index
    %c0_1 = arith.constant 0 : index
    %0 = vector.load %arg0[%c0, %c0_0, %c0_1] : memref<2x8x128xf32, #tpu.memory_space<vmem>>, vector<2x8x128xf32>
    %1 = vector.shape_cast %0 : vector<2x8x128xf32> to vector<16x128xf32>
    %2 = arith.truncf %1 : vector<16x128xf32> to vector<16x128xbf16>
    %c0_2 = arith.constant 0 : index
    %c0_3 = arith.constant 0 : index
    %3 = vector.load %arg1[%c0_2, %c0_3] : memref<128x1024xbf16, #tpu.memory_space<vmem>>, vector<128x1024xbf16>
    %cst = arith.constant dense<0.000000e+00> : vector<16x1024xf32>
    %4 = tpu.matmul %2, %3, %cst {dimension_numbers = #tpu.dot_dimension_numbers<[1], [0], [0], [1], [0, 0, 1, 1], [], []>} : vector<16x128xbf16>, vector<128x1024xbf16>, vector<16x1024xf32> -> vector<16x1024xf32>
    %c0_4 = arith.constant 0 : index
    %c0_5 = arith.constant 0 : index
    %5 = vector.load %arg3[%c0_4, %c0_5] : memref<1x1024xf32, #tpu.memory_space<vmem>>, vector<1x1024xf32>
    %6 = vector.broadcast %5 : vector<1x1024xf32> to vector<16x1024xf32>
    %7 = arith.addf %4, %6 : vector<16x1024xf32>
    %8 = vector.shape_cast %7 : vector<16x1024xf32> to vector<2x8x1024xf32>
    %c0_6 = arith.constant 0 : index
    %c0_7 = arith.constant 0 : index
    %9 = vector.load %arg2[%c0_6, %c0_7] : memref<256x1024xbf16, #tpu.memory_space<vmem>>, vector<256x1024xbf16>
    %cst_8 = arith.constant 0.000000e+00 : f32
    %10 = vector.broadcast %cst_8 : f32 to vector<2x256xf32>
    %cst_9 = arith.constant 0.000000e+00 : f32
    %11 = vector.broadcast %cst_9 : f32 to vector<2x256xf32>
    %12 = vector.extract_strided_slice %8 {offsets = [0, 0, 0], sizes = [2, 1, 1024], strides = [1, 1, 1]} : vector<2x8x1024xf32> to vector<2x1x1024xf32>
    %13 = vector.shape_cast %12 : vector<2x1x1024xf32> to vector<2x1024xf32>
    %14 = arith.truncf %10 : vector<2x256xf32> to vector<2x256xbf16>
    %cst_10 = arith.constant dense<0.000000e+00> : vector<2x1024xf32>
    %15 = tpu.matmul %14, %9, %cst_10 {dimension_numbers = #tpu.dot_dimension_numbers<[1], [0], [0], [1], [0, 0, 1, 1], [], []>} : vector<2x256xbf16>, vector<256x1024xbf16>, vector<2x1024xf32> -> vector<2x1024xf32>
    %16 = arith.addf %13, %15 : vector<2x1024xf32>
    %17 = vector.extract_strided_slice %16 {offsets = [0, 0], sizes = [2, 256], strides = [1, 1]} : vector<2x1024xf32> to vector<2x256xf32>
    %cst_11 = arith.constant 0.000000e+00 : f32
    %18 = vector.broadcast %cst_11 : f32 to vector<2x256xf32>
    %19 = arith.subf %18, %17 : vector<2x256xf32>
    %20 = math.exp %19 : vector<2x256xf32>
    %cst_12 = arith.constant 1.000000e+00 : f32
    %21 = vector.broadcast %cst_12 : f32 to vector<2x256xf32>
    %22 = arith.addf %21, %20 : vector<2x256xf32>
    %cst_13 = arith.constant 1.000000e+00 : f32
    %23 = vector.broadcast %cst_13 : f32 to vector<2x256xf32>
    %24 = arith.divf %23, %22 : vector<2x256xf32>
    %25 = vector.extract_strided_slice %16 {offsets = [0, 256], sizes = [2, 256], strides = [1, 1]} : vector<2x1024xf32> to vector<2x256xf32>
    %cst_14 = arith.constant 0.000000e+00 : f32
    %26 = vector.broadcast %cst_14 : f32 to vector<2x256xf32>
    %27 = arith.subf %26, %25 : vector<2x256xf32>
    %28 = math.exp %27 : vector<2x256xf32>
    %cst_15 = arith.constant 1.000000e+00 : f32
    %29 = vector.broadcast %cst_15 : f32 to vector<2x256xf32>
    %30 = arith.addf %29, %28 : vector<2x256xf32>
    %cst_16 = arith.constant 1.000000e+00 : f32
    %31 = vector.broadcast %cst_16 : f32 to vector<2x256xf32>
    %32 = arith.divf %31, %30 : vector<2x256xf32>
    %33 = vector.extract_strided_slice %16 {offsets = [0, 512], sizes = [2, 256], strides = [1, 1]} : vector<2x1024xf32> to vector<2x256xf32>
    %34 = math.tanh %33 : vector<2x256xf32>
    %35 = vector.extract_strided_slice %16 {offsets = [0, 768], sizes = [2, 256], strides = [1, 1]} : vector<2x1024xf32> to vector<2x256xf32>
    %cst_17 = arith.constant 0.000000e+00 : f32
    %36 = vector.broadcast %cst_17 : f32 to vector<2x256xf32>
    %37 = arith.subf %36, %35 : vector<2x256xf32>
    %38 = math.exp %37 : vector<2x256xf32>
    %cst_18 = arith.constant 1.000000e+00 : f32
    %39 = vector.broadcast %cst_18 : f32 to vector<2x256xf32>
    %40 = arith.addf %39, %38 : vector<2x256xf32>
    %cst_19 = arith.constant 1.000000e+00 : f32
    %41 = vector.broadcast %cst_19 : f32 to vector<2x256xf32>
    %42 = arith.divf %41, %40 : vector<2x256xf32>
    %43 = arith.mulf %32, %11 : vector<2x256xf32>
    %44 = arith.mulf %24, %34 : vector<2x256xf32>
    %45 = arith.addf %43, %44 : vector<2x256xf32>
    %46 = math.tanh %45 : vector<2x256xf32>
    %47 = arith.mulf %42, %46 : vector<2x256xf32>
    %48 = vector.shape_cast %47 : vector<2x256xf32> to vector<2x1x256xf32>
    %c0_20 = arith.constant 0 : index
    %c0_21 = arith.constant 0 : index
    %c0_22 = arith.constant 0 : index
    %49 = vector.load %arg7[%c0_20, %c0_21, %c0_22] : memref<2x8x256xf32, #tpu.memory_space<vmem>>, vector<2x1x256xf32>
    tpu.vector_store %arg7[%c0_20, %c0_21, %c0_22], %48 {strides = array<i32>} : memref<2x8x256xf32, #tpu.memory_space<vmem>>, vector<2x1x256xf32>,
    %50 = vector.extract_strided_slice %8 {offsets = [0, 1, 0], sizes = [2, 1, 1024], strides = [1, 1, 1]} : vector<2x8x1024xf32> to vector<2x1x1024xf32>
    %51 = vector.shape_cast %50 : vector<2x1x1024xf32> to vector<2x1024xf32>
    %52 = arith.truncf %47 : vector<2x256xf32> to vector<2x256xbf16>
    %cst_23 = arith.constant dense<0.000000e+00> : vector<2x1024xf32>
    %53 = tpu.matmul %52, %9, %cst_23 {dimension_numbers = #tpu.dot_dimension_numbers<[1], [0], [0], [1], [0, 0, 1, 1], [], []>} : vector<2x256xbf16>, vector<256x1024xbf16>, vector<2x1024xf32> -> vector<2x1024xf32>
    %54 = arith.addf %51, %53 : vector<2x1024xf32>
    %55 = vector.extract_strided_slice %54 {offsets = [0, 0], sizes = [2, 256], strides = [1, 1]} : vector<2x1024xf32> to vector<2x256xf32>
    %cst_24 = arith.constant 0.000000e+00 : f32
    %56 = vector.broadcast %cst_24 : f32 to vector<2x256xf32>
    %57 = arith.subf %56, %55 : vector<2x256xf32>
    %58 = math.exp %57 : vector<2x256xf32>
    %cst_25 = arith.constant 1.000000e+00 : f32
    %59 = vector.broadcast %cst_25 : f32 to vector<2x256xf32>
    %60 = arith.addf %59, %58 : vector<2x256xf32>
    %cst_26 = arith.constant 1.000000e+00 : f32
    %61 = vector.broadcast %cst_26 : f32 to vector<2x256xf32>
    %62 = arith.divf %61, %60 : vector<2x256xf32>
    %63 = vector.extract_strided_slice %54 {offsets = [0, 256], sizes = [2, 256], strides = [1, 1]} : vector<2x1024xf32> to vector<2x256xf32>
    %cst_27 = arith.constant 0.000000e+00 : f32
    %64 = vector.broadcast %cst_27 : f32 to vector<2x256xf32>
    %65 = arith.subf %64, %63 : vector<2x256xf32>
    %66 = math.exp %65 : vector<2x256xf32>
    %cst_28 = arith.constant 1.000000e+00 : f32
    %67 = vector.broadcast %cst_28 : f32 to vector<2x256xf32>
    %68 = arith.addf %67, %66 : vector<2x256xf32>
    %cst_29 = arith.constant 1.000000e+00 : f32
    %69 = vector.broadcast %cst_29 : f32 to vector<2x256xf32>
    %70 = arith.divf %69, %68 : vector<2x256xf32>
    %71 = vector.extract_strided_slice %54 {offsets = [0, 512], sizes = [2, 256], strides = [1, 1]} : vector<2x1024xf32> to vector<2x256xf32>
    %72 = math.tanh %71 : vector<2x256xf32>
    %73 = vector.extract_strided_slice %54 {offsets = [0, 768], sizes = [2, 256], strides = [1, 1]} : vector<2x1024xf32> to vector<2x256xf32>
    %cst_30 = arith.constant 0.000000e+00 : f32
    %74 = vector.broadcast %cst_30 : f32 to vector<2x256xf32>
    %75 = arith.subf %74, %73 : vector<2x256xf32>
    %76 = math.exp %75 : vector<2x256xf32>
    %cst_31 = arith.constant 1.000000e+00 : f32
    %77 = vector.broadcast %cst_31 : f32 to vector<2x256xf32>
    %78 = arith.addf %77, %76 : vector<2x256xf32>
    %cst_32 = arith.constant 1.000000e+00 : f32
    %79 = vector.broadcast %cst_32 : f32 to vector<2x256xf32>
    %80 = arith.divf %79, %78 : vector<2x256xf32>
    %81 = arith.mulf %70, %45 : vector<2x256xf32>
    %82 = arith.mulf %62, %72 : vector<2x256xf32>
    %83 = arith.addf %81, %82 : vector<2x256xf32>
    %84 = math.tanh %83 : vector<2x256xf32>
    %85 = arith.mulf %80, %84 : vector<2x256xf32>
    %86 = vector.shape_cast %85 : vector<2x256xf32> to vector<2x1x256xf32>
    %c0_33 = arith.constant 0 : index
    %c1 = arith.constant 1 : index
    %c0_34 = arith.constant 0 : index
    %87 = vector.load %arg7[%c0_33, %c1, %c0_34] : memref<2x8x256xf32, #tpu.memory_space<vmem>>, vector<2x1x256xf32>
    tpu.vector_store %arg7[%c0_33, %c1, %c0_34], %86 {strides = array<i32>} : memref<2x8x256xf32, #tpu.memory_space<vmem>>, vector<2x1x256xf32>,
    %88 = vector.extract_strided_slice %8 {offsets = [0, 2, 0], sizes = [2, 1, 1024], strides = [1, 1, 1]} : vector<2x8x1024xf32> to vector<2x1x1024xf32>
    %89 = vector.shape_cast %88 : vector<2x1x1024xf32> to vector<2x1024xf32>
    %90 = arith.truncf %85 : vector<2x256xf32> to vector<2x256xbf16>
    %cst_35 = arith.constant dense<0.000000e+00> : vector<2x1024xf32>
    %91 = tpu.matmul %90, %9, %cst_35 {dimension_numbers = #tpu.dot_dimension_numbers<[1], [0], [0], [1], [0, 0, 1, 1], [], []>} : vector<2x256xbf16>, vector<256x1024xbf16>, vector<2x1024xf32> -> vector<2x1024xf32>
    %92 = arith.addf %89, %91 : vector<2x1024xf32>
    %93 = vector.extract_strided_slice %92 {offsets = [0, 0], sizes = [2, 256], strides = [1, 1]} : vector<2x1024xf32> to vector<2x256xf32>
    %cst_36 = arith.constant 0.000000e+00 : f32
    %94 = vector.broadcast %cst_36 : f32 to vector<2x256xf32>
    %95 = arith.subf %94, %93 : vector<2x256xf32>
    %96 = math.exp %95 : vector<2x256xf32>
    %cst_37 = arith.constant 1.000000e+00 : f32
    %97 = vector.broadcast %cst_37 : f32 to vector<2x256xf32>
    %98 = arith.addf %97, %96 : vector<2x256xf32>
    %cst_38 = arith.constant 1.000000e+00 : f32
    %99 = vector.broadcast %cst_38 : f32 to vector<2x256xf32>
    %100 = arith.divf %99, %98 : vector<2x256xf32>
    %101 = vector.extract_strided_slice %92 {offsets = [0, 256], sizes = [2, 256], strides = [1, 1]} : vector<2x1024xf32> to vector<2x256xf32>
    %cst_39 = arith.constant 0.000000e+00 : f32
    %102 = vector.broadcast %cst_39 : f32 to vector<2x256xf32>
    %103 = arith.subf %102, %101 : vector<2x256xf32>
    %104 = math.exp %103 : vector<2x256xf32>
    %cst_40 = arith.constant 1.000000e+00 : f32
    %105 = vector.broadcast %cst_40 : f32 to vector<2x256xf32>
    %106 = arith.addf %105, %104 : vector<2x256xf32>
    %cst_41 = arith.constant 1.000000e+00 : f32
    %107 = vector.broadcast %cst_41 : f32 to vector<2x256xf32>
    %108 = arith.divf %107, %106 : vector<2x256xf32>
    %109 = vector.extract_strided_slice %92 {offsets = [0, 512], sizes = [2, 256], strides = [1, 1]} : vector<2x1024xf32> to vector<2x256xf32>
    %110 = math.tanh %109 : vector<2x256xf32>
    %111 = vector.extract_strided_slice %92 {offsets = [0, 768], sizes = [2, 256], strides = [1, 1]} : vector<2x1024xf32> to vector<2x256xf32>
    %cst_42 = arith.constant 0.000000e+00 : f32
    %112 = vector.broadcast %cst_42 : f32 to vector<2x256xf32>
    %113 = arith.subf %112, %111 : vector<2x256xf32>
    %114 = math.exp %113 : vector<2x256xf32>
    %cst_43 = arith.constant 1.000000e+00 : f32
    %115 = vector.broadcast %cst_43 : f32 to vector<2x256xf32>
    %116 = arith.addf %115, %114 : vector<2x256xf32>
    %cst_44 = arith.constant 1.000000e+00 : f32
    %117 = vector.broadcast %cst_44 : f32 to vector<2x256xf32>
    %118 = arith.divf %117, %116 : vector<2x256xf32>
    %119 = arith.mulf %108, %83 : vector<2x256xf32>
    %120 = arith.mulf %100, %110 : vector<2x256xf32>
    %121 = arith.addf %119, %120 : vector<2x256xf32>
    %122 = math.tanh %121 : vector<2x256xf32>
    %123 = arith.mulf %118, %122 : vector<2x256xf32>
    %124 = vector.shape_cast %123 : vector<2x256xf32> to vector<2x1x256xf32>
    %c0_45 = arith.constant 0 : index
    %c2 = arith.constant 2 : index
    %c0_46 = arith.constant 0 : index
    %125 = vector.load %arg7[%c0_45, %c2, %c0_46] : memref<2x8x256xf32, #tpu.memory_space<vmem>>, vector<2x1x256xf32>
    tpu.vector_store %arg7[%c0_45, %c2, %c0_46], %124 {strides = array<i32>} : memref<2x8x256xf32, #tpu.memory_space<vmem>>, vector<2x1x256xf32>,
    %126 = vector.extract_strided_slice %8 {offsets = [0, 3, 0], sizes = [2, 1, 1024], strides = [1, 1, 1]} : vector<2x8x1024xf32> to vector<2x1x1024xf32>
    %127 = vector.shape_cast %126 : vector<2x1x1024xf32> to vector<2x1024xf32>
    %128 = arith.truncf %123 : vector<2x256xf32> to vector<2x256xbf16>
    %cst_47 = arith.constant dense<0.000000e+00> : vector<2x1024xf32>
    %129 = tpu.matmul %128, %9, %cst_47 {dimension_numbers = #tpu.dot_dimension_numbers<[1], [0], [0], [1], [0, 0, 1, 1], [], []>} : vector<2x256xbf16>, vector<256x1024xbf16>, vector<2x1024xf32> -> vector<2x1024xf32>
    %130 = arith.addf %127, %129 : vector<2x1024xf32>
    %131 = vector.extract_strided_slice %130 {offsets = [0, 0], sizes = [2, 256], strides = [1, 1]} : vector<2x1024xf32> to vector<2x256xf32>
    %cst_48 = arith.constant 0.000000e+00 : f32
    %132 = vector.broadcast %cst_48 : f32 to vector<2x256xf32>
    %133 = arith.subf %132, %131 : vector<2x256xf32>
    %134 = math.exp %133 : vector<2x256xf32>
    %cst_49 = arith.constant 1.000000e+00 : f32
    %135 = vector.broadcast %cst_49 : f32 to vector<2x256xf32>
    %136 = arith.addf %135, %134 : vector<2x256xf32>
    %cst_50 = arith.constant 1.000000e+00 : f32
    %137 = vector.broadcast %cst_50 : f32 to vector<2x256xf32>
    %138 = arith.divf %137, %136 : vector<2x256xf32>
    %139 = vector.extract_strided_slice %130 {offsets = [0, 256], sizes = [2, 256], strides = [1, 1]} : vector<2x1024xf32> to vector<2x256xf32>
    %cst_51 = arith.constant 0.000000e+00 : f32
    %140 = vector.broadcast %cst_51 : f32 to vector<2x256xf32>
    %141 = arith.subf %140, %139 : vector<2x256xf32>
    %142 = math.exp %141 : vector<2x256xf32>
    %cst_52 = arith.constant 1.000000e+00 : f32
    %143 = vector.broadcast %cst_52 : f32 to vector<2x256xf32>
    %144 = arith.addf %143, %142 : vector<2x256xf32>
    %cst_53 = arith.constant 1.000000e+00 : f32
    %145 = vector.broadcast %cst_53 : f32 to vector<2x256xf32>
    %146 = arith.divf %145, %144 : vector<2x256xf32>
    %147 = vector.extract_strided_slice %130 {offsets = [0, 512], sizes = [2, 256], strides = [1, 1]} : vector<2x1024xf32> to vector<2x256xf32>
    %148 = math.tanh %147 : vector<2x256xf32>
    %149 = vector.extract_strided_slice %130 {offsets = [0, 768], sizes = [2, 256], strides = [1, 1]} : vector<2x1024xf32> to vector<2x256xf32>
    %cst_54 = arith.constant 0.000000e+00 : f32
    %150 = vector.broadcast %cst_54 : f32 to vector<2x256xf32>
    %151 = arith.subf %150, %149 : vector<2x256xf32>
    %152 = math.exp %151 : vector<2x256xf32>
    %cst_55 = arith.constant 1.000000e+00 : f32
    %153 = vector.broadcast %cst_55 : f32 to vector<2x256xf32>
    %154 = arith.addf %153, %152 : vector<2x256xf32>
    %cst_56 = arith.constant 1.000000e+00 : f32
    %155 = vector.broadcast %cst_56 : f32 to vector<2x256xf32>
    %156 = arith.divf %155, %154 : vector<2x256xf32>
    %157 = arith.mulf %146, %121 : vector<2x256xf32>
    %158 = arith.mulf %138, %148 : vector<2x256xf32>
    %159 = arith.addf %157, %158 : vector<2x256xf32>
    %160 = math.tanh %159 : vector<2x256xf32>
    %161 = arith.mulf %156, %160 : vector<2x256xf32>
    %162 = vector.shape_cast %161 : vector<2x256xf32> to vector<2x1x256xf32>
    %c0_57 = arith.constant 0 : index
    %c3 = arith.constant 3 : index
    %c0_58 = arith.constant 0 : index
    %163 = vector.load %arg7[%c0_57, %c3, %c0_58] : memref<2x8x256xf32, #tpu.memory_space<vmem>>, vector<2x1x256xf32>
    tpu.vector_store %arg7[%c0_57, %c3, %c0_58], %162 {strides = array<i32>} : memref<2x8x256xf32, #tpu.memory_space<vmem>>, vector<2x1x256xf32>,
    %164 = vector.extract_strided_slice %8 {offsets = [0, 4, 0], sizes = [2, 1, 1024], strides = [1, 1, 1]} : vector<2x8x1024xf32> to vector<2x1x1024xf32>
    %165 = vector.shape_cast %164 : vector<2x1x1024xf32> to vector<2x1024xf32>
    %166 = arith.truncf %161 : vector<2x256xf32> to vector<2x256xbf16>
    %cst_59 = arith.constant dense<0.000000e+00> : vector<2x1024xf32>
    %167 = tpu.matmul %166, %9, %cst_59 {dimension_numbers = #tpu.dot_dimension_numbers<[1], [0], [0], [1], [0, 0, 1, 1], [], []>} : vector<2x256xbf16>, vector<256x1024xbf16>, vector<2x1024xf32> -> vector<2x1024xf32>
    %168 = arith.addf %165, %167 : vector<2x1024xf32>
    %169 = vector.extract_strided_slice %168 {offsets = [0, 0], sizes = [2, 256], strides = [1, 1]} : vector<2x1024xf32> to vector<2x256xf32>
    %cst_60 = arith.constant 0.000000e+00 : f32
    %170 = vector.broadcast %cst_60 : f32 to vector<2x256xf32>
    %171 = arith.subf %170, %169 : vector<2x256xf32>
    %172 = math.exp %171 : vector<2x256xf32>
    %cst_61 = arith.constant 1.000000e+00 : f32
    %173 = vector.broadcast %cst_61 : f32 to vector<2x256xf32>
    %174 = arith.addf %173, %172 : vector<2x256xf32>
    %cst_62 = arith.constant 1.000000e+00 : f32
    %175 = vector.broadcast %cst_62 : f32 to vector<2x256xf32>
    %176 = arith.divf %175, %174 : vector<2x256xf32>
    %177 = vector.extract_strided_slice %168 {offsets = [0, 256], sizes = [2, 256], strides = [1, 1]} : vector<2x1024xf32> to vector<2x256xf32>
    %cst_63 = arith.constant 0.000000e+00 : f32
    %178 = vector.broadcast %cst_63 : f32 to vector<2x256xf32>
    %179 = arith.subf %178, %177 : vector<2x256xf32>
    %180 = math.exp %179 : vector<2x256xf32>
    %cst_64 = arith.constant 1.000000e+00 : f32
    %181 = vector.broadcast %cst_64 : f32 to vector<2x256xf32>
    %182 = arith.addf %181, %180 : vector<2x256xf32>
    %cst_65 = arith.constant 1.000000e+00 : f32
    %183 = vector.broadcast %cst_65 : f32 to vector<2x256xf32>
    %184 = arith.divf %183, %182 : vector<2x256xf32>
    %185 = vector.extract_strided_slice %168 {offsets = [0, 512], sizes = [2, 256], strides = [1, 1]} : vector<2x1024xf32> to vector<2x256xf32>
    %186 = math.tanh %185 : vector<2x256xf32>
    %187 = vector.extract_strided_slice %168 {offsets = [0, 768], sizes = [2, 256], strides = [1, 1]} : vector<2x1024xf32> to vector<2x256xf32>
    %cst_66 = arith.constant 0.000000e+00 : f32
    %188 = vector.broadcast %cst_66 : f32 to vector<2x256xf32>
    %189 = arith.subf %188, %187 : vector<2x256xf32>
    %190 = math.exp %189 : vector<2x256xf32>
    %cst_67 = arith.constant 1.000000e+00 : f32
    %191 = vector.broadcast %cst_67 : f32 to vector<2x256xf32>
    %192 = arith.addf %191, %190 : vector<2x256xf32>
    %cst_68 = arith.constant 1.000000e+00 : f32
    %193 = vector.broadcast %cst_68 : f32 to vector<2x256xf32>
    %194 = arith.divf %193, %192 : vector<2x256xf32>
    %195 = arith.mulf %184, %159 : vector<2x256xf32>
    %196 = arith.mulf %176, %186 : vector<2x256xf32>
    %197 = arith.addf %195, %196 : vector<2x256xf32>
    %198 = math.tanh %197 : vector<2x256xf32>
    %199 = arith.mulf %194, %198 : vector<2x256xf32>
    %200 = vector.shape_cast %199 : vector<2x256xf32> to vector<2x1x256xf32>
    %c0_69 = arith.constant 0 : index
    %c4 = arith.constant 4 : index
    %c0_70 = arith.constant 0 : index
    %201 = vector.load %arg7[%c0_69, %c4, %c0_70] : memref<2x8x256xf32, #tpu.memory_space<vmem>>, vector<2x1x256xf32>
    tpu.vector_store %arg7[%c0_69, %c4, %c0_70], %200 {strides = array<i32>} : memref<2x8x256xf32, #tpu.memory_space<vmem>>, vector<2x1x256xf32>,
    %202 = vector.extract_strided_slice %8 {offsets = [0, 5, 0], sizes = [2, 1, 1024], strides = [1, 1, 1]} : vector<2x8x1024xf32> to vector<2x1x1024xf32>
    %203 = vector.shape_cast %202 : vector<2x1x1024xf32> to vector<2x1024xf32>
    %204 = arith.truncf %199 : vector<2x256xf32> to vector<2x256xbf16>
    %cst_71 = arith.constant dense<0.000000e+00> : vector<2x1024xf32>
    %205 = tpu.matmul %204, %9, %cst_71 {dimension_numbers = #tpu.dot_dimension_numbers<[1], [0], [0], [1], [0, 0, 1, 1], [], []>} : vector<2x256xbf16>, vector<256x1024xbf16>, vector<2x1024xf32> -> vector<2x1024xf32>
    %206 = arith.addf %203, %205 : vector<2x1024xf32>
    %207 = vector.extract_strided_slice %206 {offsets = [0, 0], sizes = [2, 256], strides = [1, 1]} : vector<2x1024xf32> to vector<2x256xf32>
    %cst_72 = arith.constant 0.000000e+00 : f32
    %208 = vector.broadcast %cst_72 : f32 to vector<2x256xf32>
    %209 = arith.subf %208, %207 : vector<2x256xf32>
    %210 = math.exp %209 : vector<2x256xf32>
    %cst_73 = arith.constant 1.000000e+00 : f32
    %211 = vector.broadcast %cst_73 : f32 to vector<2x256xf32>
    %212 = arith.addf %211, %210 : vector<2x256xf32>
    %cst_74 = arith.constant 1.000000e+00 : f32
    %213 = vector.broadcast %cst_74 : f32 to vector<2x256xf32>
    %214 = arith.divf %213, %212 : vector<2x256xf32>
    %215 = vector.extract_strided_slice %206 {offsets = [0, 256], sizes = [2, 256], strides = [1, 1]} : vector<2x1024xf32> to vector<2x256xf32>
    %cst_75 = arith.constant 0.000000e+00 : f32
    %216 = vector.broadcast %cst_75 : f32 to vector<2x256xf32>
    %217 = arith.subf %216, %215 : vector<2x256xf32>
    %218 = math.exp %217 : vector<2x256xf32>
    %cst_76 = arith.constant 1.000000e+00 : f32
    %219 = vector.broadcast %cst_76 : f32 to vector<2x256xf32>
    %220 = arith.addf %219, %218 : vector<2x256xf32>
    %cst_77 = arith.constant 1.000000e+00 : f32
    %221 = vector.broadcast %cst_77 : f32 to vector<2x256xf32>
    %222 = arith.divf %221, %220 : vector<2x256xf32>
    %223 = vector.extract_strided_slice %206 {offsets = [0, 512], sizes = [2, 256], strides = [1, 1]} : vector<2x1024xf32> to vector<2x256xf32>
    %224 = math.tanh %223 : vector<2x256xf32>
    %225 = vector.extract_strided_slice %206 {offsets = [0, 768], sizes = [2, 256], strides = [1, 1]} : vector<2x1024xf32> to vector<2x256xf32>
    %cst_78 = arith.constant 0.000000e+00 : f32
    %226 = vector.broadcast %cst_78 : f32 to vector<2x256xf32>
    %227 = arith.subf %226, %225 : vector<2x256xf32>
    %228 = math.exp %227 : vector<2x256xf32>
    %cst_79 = arith.constant 1.000000e+00 : f32
    %229 = vector.broadcast %cst_79 : f32 to vector<2x256xf32>
    %230 = arith.addf %229, %228 : vector<2x256xf32>
    %cst_80 = arith.constant 1.000000e+00 : f32
    %231 = vector.broadcast %cst_80 : f32 to vector<2x256xf32>
    %232 = arith.divf %231, %230 : vector<2x256xf32>
    %233 = arith.mulf %222, %197 : vector<2x256xf32>
    %234 = arith.mulf %214, %224 : vector<2x256xf32>
    %235 = arith.addf %233, %234 : vector<2x256xf32>
    %236 = math.tanh %235 : vector<2x256xf32>
    %237 = arith.mulf %232, %236 : vector<2x256xf32>
    %238 = vector.shape_cast %237 : vector<2x256xf32> to vector<2x1x256xf32>
    %c0_81 = arith.constant 0 : index
    %c5 = arith.constant 5 : index
    %c0_82 = arith.constant 0 : index
    %239 = vector.load %arg7[%c0_81, %c5, %c0_82] : memref<2x8x256xf32, #tpu.memory_space<vmem>>, vector<2x1x256xf32>
    tpu.vector_store %arg7[%c0_81, %c5, %c0_82], %238 {strides = array<i32>} : memref<2x8x256xf32, #tpu.memory_space<vmem>>, vector<2x1x256xf32>,
    %240 = vector.extract_strided_slice %8 {offsets = [0, 6, 0], sizes = [2, 1, 1024], strides = [1, 1, 1]} : vector<2x8x1024xf32> to vector<2x1x1024xf32>
    %241 = vector.shape_cast %240 : vector<2x1x1024xf32> to vector<2x1024xf32>
    %242 = arith.truncf %237 : vector<2x256xf32> to vector<2x256xbf16>
    %cst_83 = arith.constant dense<0.000000e+00> : vector<2x1024xf32>
    %243 = tpu.matmul %242, %9, %cst_83 {dimension_numbers = #tpu.dot_dimension_numbers<[1], [0], [0], [1], [0, 0, 1, 1], [], []>} : vector<2x256xbf16>, vector<256x1024xbf16>, vector<2x1024xf32> -> vector<2x1024xf32>
    %244 = arith.addf %241, %243 : vector<2x1024xf32>
    %245 = vector.extract_strided_slice %244 {offsets = [0, 0], sizes = [2, 256], strides = [1, 1]} : vector<2x1024xf32> to vector<2x256xf32>
    %cst_84 = arith.constant 0.000000e+00 : f32
    %246 = vector.broadcast %cst_84 : f32 to vector<2x256xf32>
    %247 = arith.subf %246, %245 : vector<2x256xf32>
    %248 = math.exp %247 : vector<2x256xf32>
    %cst_85 = arith.constant 1.000000e+00 : f32
    %249 = vector.broadcast %cst_85 : f32 to vector<2x256xf32>
    %250 = arith.addf %249, %248 : vector<2x256xf32>
    %cst_86 = arith.constant 1.000000e+00 : f32
    %251 = vector.broadcast %cst_86 : f32 to vector<2x256xf32>
    %252 = arith.divf %251, %250 : vector<2x256xf32>
    %253 = vector.extract_strided_slice %244 {offsets = [0, 256], sizes = [2, 256], strides = [1, 1]} : vector<2x1024xf32> to vector<2x256xf32>
    %cst_87 = arith.constant 0.000000e+00 : f32
    %254 = vector.broadcast %cst_87 : f32 to vector<2x256xf32>
    %255 = arith.subf %254, %253 : vector<2x256xf32>
    %256 = math.exp %255 : vector<2x256xf32>
    %cst_88 = arith.constant 1.000000e+00 : f32
    %257 = vector.broadcast %cst_88 : f32 to vector<2x256xf32>
    %258 = arith.addf %257, %256 : vector<2x256xf32>
    %cst_89 = arith.constant 1.000000e+00 : f32
    %259 = vector.broadcast %cst_89 : f32 to vector<2x256xf32>
    %260 = arith.divf %259, %258 : vector<2x256xf32>
    %261 = vector.extract_strided_slice %244 {offsets = [0, 512], sizes = [2, 256], strides = [1, 1]} : vector<2x1024xf32> to vector<2x256xf32>
    %262 = math.tanh %261 : vector<2x256xf32>
    %263 = vector.extract_strided_slice %244 {offsets = [0, 768], sizes = [2, 256], strides = [1, 1]} : vector<2x1024xf32> to vector<2x256xf32>
    %cst_90 = arith.constant 0.000000e+00 : f32
    %264 = vector.broadcast %cst_90 : f32 to vector<2x256xf32>
    %265 = arith.subf %264, %263 : vector<2x256xf32>
    %266 = math.exp %265 : vector<2x256xf32>
    %cst_91 = arith.constant 1.000000e+00 : f32
    %267 = vector.broadcast %cst_91 : f32 to vector<2x256xf32>
    %268 = arith.addf %267, %266 : vector<2x256xf32>
    %cst_92 = arith.constant 1.000000e+00 : f32
    %269 = vector.broadcast %cst_92 : f32 to vector<2x256xf32>
    %270 = arith.divf %269, %268 : vector<2x256xf32>
    %271 = arith.mulf %260, %235 : vector<2x256xf32>
    %272 = arith.mulf %252, %262 : vector<2x256xf32>
    %273 = arith.addf %271, %272 : vector<2x256xf32>
    %274 = math.tanh %273 : vector<2x256xf32>
    %275 = arith.mulf %270, %274 : vector<2x256xf32>
    %276 = vector.shape_cast %275 : vector<2x256xf32> to vector<2x1x256xf32>
    %c0_93 = arith.constant 0 : index
    %c6 = arith.constant 6 : index
    %c0_94 = arith.constant 0 : index
    %277 = vector.load %arg7[%c0_93, %c6, %c0_94] : memref<2x8x256xf32, #tpu.memory_space<vmem>>, vector<2x1x256xf32>
    tpu.vector_store %arg7[%c0_93, %c6, %c0_94], %276 {strides = array<i32>} : memref<2x8x256xf32, #tpu.memory_space<vmem>>, vector<2x1x256xf32>,
    %278 = vector.extract_strided_slice %8 {offsets = [0, 7, 0], sizes = [2, 1, 1024], strides = [1, 1, 1]} : vector<2x8x1024xf32> to vector<2x1x1024xf32>
    %279 = vector.shape_cast %278 : vector<2x1x1024xf32> to vector<2x1024xf32>
    %280 = arith.truncf %275 : vector<2x256xf32> to vector<2x256xbf16>
    %cst_95 = arith.constant dense<0.000000e+00> : vector<2x1024xf32>
    %281 = tpu.matmul %280, %9, %cst_95 {dimension_numbers = #tpu.dot_dimension_numbers<[1], [0], [0], [1], [0, 0, 1, 1], [], []>} : vector<2x256xbf16>, vector<256x1024xbf16>, vector<2x1024xf32> -> vector<2x1024xf32>
    %282 = arith.addf %279, %281 : vector<2x1024xf32>
    %283 = vector.extract_strided_slice %282 {offsets = [0, 0], sizes = [2, 256], strides = [1, 1]} : vector<2x1024xf32> to vector<2x256xf32>
    %cst_96 = arith.constant 0.000000e+00 : f32
    %284 = vector.broadcast %cst_96 : f32 to vector<2x256xf32>
    %285 = arith.subf %284, %283 : vector<2x256xf32>
    %286 = math.exp %285 : vector<2x256xf32>
    %cst_97 = arith.constant 1.000000e+00 : f32
    %287 = vector.broadcast %cst_97 : f32 to vector<2x256xf32>
    %288 = arith.addf %287, %286 : vector<2x256xf32>
    %cst_98 = arith.constant 1.000000e+00 : f32
    %289 = vector.broadcast %cst_98 : f32 to vector<2x256xf32>
    %290 = arith.divf %289, %288 : vector<2x256xf32>
    %291 = vector.extract_strided_slice %282 {offsets = [0, 256], sizes = [2, 256], strides = [1, 1]} : vector<2x1024xf32> to vector<2x256xf32>
    %cst_99 = arith.constant 0.000000e+00 : f32
    %292 = vector.broadcast %cst_99 : f32 to vector<2x256xf32>
    %293 = arith.subf %292, %291 : vector<2x256xf32>
    %294 = math.exp %293 : vector<2x256xf32>
    %cst_100 = arith.constant 1.000000e+00 : f32
    %295 = vector.broadcast %cst_100 : f32 to vector<2x256xf32>
    %296 = arith.addf %295, %294 : vector<2x256xf32>
    %cst_101 = arith.constant 1.000000e+00 : f32
    %297 = vector.broadcast %cst_101 : f32 to vector<2x256xf32>
    %298 = arith.divf %297, %296 : vector<2x256xf32>
    %299 = vector.extract_strided_slice %282 {offsets = [0, 512], sizes = [2, 256], strides = [1, 1]} : vector<2x1024xf32> to vector<2x256xf32>
    %300 = math.tanh %299 : vector<2x256xf32>
    %301 = vector.extract_strided_slice %282 {offsets = [0, 768], sizes = [2, 256], strides = [1, 1]} : vector<2x1024xf32> to vector<2x256xf32>
    %cst_102 = arith.constant 0.000000e+00 : f32
    %302 = vector.broadcast %cst_102 : f32 to vector<2x256xf32>
    %303 = arith.subf %302, %301 : vector<2x256xf32>
    %304 = math.exp %303 : vector<2x256xf32>
    %cst_103 = arith.constant 1.000000e+00 : f32
    %305 = vector.broadcast %cst_103 : f32 to vector<2x256xf32>
    %306 = arith.addf %305, %304 : vector<2x256xf32>
    %cst_104 = arith.constant 1.000000e+00 : f32
    %307 = vector.broadcast %cst_104 : f32 to vector<2x256xf32>
    %308 = arith.divf %307, %306 : vector<2x256xf32>
    %309 = arith.mulf %298, %273 : vector<2x256xf32>
    %310 = arith.mulf %290, %300 : vector<2x256xf32>
    %311 = arith.addf %309, %310 : vector<2x256xf32>
    %312 = math.tanh %311 : vector<2x256xf32>
    %313 = arith.mulf %308, %312 : vector<2x256xf32>
    %314 = vector.shape_cast %313 : vector<2x256xf32> to vector<2x1x256xf32>
    %c0_105 = arith.constant 0 : index
    %c7 = arith.constant 7 : index
    %c0_106 = arith.constant 0 : index
    %315 = vector.load %arg7[%c0_105, %c7, %c0_106] : memref<2x8x256xf32, #tpu.memory_space<vmem>>, vector<2x1x256xf32>
    tpu.vector_store %arg7[%c0_105, %c7, %c0_106], %314 {strides = array<i32>} : memref<2x8x256xf32, #tpu.memory_space<vmem>>, vector<2x1x256xf32>,
    %c0_107 = arith.constant 0 : index
    %c0_108 = arith.constant 0 : index
    %c0_109 = arith.constant 0 : index
    %316 = vector.load %arg7[%c0_107, %c0_108, %c0_109] : memref<2x8x256xf32, #tpu.memory_space<vmem>>, vector<2x8x256xf32>
    %317 = vector.shape_cast %316 : vector<2x8x256xf32> to vector<16x256xf32>
    %318 = arith.truncf %317 : vector<16x256xf32> to vector<16x256xbf16>
    %c0_110 = arith.constant 0 : index
    %c0_111 = arith.constant 0 : index
    %319 = vector.load %arg4[%c0_110, %c0_111] : memref<256x128xbf16, #tpu.memory_space<vmem>>, vector<256x128xbf16>
    %cst_112 = arith.constant dense<0.000000e+00> : vector<16x128xf32>
    %320 = tpu.matmul %318, %319, %cst_112 {dimension_numbers = #tpu.dot_dimension_numbers<[1], [0], [0], [1], [0, 0, 1, 1], [], []>} : vector<16x256xbf16>, vector<256x128xbf16>, vector<16x128xf32> -> vector<16x128xf32>
    %c0_113 = arith.constant 0 : index
    %c0_114 = arith.constant 0 : index
    %321 = vector.load %arg5[%c0_113, %c0_114] : memref<1x128xf32, #tpu.memory_space<vmem>>, vector<1x128xf32>
    %322 = vector.broadcast %321 : vector<1x128xf32> to vector<16x128xf32>
    %323 = arith.addf %320, %322 : vector<16x128xf32>
    %324 = vector.shape_cast %323 : vector<16x128xf32> to vector<2x8x128xf32>
    %c0_115 = arith.constant 0 : index
    %c0_116 = arith.constant 0 : index
    %c0_117 = arith.constant 0 : index
    %325 = vector.load %arg6[%c0_115, %c0_116, %c0_117] : memref<2x8x128xf32, #tpu.memory_space<vmem>>, vector<2x8x128xf32>
    tpu.vector_store %arg6[%c0_115, %c0_116, %c0_117], %324 {strides = array<i32>} : memref<2x8x128xf32, #tpu.memory_space<vmem>>, vector<2x8x128xf32>,
    return
  }
}

</mosaic_0001>

<llo_original>
// kernel: tpu_custom_call.1
$region0: #{tpu_custom_call.1}
  #allocation0 [shape = 'u32[]', space=smem, size = 0x4, offset = 0x4, fixed_abs, tag = 'smem constant byte address 0x4 - core index']
  #allocation1 [shape = 'u32[72,128]{1,0:T(1,128)}', space=vmem, size = 0x9000, scoped, tag = 'internal scratch']
  #allocation2 [shape = 'f32[2,8,256]{2,1,0:T(8,128)}', space=vmem, size = 0x4000, scoped, tag = 'scratch operand']
  %s0 = inlined_call_operand.hbm [shape: f32[2,8,128], index: 0, kind: input, shape index: {}]
  %s1 = inlined_call_operand.hbm [shape: bf16[128,1024], index: 1, kind: input, shape index: {}]
  %s2 = inlined_call_operand.hbm [shape: bf16[256,1024], index: 2, kind: input, shape index: {}]
  %s3 = inlined_call_operand.hbm [shape: f32[1,1024], index: 3, kind: input, shape index: {}]
  %s4 = inlined_call_operand.hbm [shape: bf16[256,128], index: 4, kind: input, shape index: {}]
  %s5 = inlined_call_operand.vmem [shape: f32[1,128], index: 5, kind: input, shape index: {}]
  %s6 = inlined_call_operand.hbm [shape: f32[2,8,128], index: 6, kind: output, shape index: {}]
  %s7 = sld [smem:[#allocation0]]
  $region54: #{tpu_custom_call.1} parent=0
    _
  %s9 = ssub.s32 1, %s7
  %s10 = scalar_select 0, %s9, %s7
  $region1: #{tpu_custom_call.1} parent=0
    #allocation3 [shape = 'u8[8192]{0}', space=vmem, size = 0x2000, scoped, tag = 'input window, operand 0, single buffered']
    #allocation4 [shape = 's32[1]{0}', space=sflag, size = 0x4, scoped, tag = 'scoped memory for tpu_custom_call.1']
    #allocation5 [shape = 's32[1]{0}', space=sflag, size = 0x4, scoped, tag = 'scoped memory for tpu_custom_call.1']
    #allocation6 [shape = 'u8[262144]{0}', space=vmem, size = 0x40000, scoped, tag = 'input window, operand 1, single buffered']
    #allocation7 [shape = 's32[1]{0}', space=sflag, size = 0x4, scoped, tag = 'scoped memory for tpu_custom_call.1']
    #allocation8 [shape = 'u8[524288]{0}', space=vmem, size = 0x80000, scoped, tag = 'input window, operand 2, single buffered']
    #allocation9 [shape = 'u8[4096]{0}', space=vmem, size = 0x1000, scoped, tag = 'input window, operand 3, single buffered']
    #allocation10 [shape = 's32[1]{0}', space=sflag, size = 0x4, scoped, tag = 'scoped memory for tpu_custom_call.1']
    #allocation11 [shape = 'u8[65536]{0}', space=vmem, size = 0x10000, scoped, tag = 'input window, operand 4, single buffered']
    #allocation12 [shape = 'u8[8192]{0}', space=vmem, size = 0x2000, scoped, tag = 'output window, operand 0, single buffered']
    %11 = vsyncpa [#allocation4], 0
    %12 = vsyncpa [#allocation7], 0
    %13 = vsyncpa [#allocation10], 0
    %14 = vsyncpa [#allocation5], 0
    // Predicated region
    $region2: #{tpu_custom_call.1} parent=1 // pred_check
      _
    $region3: #{tpu_custom_call.1} parent=1 // pred_check_branch
      %16 = sbr.rel (0) target = $region5
    $region4: #{tpu_custom_call.1} parent=1 // pred_region
      %18 = vsyncadd [#allocation4], 0
      %s19 = sshll.u32 %s0, 4
      %s20 = int_to_ptr.hbm [resolvable:$true] %s19
      %s21 = sshll.u32 [#allocation3], 4
      %s22 = int_to_ptr.vmem [resolvable:$true] %s21
      %27 = dma.hbm_to_vmem [thread:$0]  %s20, 256, %s22, [#allocation4], 128, 128, 8
    $region5: #{tpu_custom_call.1} parent=1 // pred_fallthru
      _
    // Predicated region
    $region6: #{tpu_custom_call.1} parent=1 // pred_check
      _
    $region7: #{tpu_custom_call.1} parent=1 // pred_check_branch
      %29 = sbr.rel (0) target = $region9
    $region8: #{tpu_custom_call.1} parent=1 // pred_region
      %31 = vsyncadd [#allocation7], 0
      %s32 = sshll.u32 %s1, 4
      %s33 = int_to_ptr.hbm [resolvable:$true] %s32
      %s34 = sshll.u32 [#allocation6], 4
      %s35 = int_to_ptr.vmem [resolvable:$true] %s34
      %40 = dma.hbm_to_vmem [thread:$0]  %s33, 8192, %s35, [#allocation7], 512, 512, 32
    $region9: #{tpu_custom_call.1} parent=1 // pred_fallthru
      _
    // Predicated region
    $region10: #{tpu_custom_call.1} parent=1 // pred_check
      _
    $region11: #{tpu_custom_call.1} parent=1 // pred_check_branch
      %42 = sbr.rel (0) target = $region13
    $region12: #{tpu_custom_call.1} parent=1 // pred_region
      %44 = vsyncadd [#allocation7], 0
      %s45 = sshll.u32 %s2, 4
      %s46 = int_to_ptr.hbm [resolvable:$true] %s45
      %s47 = sshll.u32 [#allocation8], 4
      %s48 = int_to_ptr.vmem [resolvable:$true] %s47
      %53 = dma.hbm_to_vmem [thread:$0]  %s46, 16384, %s48, [#allocation7], 512, 512, 32
    $region13: #{tpu_custom_call.1} parent=1 // pred_fallthru
      _
    // Predicated region
    $region14: #{tpu_custom_call.1} parent=1 // pred_check
      _
    $region15: #{tpu_custom_call.1} parent=1 // pred_check_branch
      %55 = sbr.rel (0) target = $region17
    $region16: #{tpu_custom_call.1} parent=1 // pred_region
      %57 = vsyncadd [#allocation10], 0
      %s59 = sshll.u32 %s3, 4
      %s60 = int_to_ptr.hbm [resolvable:$true] %s59
      %s61 = sshll.u32 [#allocation9], 4
      %s62 = int_to_ptr.vmem [resolvable:$true] %s61
      %64 = dma.hbm_to_vmem [thread:$0]  %s60, 128, %s62, [#allocation10]
    $region17: #{tpu_custom_call.1} parent=1 // pred_fallthru
      _
    // Predicated region
    $region18: #{tpu_custom_call.1} parent=1 // pred_check
      _
    $region19: #{tpu_custom_call.1} parent=1 // pred_check_branch
      %66 = sbr.rel (0) target = $region21
    $region20: #{tpu_custom_call.1} parent=1 // pred_region
      %68 = vsyncadd [#allocation10], 0
      %s69 = sshll.u32 %s4, 4
      %s70 = int_to_ptr.hbm [resolvable:$true] %s69
      %s71 = sshll.u32 [#allocation11], 4
      %s72 = int_to_ptr.vmem [resolvable:$true] %s71
      %77 = dma.hbm_to_vmem [thread:$0]  %s70, 2048, %s72, [#allocation10], 64, 64, 4
    $region21: #{tpu_custom_call.1} parent=1 // pred_fallthru
      _
    // Predicated region
    $region22: #{tpu_custom_call.1} parent=1 // pred_check
      _
    $region23: #{tpu_custom_call.1} parent=1 // pred_check_branch
      %79 = sbr.rel (0) target = $region25
    $region24: #{tpu_custom_call.1} parent=1 // pred_region
      _
    $region25: #{tpu_custom_call.1} parent=1 // pred_fallthru
      _
    // Predicated region
    $region26: #{tpu_custom_call.1} parent=1 // pred_check
      _
    $region27: #{tpu_custom_call.1} parent=1 // pred_check_branch
      %81 = sbr.rel (0) target = $region29
    $region28: #{tpu_custom_call.1} parent=1 // pred_region
      %83 = dma.done [#allocation4], 256
    $region29: #{tpu_custom_call.1} parent=1 // pred_fallthru
      _
    // Predicated region
    $region30: #{tpu_custom_call.1} parent=1 // pred_check
      _
    $region31: #{tpu_custom_call.1} parent=1 // pred_check_branch
      %85 = sbr.rel (0) target = $region33
    $region32: #{tpu_custom_call.1} parent=1 // pred_region
      %87 = dma.done [#allocation7], 8192
    $region33: #{tpu_custom_call.1} parent=1 // pred_fallthru
      _
    // Predicated region
    $region34: #{tpu_custom_call.1} parent=1 // pred_check
      _
    $region35: #{tpu_custom_call.1} parent=1 // pred_check_branch
      %89 = sbr.rel (0) target = $region37
    $region36: #{tpu_custom_call.1} parent=1 // pred_region
      %91 = dma.done [#allocation7], 16384
    $region37: #{tpu_custom_call.1} parent=1 // pred_fallthru
      _
    // Predicated region
    $region38: #{tpu_custom_call.1} parent=1 // pred_check
      _
    $region39: #{tpu_custom_call.1} parent=1 // pred_check_branch
      %93 = sbr.rel (0) target = $region41
    $region40: #{tpu_custom_call.1} parent=1 // pred_region
      %95 = dma.done [#allocation10], 128
    $region41: #{tpu_custom_call.1} parent=1 // pred_fallthru
      _
    // Predicated region
    $region42: #{tpu_custom_call.1} parent=1 // pred_check
      _
    $region43: #{tpu_custom_call.1} parent=1 // pred_check_branch
      %97 = sbr.rel (0) target = $region45
    $region44: #{tpu_custom_call.1} parent=1 // pred_region
      %99 = dma.done [#allocation10], 2048
    $region45: #{tpu_custom_call.1} parent=1 // pred_fallthru
      _
    %v101 = vld [vmem:[#allocation3] sm:$0xff]
    %v102 = vld [vmem:[#allocation3 + $0x8] sm:$0xff]
    %v103 = vpack.c.bf16 %v102, %v101
    %v104 = vld [vmem:[#allocation6] sm:$0xff]
    %v105 = vld [vmem:[#allocation6 + $0x8] sm:$0xff]
    %v106 = vld [vmem:[#allocation6 + $0x10] sm:$0xff]
    %v107 = vld [vmem:[#allocation6 + $0x18] sm:$0xff]
    %v108 = vld [vmem:[#allocation6 + $0x20] sm:$0xff]
    %v109 = vld [vmem:[#allocation6 + $0x28] sm:$0xff]
    %v110 = vld [vmem:[#allocation6 + $0x30] sm:$0xff]
    %v111 = vld [vmem:[#allocation6 + $0x38] sm:$0xff]
    %v112 = vld [vmem:[#allocation6 + $0x40] sm:$0xff]
    %v113 = vld [vmem:[#allocation6 + $0x48] sm:$0xff]
    %v114 = vld [vmem:[#allocation6 + $0x50] sm:$0xff]
    %v115 = vld [vmem:[#allocation6 + $0x58] sm:$0xff]
    %v116 = vld [vmem:[#allocation6 + $0x60] sm:$0xff]
    %v117 = vld [vmem:[#allocation6 + $0x68] sm:$0xff]
    %v118 = vld [vmem:[#allocation6 + $0x70] sm:$0xff]
    %v119 = vld [vmem:[#allocation6 + $0x78] sm:$0xff]
    %v120 = vld [vmem:[#allocation6 + $0x80] sm:$0xff]
    %v121 = vld [vmem:[#allocation6 + $0x88] sm:$0xff]
    %v122 = vld [vmem:[#allocation6 + $0x90] sm:$0xff]
    %v123 = vld [vmem:[#allocation6 + $0x98] sm:$0xff]
    %v124 = vld [vmem:[#allocation6 + $0xa0] sm:$0xff]
    %v125 = vld [vmem:[#allocation6 + $0xa8] sm:$0xff]
    %v126 = vld [vmem:[#allocation6 + $0xb0] sm:$0xff]
    %v127 = vld [vmem:[#allocation6 + $0xb8] sm:$0xff]
    %v128 = vld [vmem:[#allocation6 + $0xc0] sm:$0xff]
    %v129 = vld [vmem:[#allocation6 + $0xc8] sm:$0xff]
    %v130 = vld [vmem:[#allocation6 + $0xd0] sm:$0xff]
    %v131 = vld [vmem:[#allocation6 + $0xd8] sm:$0xff]
    %v132 = vld [vmem:[#allocation6 + $0xe0] sm:$0xff]
    %v133 = vld [vmem:[#allocation6 + $0xe8] sm:$0xff]
    %v134 = vld [vmem:[#allocation6 + $0xf0] sm:$0xff]
    %v135 = vld [vmem:[#allocation6 + $0xf8] sm:$0xff]
    %v136 = vld [vmem:[#allocation6 + $0x100] sm:$0xff]
    %v137 = vld [vmem:[#allocation6 + $0x108] sm:$0xff]
    %v138 = vld [vmem:[#allocation6 + $0x110] sm:$0xff]
    %v139 = vld [vmem:[#allocation6 + $0x118] sm:$0xff]
    %v140 = vld [vmem:[#allocation6 + $0x120] sm:$0xff]
    %v141 = vld [vmem:[#allocation6 + $0x128] sm:$0xff]
    %v142 = vld [vmem:[#allocation6 + $0x130] sm:$0xff]
    %v143 = vld [vmem:[#allocation6 + $0x138] sm:$0xff]
    %v144 = vld [vmem:[#allocation6 + $0x140] sm:$0xff]
    %v145 = vld [vmem:[#allocation6 + $0x148] sm:$0xff]
    %v146 = vld [vmem:[#allocation6 + $0x150] sm:$0xff]
    %v147 = vld [vmem:[#allocation6 + $0x158] sm:$0xff]
    %v148 = vld [vmem:[#allocation6 + $0x160] sm:$0xff]
    %v149 = vld [vmem:[#allocation6 + $0x168] sm:$0xff]
    %v150 = vld [vmem:[#allocation6 + $0x170] sm:$0xff]
    %v151 = vld [vmem:[#allocation6 + $0x178] sm:$0xff]
    %v152 = vld [vmem:[#allocation6 + $0x180] sm:$0xff]
    %v153 = vld [vmem:[#allocation6 + $0x188] sm:$0xff]
    %v154 = vld [vmem:[#allocation6 + $0x190] sm:$0xff]
    %v155 = vld [vmem:[#allocation6 + $0x198] sm:$0xff]
    %v156 = vld [vmem:[#allocation6 + $0x1a0] sm:$0xff]
    %v157 = vld [vmem:[#allocation6 + $0x1a8] sm:$0xff]
    %v158 = vld [vmem:[#allocation6 + $0x1b0] sm:$0xff]
    %v159 = vld [vmem:[#allocation6 + $0x1b8] sm:$0xff]
    %v160 = vld [vmem:[#allocation6 + $0x1c0] sm:$0xff]
    %v161 = vld [vmem:[#allocation6 + $0x1c8] sm:$0xff]
    %v162 = vld [vmem:[#allocation6 + $0x1d0] sm:$0xff]
    %v163 = vld [vmem:[#allocation6 + $0x1d8] sm:$0xff]
    %v164 = vld [vmem:[#allocation6 + $0x1e0] sm:$0xff]
    %v165 = vld [vmem:[#allocation6 + $0x1e8] sm:$0xff]
    %v166 = vld [vmem:[#allocation6 + $0x1f0] sm:$0xff]
    %v167 = vld [vmem:[#allocation6 + $0x1f8] sm:$0xff]
    %v168 = vld [vmem:[#allocation9] sm:$0xff]
    %v170 = vperm.slane %v168, 0
    %v171 = vperm.slane %v168, 1
    %v172 = vperm.slane %v168, 2
    %v173 = vperm.slane %v168, 3
    %v174 = vperm.slane %v168, 4
    %v175 = vperm.slane %v168, 5
    %v176 = vperm.slane %v168, 6
    %v177 = vperm.slane %v168, 7
    %v250 = vunpack.c.l.b16 %v104
    %v251 = vunpack.c.h.b16 %v104
    %v252 = vunpack.c.l.b16 %v105
    %v253 = vunpack.c.h.b16 %v105
    %v254 = vunpack.c.l.b16 %v106
    %v255 = vunpack.c.h.b16 %v106
    %v256 = vunpack.c.l.b16 %v107
    %v257 = vunpack.c.h.b16 %v107
    %v258 = vunpack.c.l.b16 %v108
    %v259 = vunpack.c.h.b16 %v108
    %v260 = vunpack.c.l.b16 %v109
    %v261 = vunpack.c.h.b16 %v109
    %v262 = vunpack.c.l.b16 %v110
    %v263 = vunpack.c.h.b16 %v110
    %v264 = vunpack.c.l.b16 %v111
    %v265 = vunpack.c.h.b16 %v111
    %v266 = vunpack.c.l.b16 %v112
    %v267 = vunpack.c.h.b16 %v112
    %v268 = vunpack.c.l.b16 %v113
    %v269 = vunpack.c.h.b16 %v113
    %v270 = vunpack.c.l.b16 %v114
    %v271 = vunpack.c.h.b16 %v114
    %v272 = vunpack.c.l.b16 %v115
    %v273 = vunpack.c.h.b16 %v115
    %v274 = vunpack.c.l.b16 %v116
    %v275 = vunpack.c.h.b16 %v116
    %v276 = vunpack.c.l.b16 %v117
    %v277 = vunpack.c.h.b16 %v117
    %v278 = vunpack.c.l.b16 %v118
    %v279 = vunpack.c.h.b16 %v118
    %v280 = vunpack.c.l.b16 %v119
    %v281 = vunpack.c.h.b16 %v119
    %v282 = vunpack.c.l.b16 %v120
    %v283 = vunpack.c.h.b16 %v120
    %v284 = vunpack.c.l.b16 %v121
    %v285 = vunpack.c.h.b16 %v121
    %v286 = vunpack.c.l.b16 %v122
    %v287 = vunpack.c.h.b16 %v122
    %v288 = vunpack.c.l.b16 %v123
    %v289 = vunpack.c.h.b16 %v123
    %v290 = vunpack.c.l.b16 %v124
    %v291 = vunpack.c.h.b16 %v124
    %v292 = vunpack.c.l.b16 %v125
    %v293 = vunpack.c.h.b16 %v125
    %v294 = vunpack.c.l.b16 %v126
    %v295 = vunpack.c.h.b16 %v126
    %v296 = vunpack.c.l.b16 %v127
    %v297 = vunpack.c.h.b16 %v127
    %v298 = vunpack.c.l.b16 %v128
    %v299 = vunpack.c.h.b16 %v128
    %v300 = vunpack.c.l.b16 %v129
    %v301 = vunpack.c.h.b16 %v129
    %v302 = vunpack.c.l.b16 %v130
    %v303 = vunpack.c.h.b16 %v130
    %v304 = vunpack.c.l.b16 %v131
    %v305 = vunpack.c.h.b16 %v131
    %v306 = vunpack.c.l.b16 %v132
    %v307 = vunpack.c.h.b16 %v132
    %v308 = vunpack.c.l.b16 %v133
    %v309 = vunpack.c.h.b16 %v133
    %v310 = vunpack.c.l.b16 %v134
    %v311 = vunpack.c.h.b16 %v134
    %v312 = vunpack.c.l.b16 %v135
    %v313 = vunpack.c.h.b16 %v135
    %v314 = vunpack.c.l.b16 %v136
    %v315 = vunpack.c.h.b16 %v136
    %v316 = vunpack.c.l.b16 %v137
    %v317 = vunpack.c.h.b16 %v137
    %v318 = vunpack.c.l.b16 %v138
    %v319 = vunpack.c.h.b16 %v138
    %v320 = vunpack.c.l.b16 %v139
    %v321 = vunpack.c.h.b16 %v139
    %v322 = vunpack.c.l.b16 %v140
    %v323 = vunpack.c.h.b16 %v140
    %v324 = vunpack.c.l.b16 %v141
    %v325 = vunpack.c.h.b16 %v141
    %v326 = vunpack.c.l.b16 %v142
    %v327 = vunpack.c.h.b16 %v142
    %v328 = vunpack.c.l.b16 %v143
    %v329 = vunpack.c.h.b16 %v143
    %v330 = vunpack.c.l.b16 %v144
    %v331 = vunpack.c.h.b16 %v144
    %v332 = vunpack.c.l.b16 %v145
    %v333 = vunpack.c.h.b16 %v145
    %v334 = vunpack.c.l.b16 %v146
    %v335 = vunpack.c.h.b16 %v146
    %v336 = vunpack.c.l.b16 %v147
    %v337 = vunpack.c.h.b16 %v147
    %v338 = vunpack.c.l.b16 %v148
    %v339 = vunpack.c.h.b16 %v148
    %v340 = vunpack.c.l.b16 %v149
    %v341 = vunpack.c.h.b16 %v149
    %v342 = vunpack.c.l.b16 %v150
    %v343 = vunpack.c.h.b16 %v150
    %v344 = vunpack.c.l.b16 %v151
    %v345 = vunpack.c.h.b16 %v151
    %v346 = vunpack.c.l.b16 %v152
    %v347 = vunpack.c.h.b16 %v152
    %v348 = vunpack.c.l.b16 %v153
    %v349 = vunpack.c.h.b16 %v153
    %v350 = vunpack.c.l.b16 %v154
    %v351 = vunpack.c.h.b16 %v154
    %v352 = vunpack.c.l.b16 %v155
    %v353 = vunpack.c.h.b16 %v155
    %v354 = vunpack.c.l.b16 %v156
    %v355 = vunpack.c.h.b16 %v156
    %v356 = vunpack.c.l.b16 %v157
    %v357 = vunpack.c.h.b16 %v157
    %v358 = vunpack.c.l.b16 %v158
    %v359 = vunpack.c.h.b16 %v158
    %v360 = vunpack.c.l.b16 %v159
    %v361 = vunpack.c.h.b16 %v159
    %v362 = vunpack.c.l.b16 %v160
    %v363 = vunpack.c.h.b16 %v160
    %v364 = vunpack.c.l.b16 %v161
    %v365 = vunpack.c.h.b16 %v161
    %v366 = vunpack.c.l.b16 %v162
    %v367 = vunpack.c.h.b16 %v162
    %v368 = vunpack.c.l.b16 %v163
    %v369 = vunpack.c.h.b16 %v163
    %v370 = vunpack.c.l.b16 %v164
    %v371 = vunpack.c.h.b16 %v164
    %v372 = vunpack.c.l.b16 %v165
    %v373 = vunpack.c.h.b16 %v165
    %v374 = vunpack.c.l.b16 %v166
    %v375 = vunpack.c.h.b16 %v166
    %v376 = vunpack.c.l.b16 %v167
    %v377 = vunpack.c.h.b16 %v167
    %v378 = vpack.c.b16 %v258, %v250
    %v379 = vpack.c.b16 %v259, %v251
    %v380 = vpack.c.b16 %v260, %v252
    %v381 = vpack.c.b16 %v261, %v253
    %v382 = vpack.c.b16 %v262, %v254
    %v383 = vpack.c.b16 %v263, %v255
    %v384 = vpack.c.b16 %v264, %v256
    %v385 = vpack.c.b16 %v265, %v257
    %v386 = vpack.c.b16 %v274, %v266
    %v387 = vpack.c.b16 %v275, %v267
    %v388 = vpack.c.b16 %v276, %v268
    %v389 = vpack.c.b16 %v277, %v269
    %v390 = vpack.c.b16 %v278, %v270
    %v391 = vpack.c.b16 %v279, %v271
    %v392 = vpack.c.b16 %v280, %v272
    %v393 = vpack.c.b16 %v281, %v273
    %v394 = vpack.c.b16 %v290, %v282
    %v395 = vpack.c.b16 %v291, %v283
    %v396 = vpack.c.b16 %v292, %v284
    %v397 = vpack.c.b16 %v293, %v285
    %v398 = vpack.c.b16 %v294, %v286
    %v399 = vpack.c.b16 %v295, %v287
    %v400 = vpack.c.b16 %v296, %v288
    %v401 = vpack.c.b16 %v297, %v289
    %v402 = vpack.c.b16 %v306, %v298
    %v403 = vpack.c.b16 %v307, %v299
    %v404 = vpack.c.b16 %v308, %v300
    %v405 = vpack.c.b16 %v309, %v301
    %v406 = vpack.c.b16 %v310, %v302
    %v407 = vpack.c.b16 %v311, %v303
    %v408 = vpack.c.b16 %v312, %v304
    %v409 = vpack.c.b16 %v313, %v305
    %v410 = vpack.c.b16 %v322, %v314
    %v411 = vpack.c.b16 %v323, %v315
    %v412 = vpack.c.b16 %v324, %v316
    %v413 = vpack.c.b16 %v325, %v317
    %v414 = vpack.c.b16 %v326, %v318
    %v415 = vpack.c.b16 %v327, %v319
    %v416 = vpack.c.b16 %v328, %v320
    %v417 = vpack.c.b16 %v329, %v321
    %v418 = vpack.c.b16 %v338, %v330
    %v419 = vpack.c.b16 %v339, %v331
    %v420 = vpack.c.b16 %v340, %v332
    %v421 = vpack.c.b16 %v341, %v333
    %v422 = vpack.c.b16 %v342, %v334
    %v423 = vpack.c.b16 %v343, %v335
    %v424 = vpack.c.b16 %v344, %v336
    %v425 = vpack.c.b16 %v345, %v337
    %v426 = vpack.c.b16 %v354, %v346
    %v427 = vpack.c.b16 %v355, %v347
    %v428 = vpack.c.b16 %v356, %v348
    %v429 = vpack.c.b16 %v357, %v349
    %v430 = vpack.c.b16 %v358, %v350
    %v431 = vpack.c.b16 %v359, %v351
    %v432 = vpack.c.b16 %v360, %v352
    %v433 = vpack.c.b16 %v361, %v353
    %v434 = vpack.c.b16 %v370, %v362
    %v435 = vpack.c.b16 %v371, %v363
    %v436 = vpack.c.b16 %v372, %v364
    %v437 = vpack.c.b16 %v373, %v365
    %v438 = vpack.c.b16 %v374, %v366
    %v439 = vpack.c.b16 %v375, %v367
    %v440 = vpack.c.b16 %v376, %v368
    %v441 = vpack.c.b16 %v377, %v369
    %506 = vmatpush.bf16.msra.mxu0 %v434
    %507 = vmatpush.bf16.msra.mxu0 %v426
    %508 = vmatpush.bf16.msra.mxu0 %v418
    %509 = vmatpush.bf16.msra.mxu0 %v410
    %510 = vmatpush.bf16.msra.mxu0 %v402
    %511 = vmatpush.bf16.msra.mxu0 %v394
    %512 = vmatpush.bf16.msra.mxu0 %v386
    %513 = vmatpush.bf16.msra.mxu0 %v378
    %514 = vmatmul.bf16.gmra.mxu0 %v103
    %v515 = vpop.f32.mrf.mxu0
    %v516 = vadd.f32 %v170, %v515
    %v517 = vpop.f32.mrf.mxu0
    %v518 = vadd.f32 %v170, %v517
    %519 = vdwg.mxu0
    %520 = vmatpush.bf16.msra.mxu0 %v435
    %521 = vmatpush.bf16.msra.mxu0 %v427
    %522 = vmatpush.bf16.msra.mxu0 %v419
    %523 = vmatpush.bf16.msra.mxu0 %v411
    %524 = vmatpush.bf16.msra.mxu0 %v403
    %525 = vmatpush.bf16.msra.mxu0 %v395
    %526 = vmatpush.bf16.msra.mxu0 %v387
    %527 = vmatpush.bf16.msra.mxu0 %v379
    %528 = vmatmul.bf16.gmra.mxu0 %v103
    %v529 = vpop.f32.mrf.mxu0
    %v530 = vadd.f32 %v171, %v529
    %v531 = vpop.f32.mrf.mxu0
    %v532 = vadd.f32 %v171, %v531
    %533 = vdwg.mxu0
    %534 = vmatpush.bf16.msra.mxu0 %v436
    %535 = vmatpush.bf16.msra.mxu0 %v428
    %536 = vmatpush.bf16.msra.mxu0 %v420
    %537 = vmatpush.bf16.msra.mxu0 %v412
    %538 = vmatpush.bf16.msra.mxu0 %v404
    %539 = vmatpush.bf16.msra.mxu0 %v396
    %540 = vmatpush.bf16.msra.mxu0 %v388
    %541 = vmatpush.bf16.msra.mxu0 %v380
    %542 = vmatmul.bf16.gmra.mxu0 %v103
    %v543 = vpop.f32.mrf.mxu0
    %v544 = vadd.f32 %v172, %v543
    %v545 = vpop.f32.mrf.mxu0
    %v546 = vadd.f32 %v172, %v545
    %547 = vdwg.mxu0
    %548 = vmatpush.bf16.msra.mxu0 %v437
    %549 = vmatpush.bf16.msra.mxu0 %v429
    %550 = vmatpush.bf16.msra.mxu0 %v421
    %551 = vmatpush.bf16.msra.mxu0 %v413
    %552 = vmatpush.bf16.msra.mxu0 %v405
    %553 = vmatpush.bf16.msra.mxu0 %v397
    %554 = vmatpush.bf16.msra.mxu0 %v389
    %555 = vmatpush.bf16.msra.mxu0 %v381
    %556 = vmatmul.bf16.gmra.mxu0 %v103
    %v557 = vpop.f32.mrf.mxu0
    %v558 = vadd.f32 %v173, %v557
    %v559 = vpop.f32.mrf.mxu0
    %v560 = vadd.f32 %v173, %v559
    %561 = vdwg.mxu0
    %562 = vmatpush.bf16.msra.mxu0 %v438
    %563 = vmatpush.bf16.msra.mxu0 %v430
    %564 = vmatpush.bf16.msra.mxu0 %v422
    %565 = vmatpush.bf16.msra.mxu0 %v414
    %566 = vmatpush.bf16.msra.mxu0 %v406
    %567 = vmatpush.bf16.msra.mxu0 %v398
    %568 = vmatpush.bf16.msra.mxu0 %v390
    %569 = vmatpush.bf16.msra.mxu0 %v382
    %570 = vmatmul.bf16.gmra.mxu0 %v103
    %v571 = vpop.f32.mrf.mxu0
    %v572 = vadd.f32 %v174, %v571
    %v573 = vpop.f32.mrf.mxu0
    %v574 = vadd.f32 %v174, %v573
    %575 = vdwg.mxu0
    %576 = vmatpush.bf16.msra.mxu0 %v439
    %577 = vmatpush.bf16.msra.mxu0 %v431
    %578 = vmatpush.bf16.msra.mxu0 %v423
    %579 = vmatpush.bf16.msra.mxu0 %v415
    %580 = vmatpush.bf16.msra.mxu0 %v407
    %581 = vmatpush.bf16.msra.mxu0 %v399
    %582 = vmatpush.bf16.msra.mxu0 %v391
    %583 = vmatpush.bf16.msra.mxu0 %v383
    %584 = vmatmul.bf16.gmra.mxu0 %v103
    %v585 = vpop.f32.mrf.mxu0
    %v586 = vadd.f32 %v175, %v585
    %v587 = vpop.f32.mrf.mxu0
    %v588 = vadd.f32 %v175, %v587
    %589 = vdwg.mxu0
    %590 = vmatpush.bf16.msra.mxu0 %v440
    %591 = vmatpush.bf16.msra.mxu0 %v432
    %592 = vmatpush.bf16.msra.mxu0 %v424
    %593 = vmatpush.bf16.msra.mxu0 %v416
    %594 = vmatpush.bf16.msra.mxu0 %v408
    %595 = vmatpush.bf16.msra.mxu0 %v400
    %596 = vmatpush.bf16.msra.mxu0 %v392
    %597 = vmatpush.bf16.msra.mxu0 %v384
    %598 = vmatmul.bf16.gmra.mxu0 %v103
    %v599 = vpop.f32.mrf.mxu0
    %v600 = vadd.f32 %v176, %v599
    %v601 = vpop.f32.mrf.mxu0
    %v602 = vadd.f32 %v176, %v601
    %603 = vdwg.mxu0
    %604 = vmatpush.bf16.msra.mxu0 %v441
    %605 = vmatpush.bf16.msra.mxu0 %v433
    %606 = vmatpush.bf16.msra.mxu0 %v425
    %607 = vmatpush.bf16.msra.mxu0 %v417
    %608 = vmatpush.bf16.msra.mxu0 %v409
    %609 = vmatpush.bf16.msra.mxu0 %v401
    %610 = vmatpush.bf16.msra.mxu0 %v393
    %611 = vmatpush.bf16.msra.mxu0 %v385
    %612 = vmatmul.bf16.gmra.mxu0 %v103
    %v613 = vpop.f32.mrf.mxu0
    %v614 = vadd.f32 %v177, %v613
    %v615 = vpop.f32.mrf.mxu0
    %v616 = vadd.f32 %v177, %v615
    %617 = vdwg.mxu0
    %v618 = vld [vmem:[#allocation8] sm:$0xff]
    %v619 = vld [vmem:[#allocation8 + $0x8] sm:$0xff]
    %v620 = vld [vmem:[#allocation8 + $0x10] sm:$0xff]
    %v621 = vld [vmem:[#allocation8 + $0x18] sm:$0xff]
    %v622 = vld [vmem:[#allocation8 + $0x20] sm:$0xff]
    %v623 = vld [vmem:[#allocation8 + $0x28] sm:$0xff]
    %v624 = vld [vmem:[#allocation8 + $0x30] sm:$0xff]
    %v625 = vld [vmem:[#allocation8 + $0x38] sm:$0xff]
    %v626 = vld [vmem:[#allocation8 + $0x40] sm:$0xff]
    %v627 = vld [vmem:[#allocation8 + $0x48] sm:$0xff]
    %v628 = vld [vmem:[#allocation8 + $0x50] sm:$0xff]
    %v629 = vld [vmem:[#allocation8 + $0x58] sm:$0xff]
    %v630 = vld [vmem:[#allocation8 + $0x60] sm:$0xff]
    %v631 = vld [vmem:[#allocation8 + $0x68] sm:$0xff]
    %v632 = vld [vmem:[#allocation8 + $0x70] sm:$0xff]
    %v633 = vld [vmem:[#allocation8 + $0x78] sm:$0xff]
    %v634 = vld [vmem:[#allocation8 + $0x80] sm:$0xff]
    %v635 = vld [vmem:[#allocation8 + $0x88] sm:$0xff]
    %v636 = vld [vmem:[#allocation8 + $0x90] sm:$0xff]
    %v637 = vld [vmem:[#allocation8 + $0x98] sm:$0xff]
    %v638 = vld [vmem:[#allocation8 + $0xa0] sm:$0xff]
    %v639 = vld [vmem:[#allocation8 + $0xa8] sm:$0xff]
    %v640 = vld [vmem:[#allocation8 + $0xb0] sm:$0xff]
    %v641 = vld [vmem:[#allocation8 + $0xb8] sm:$0xff]
    %v642 = vld [vmem:[#allocation8 + $0xc0] sm:$0xff]
    %v643 = vld [vmem:[#allocation8 + $0xc8] sm:$0xff]
    %v644 = vld [vmem:[#allocation8 + $0xd0] sm:$0xff]
    %v645 = vld [vmem:[#allocation8 + $0xd8] sm:$0xff]
    %v646 = vld [vmem:[#allocation8 + $0xe0] sm:$0xff]
    %v647 = vld [vmem:[#allocation8 + $0xe8] sm:$0xff]
    %v648 = vld [vmem:[#allocation8 + $0xf0] sm:$0xff]
    %v649 = vld [vmem:[#allocation8 + $0xf8] sm:$0xff]
    %v650 = vld [vmem:[#allocation8 + $0x100] sm:$0xff]
    %v651 = vld [vmem:[#allocation8 + $0x108] sm:$0xff]
    %v652 = vld [vmem:[#allocation8 + $0x110] sm:$0xff]
    %v653 = vld [vmem:[#allocation8 + $0x118] sm:$0xff]
    %v654 = vld [vmem:[#allocation8 + $0x120] sm:$0xff]
    %v655 = vld [vmem:[#allocation8 + $0x128] sm:$0xff]
    %v656 = vld [vmem:[#allocation8 + $0x130] sm:$0xff]
    %v657 = vld [vmem:[#allocation8 + $0x138] sm:$0xff]
    %v658 = vld [vmem:[#allocation8 + $0x140] sm:$0xff]
    %v659 = vld [vmem:[#allocation8 + $0x148] sm:$0xff]
    %v660 = vld [vmem:[#allocation8 + $0x150] sm:$0xff]
    %v661 = vld [vmem:[#allocation8 + $0x158] sm:$0xff]
    %v662 = vld [vmem:[#allocation8 + $0x160] sm:$0xff]
    %v663 = vld [vmem:[#allocation8 + $0x168] sm:$0xff]
    %v664 = vld [vmem:[#allocation8 + $0x170] sm:$0xff]
    %v665 = vld [vmem:[#allocation8 + $0x178] sm:$0xff]
    %v666 = vld [vmem:[#allocation8 + $0x180] sm:$0xff]
    %v667 = vld [vmem:[#allocation8 + $0x188] sm:$0xff]
    %v668 = vld [vmem:[#allocation8 + $0x190] sm:$0xff]
    %v669 = vld [vmem:[#allocation8 + $0x198] sm:$0xff]
    %v670 = vld [vmem:[#allocation8 + $0x1a0] sm:$0xff]
    %v671 = vld [vmem:[#allocation8 + $0x1a8] sm:$0xff]
    %v672 = vld [vmem:[#allocation8 + $0x1b0] sm:$0xff]
    %v673 = vld [vmem:[#allocation8 + $0x1b8] sm:$0xff]
    %v674 = vld [vmem:[#allocation8 + $0x1c0] sm:$0xff]
    %v675 = vld [vmem:[#allocation8 + $0x1c8] sm:$0xff]
    %v676 = vld [vmem:[#allocation8 + $0x1d0] sm:$0xff]
    %v677 = vld [vmem:[#allocation8 + $0x1d8] sm:$0xff]
    %v678 = vld [vmem:[#allocation8 + $0x1e0] sm:$0xff]
    %v679 = vld [vmem:[#allocation8 + $0x1e8] sm:$0xff]
    %v680 = vld [vmem:[#allocation8 + $0x1f0] sm:$0xff]
    %v681 = vld [vmem:[#allocation8 + $0x1f8] sm:$0xff]
    %v682 = vld [vmem:[#allocation8 + $0x200] sm:$0xff]
    %v683 = vld [vmem:[#allocation8 + $0x208] sm:$0xff]
    %v684 = vld [vmem:[#allocation8 + $0x210] sm:$0xff]
    %v685 = vld [vmem:[#allocation8 + $0x218] sm:$0xff]
    %v686 = vld [vmem:[#allocation8 + $0x220] sm:$0xff]
    %v687 = vld [vmem:[#allocation8 + $0x228] sm:$0xff]
    %v688 = vld [vmem:[#allocation8 + $0x230] sm:$0xff]
    %v689 = vld [vmem:[#allocation8 + $0x238] sm:$0xff]
    %v690 = vld [vmem:[#allocation8 + $0x240] sm:$0xff]
    %v691 = vld [vmem:[#allocation8 + $0x248] sm:$0xff]
    %v692 = vld [vmem:[#allocation8 + $0x250] sm:$0xff]
    %v693 = vld [vmem:[#allocation8 + $0x258] sm:$0xff]
    %v694 = vld [vmem:[#allocation8 + $0x260] sm:$0xff]
    %v695 = vld [vmem:[#allocation8 + $0x268] sm:$0xff]
    %v696 = vld [vmem:[#allocation8 + $0x270] sm:$0xff]
    %v697 = vld [vmem:[#allocation8 + $0x278] sm:$0xff]
    %v698 = vld [vmem:[#allocation8 + $0x280] sm:$0xff]
    %v699 = vld [vmem:[#allocation8 + $0x288] sm:$0xff]
    %v700 = vld [vmem:[#allocation8 + $0x290] sm:$0xff]
    %v701 = vld [vmem:[#allocation8 + $0x298] sm:$0xff]
    %v702 = vld [vmem:[#allocation8 + $0x2a0] sm:$0xff]
    %v703 = vld [vmem:[#allocation8 + $0x2a8] sm:$0xff]
    %v704 = vld [vmem:[#allocation8 + $0x2b0] sm:$0xff]
    %v705 = vld [vmem:[#allocation8 + $0x2b8] sm:$0xff]
    %v706 = vld [vmem:[#allocation8 + $0x2c0] sm:$0xff]
    %v707 = vld [vmem:[#allocation8 + $0x2c8] sm:$0xff]
    %v708 = vld [vmem:[#allocation8 + $0x2d0] sm:$0xff]
    %v709 = vld [vmem:[#allocation8 + $0x2d8] sm:$0xff]
    %v710 = vld [vmem:[#allocation8 + $0x2e0] sm:$0xff]
    %v711 = vld [vmem:[#allocation8 + $0x2e8] sm:$0xff]
    %v712 = vld [vmem:[#allocation8 + $0x2f0] sm:$0xff]
    %v713 = vld [vmem:[#allocation8 + $0x2f8] sm:$0xff]
    %v714 = vld [vmem:[#allocation8 + $0x300] sm:$0xff]
    %v715 = vld [vmem:[#allocation8 + $0x308] sm:$0xff]
    %v716 = vld [vmem:[#allocation8 + $0x310] sm:$0xff]
    %v717 = vld [vmem:[#allocation8 + $0x318] sm:$0xff]
    %v718 = vld [vmem:[#allocation8 + $0x320] sm:$0xff]
    %v719 = vld [vmem:[#allocation8 + $0x328] sm:$0xff]
    %v720 = vld [vmem:[#allocation8 + $0x330] sm:$0xff]
    %v721 = vld [vmem:[#allocation8 + $0x338] sm:$0xff]
    %v722 = vld [vmem:[#allocation8 + $0x340] sm:$0xff]
    %v723 = vld [vmem:[#allocation8 + $0x348] sm:$0xff]
    %v724 = vld [vmem:[#allocation8 + $0x350] sm:$0xff]
    %v725 = vld [vmem:[#allocation8 + $0x358] sm:$0xff]
    %v726 = vld [vmem:[#allocation8 + $0x360] sm:$0xff]
    %v727 = vld [vmem:[#allocation8 + $0x368] sm:$0xff]
    %v728 = vld [vmem:[#allocation8 + $0x370] sm:$0xff]
    %v729 = vld [vmem:[#allocation8 + $0x378] sm:$0xff]
    %v730 = vld [vmem:[#allocation8 + $0x380] sm:$0xff]
    %v731 = vld [vmem:[#allocation8 + $0x388] sm:$0xff]
    %v732 = vld [vmem:[#allocation8 + $0x390] sm:$0xff]
    %v733 = vld [vmem:[#allocation8 + $0x398] sm:$0xff]
    %v734 = vld [vmem:[#allocation8 + $0x3a0] sm:$0xff]
    %v735 = vld [vmem:[#allocation8 + $0x3a8] sm:$0xff]
    %v736 = vld [vmem:[#allocation8 + $0x3b0] sm:$0xff]
    %v737 = vld [vmem:[#allocation8 + $0x3b8] sm:$0xff]
    %v738 = vld [vmem:[#allocation8 + $0x3c0] sm:$0xff]
    %v739 = vld [vmem:[#allocation8 + $0x3c8] sm:$0xff]
    %v740 = vld [vmem:[#allocation8 + $0x3d0] sm:$0xff]
    %v741 = vld [vmem:[#allocation8 + $0x3d8] sm:$0xff]
    %v742 = vld [vmem:[#allocation8 + $0x3e0] sm:$0xff]
    %v743 = vld [vmem:[#allocation8 + $0x3e8] sm:$0xff]
    %v744 = vld [vmem:[#allocation8 + $0x3f0] sm:$0xff]
    %v745 = vld [vmem:[#allocation8 + $0x3f8] sm:$0xff]
    %v874 = vunpack.c.l.b16 %v618
    %v875 = vunpack.c.h.b16 %v618
    %v876 = vunpack.c.l.b16 %v619
    %v877 = vunpack.c.h.b16 %v619
    %v878 = vunpack.c.l.b16 %v620
    %v879 = vunpack.c.h.b16 %v620
    %v880 = vunpack.c.l.b16 %v621
    %v881 = vunpack.c.h.b16 %v621
    %v882 = vunpack.c.l.b16 %v622
    %v883 = vunpack.c.h.b16 %v622
    %v884 = vunpack.c.l.b16 %v623
    %v885 = vunpack.c.h.b16 %v623
    %v886 = vunpack.c.l.b16 %v624
    %v887 = vunpack.c.h.b16 %v624
    %v888 = vunpack.c.l.b16 %v625
    %v889 = vunpack.c.h.b16 %v625
    %v890 = vunpack.c.l.b16 %v626
    %v891 = vunpack.c.h.b16 %v626
    %v892 = vunpack.c.l.b16 %v627
    %v893 = vunpack.c.h.b16 %v627
    %v894 = vunpack.c.l.b16 %v628
    %v895 = vunpack.c.h.b16 %v628
    %v896 = vunpack.c.l.b16 %v629
    %v897 = vunpack.c.h.b16 %v629
    %v898 = vunpack.c.l.b16 %v630
    %v899 = vunpack.c.h.b16 %v630
    %v900 = vunpack.c.l.b16 %v631
    %v901 = vunpack.c.h.b16 %v631
    %v902 = vunpack.c.l.b16 %v632
    %v903 = vunpack.c.h.b16 %v632
    %v904 = vunpack.c.l.b16 %v633
    %v905 = vunpack.c.h.b16 %v633
    %v906 = vunpack.c.l.b16 %v634
    %v907 = vunpack.c.h.b16 %v634
    %v908 = vunpack.c.l.b16 %v635
    %v909 = vunpack.c.h.b16 %v635
    %v910 = vunpack.c.l.b16 %v636
    %v911 = vunpack.c.h.b16 %v636
    %v912 = vunpack.c.l.b16 %v637
    %v913 = vunpack.c.h.b16 %v637
    %v914 = vunpack.c.l.b16 %v638
    %v915 = vunpack.c.h.b16 %v638
    %v916 = vunpack.c.l.b16 %v639
    %v917 = vunpack.c.h.b16 %v639
    %v918 = vunpack.c.l.b16 %v640
    %v919 = vunpack.c.h.b16 %v640
    %v920 = vunpack.c.l.b16 %v641
    %v921 = vunpack.c.h.b16 %v641
    %v922 = vunpack.c.l.b16 %v642
    %v923 = vunpack.c.h.b16 %v642
    %v924 = vunpack.c.l.b16 %v643
    %v925 = vunpack.c.h.b16 %v643
    %v926 = vunpack.c.l.b16 %v644
    %v927 = vunpack.c.h.b16 %v644
    %v928 = vunpack.c.l.b16 %v645
    %v929 = vunpack.c.h.b16 %v645
    %v930 = vunpack.c.l.b16 %v646
    %v931 = vunpack.c.h.b16 %v646
    %v932 = vunpack.c.l.b16 %v647
    %v933 = vunpack.c.h.b16 %v647
    %v934 = vunpack.c.l.b16 %v648
    %v935 = vunpack.c.h.b16 %v648
    %v936 = vunpack.c.l.b16 %v649
    %v937 = vunpack.c.h.b16 %v649
    %v938 = vunpack.c.l.b16 %v650
    %v939 = vunpack.c.h.b16 %v650
    %v940 = vunpack.c.l.b16 %v651
    %v941 = vunpack.c.h.b16 %v651
    %v942 = vunpack.c.l.b16 %v652
    %v943 = vunpack.c.h.b16 %v652
    %v944 = vunpack.c.l.b16 %v653
    %v945 = vunpack.c.h.b16 %v653
    %v946 = vunpack.c.l.b16 %v654
    %v947 = vunpack.c.h.b16 %v654
    %v948 = vunpack.c.l.b16 %v655
    %v949 = vunpack.c.h.b16 %v655
    %v950 = vunpack.c.l.b16 %v656
    %v951 = vunpack.c.h.b16 %v656
    %v952 = vunpack.c.l.b16 %v657
    %v953 = vunpack.c.h.b16 %v657
    %v954 = vunpack.c.l.b16 %v658
    %v955 = vunpack.c.h.b16 %v658
    %v956 = vunpack.c.l.b16 %v659
    %v957 = vunpack.c.h.b16 %v659
    %v958 = vunpack.c.l.b16 %v660
    %v959 = vunpack.c.h.b16 %v660
    %v960 = vunpack.c.l.b16 %v661
    %v961 = vunpack.c.h.b16 %v661
    %v962 = vunpack.c.l.b16 %v662
    %v963 = vunpack.c.h.b16 %v662
    %v964 = vunpack.c.l.b16 %v663
    %v965 = vunpack.c.h.b16 %v663
    %v966 = vunpack.c.l.b16 %v664
    %v967 = vunpack.c.h.b16 %v664
    %v968 = vunpack.c.l.b16 %v665
    %v969 = vunpack.c.h.b16 %v665
    %v970 = vunpack.c.l.b16 %v666
    %v971 = vunpack.c.h.b16 %v666
    %v972 = vunpack.c.l.b16 %v667
    %v973 = vunpack.c.h.b16 %v667
    %v974 = vunpack.c.l.b16 %v668
    %v975 = vunpack.c.h.b16 %v668
    %v976 = vunpack.c.l.b16 %v669
    %v977 = vunpack.c.h.b16 %v669
    %v978 = vunpack.c.l.b16 %v670
    %v979 = vunpack.c.h.b16 %v670
    %v980 = vunpack.c.l.b16 %v671
    %v981 = vunpack.c.h.b16 %v671
    %v982 = vunpack.c.l.b16 %v672
    %v983 = vunpack.c.h.b16 %v672
    %v984 = vunpack.c.l.b16 %v673
    %v985 = vunpack.c.h.b16 %v673
    %v986 = vunpack.c.l.b16 %v674
    %v987 = vunpack.c.h.b16 %v674
    %v988 = vunpack.c.l.b16 %v675
    %v989 = vunpack.c.h.b16 %v675
    %v990 = vunpack.c.l.b16 %v676
    %v991 = vunpack.c.h.b16 %v676
    %v992 = vunpack.c.l.b16 %v677
    %v993 = vunpack.c.h.b16 %v677
    %v994 = vunpack.c.l.b16 %v678
    %v995 = vunpack.c.h.b16 %v678
    %v996 = vunpack.c.l.b16 %v679
    %v997 = vunpack.c.h.b16 %v679
    %v998 = vunpack.c.l.b16 %v680
    %v999 = vunpack.c.h.b16 %v680
    %v1000 = vunpack.c.l.b16 %v681
    %v1001 = vunpack.c.h.b16 %v681
    %v1002 = vunpack.c.l.b16 %v682
    %v1003 = vunpack.c.h.b16 %v682
    %v1004 = vunpack.c.l.b16 %v683
    %v1005 = vunpack.c.h.b16 %v683
    %v1006 = vunpack.c.l.b16 %v684
    %v1007 = vunpack.c.h.b16 %v684
    %v1008 = vunpack.c.l.b16 %v685
    %v1009 = vunpack.c.h.b16 %v685
    %v1010 = vunpack.c.l.b16 %v686
    %v1011 = vunpack.c.h.b16 %v686
    %v1012 = vunpack.c.l.b16 %v687
    %v1013 = vunpack.c.h.b16 %v687
    %v1014 = vunpack.c.l.b16 %v688
    %v1015 = vunpack.c.h.b16 %v688
    %v1016 = vunpack.c.l.b16 %v689
    %v1017 = vunpack.c.h.b16 %v689
    %v1018 = vunpack.c.l.b16 %v690
    %v1019 = vunpack.c.h.b16 %v690
    %v1020 = vunpack.c.l.b16 %v691
    %v1021 = vunpack.c.h.b16 %v691
    %v1022 = vunpack.c.l.b16 %v692
    %v1023 = vunpack.c.h.b16 %v692
    %v1024 = vunpack.c.l.b16 %v693
    %v1025 = vunpack.c.h.b16 %v693
    %v1026 = vunpack.c.l.b16 %v694
    %v1027 = vunpack.c.h.b16 %v694
    %v1028 = vunpack.c.l.b16 %v695
    %v1029 = vunpack.c.h.b16 %v695
    %v1030 = vunpack.c.l.b16 %v696
    %v1031 = vunpack.c.h.b16 %v696
    %v1032 = vunpack.c.l.b16 %v697
    %v1033 = vunpack.c.h.b16 %v697
    %v1034 = vunpack.c.l.b16 %v698
    %v1035 = vunpack.c.h.b16 %v698
    %v1036 = vunpack.c.l.b16 %v699
    %v1037 = vunpack.c.h.b16 %v699
    %v1038 = vunpack.c.l.b16 %v700
    %v1039 = vunpack.c.h.b16 %v700
    %v1040 = vunpack.c.l.b16 %v701
    %v1041 = vunpack.c.h.b16 %v701
    %v1042 = vunpack.c.l.b16 %v702
    %v1043 = vunpack.c.h.b16 %v702
    %v1044 = vunpack.c.l.b16 %v703
    %v1045 = vunpack.c.h.b16 %v703
    %v1046 = vunpack.c.l.b16 %v704
    %v1047 = vunpack.c.h.b16 %v704
    %v1048 = vunpack.c.l.b16 %v705
    %v1049 = vunpack.c.h.b16 %v705
    %v1050 = vunpack.c.l.b16 %v706
    %v1051 = vunpack.c.h.b16 %v706
    %v1052 = vunpack.c.l.b16 %v707
    %v1053 = vunpack.c.h.b16 %v707
    %v1054 = vunpack.c.l.b16 %v708
    %v1055 = vunpack.c.h.b16 %v708
    %v1056 = vunpack.c.l.b16 %v709
    %v1057 = vunpack.c.h.b16 %v709
    %v1058 = vunpack.c.l.b16 %v710
    %v1059 = vunpack.c.h.b16 %v710
    %v1060 = vunpack.c.l.b16 %v711
    %v1061 = vunpack.c.h.b16 %v711
    %v1062 = vunpack.c.l.b16 %v712
    %v1063 = vunpack.c.h.b16 %v712
    %v1064 = vunpack.c.l.b16 %v713
    %v1065 = vunpack.c.h.b16 %v713
    %v1066 = vunpack.c.l.b16 %v714
    %v1067 = vunpack.c.h.b16 %v714
    %v1068 = vunpack.c.l.b16 %v715
    %v1069 = vunpack.c.h.b16 %v715
    %v1070 = vunpack.c.l.b16 %v716
    %v1071 = vunpack.c.h.b16 %v716
    %v1072 = vunpack.c.l.b16 %v717
    %v1073 = vunpack.c.h.b16 %v717
    %v1074 = vunpack.c.l.b16 %v718
    %v1075 = vunpack.c.h.b16 %v718
    %v1076 = vunpack.c.l.b16 %v719
    %v1077 = vunpack.c.h.b16 %v719
    %v1078 = vunpack.c.l.b16 %v720
    %v1079 = vunpack.c.h.b16 %v720
    %v1080 = vunpack.c.l.b16 %v721
    %v1081 = vunpack.c.h.b16 %v721
    %v1082 = vunpack.c.l.b16 %v722
    %v1083 = vunpack.c.h.b16 %v722
    %v1084 = vunpack.c.l.b16 %v723
    %v1085 = vunpack.c.h.b16 %v723
    %v1086 = vunpack.c.l.b16 %v724
    %v1087 = vunpack.c.h.b16 %v724
    %v1088 = vunpack.c.l.b16 %v725
    %v1089 = vunpack.c.h.b16 %v725
    %v1090 = vunpack.c.l.b16 %v726
    %v1091 = vunpack.c.h.b16 %v726
    %v1092 = vunpack.c.l.b16 %v727
    %v1093 = vunpack.c.h.b16 %v727
    %v1094 = vunpack.c.l.b16 %v728
    %v1095 = vunpack.c.h.b16 %v728
    %v1096 = vunpack.c.l.b16 %v729
    %v1097 = vunpack.c.h.b16 %v729
    %v1098 = vunpack.c.l.b16 %v730
    %v1099 = vunpack.c.h.b16 %v730
    %v1100 = vunpack.c.l.b16 %v731
    %v1101 = vunpack.c.h.b16 %v731
    %v1102 = vunpack.c.l.b16 %v732
    %v1103 = vunpack.c.h.b16 %v732
    %v1104 = vunpack.c.l.b16 %v733
    %v1105 = vunpack.c.h.b16 %v733
    %v1106 = vunpack.c.l.b16 %v734
    %v1107 = vunpack.c.h.b16 %v734
    %v1108 = vunpack.c.l.b16 %v735
    %v1109 = vunpack.c.h.b16 %v735
    %v1110 = vunpack.c.l.b16 %v736
    %v1111 = vunpack.c.h.b16 %v736
    %v1112 = vunpack.c.l.b16 %v737
    %v1113 = vunpack.c.h.b16 %v737
    %v1114 = vunpack.c.l.b16 %v738
    %v1115 = vunpack.c.h.b16 %v738
    %v1116 = vunpack.c.l.b16 %v739
    %v1117 = vunpack.c.h.b16 %v739
    %v1118 = vunpack.c.l.b16 %v740
    %v1119 = vunpack.c.h.b16 %v740
    %v1120 = vunpack.c.l.b16 %v741
    %v1121 = vunpack.c.h.b16 %v741
    %v1122 = vunpack.c.l.b16 %v742
    %v1123 = vunpack.c.h.b16 %v742
    %v1124 = vunpack.c.l.b16 %v743
    %v1125 = vunpack.c.h.b16 %v743
    %v1126 = vunpack.c.l.b16 %v744
    %v1127 = vunpack.c.h.b16 %v744
    %v1128 = vunpack.c.l.b16 %v745
    %v1129 = vunpack.c.h.b16 %v745
    %v1130 = vpack.c.b16 %v882, %v874
    %v1131 = vpack.c.b16 %v883, %v875
    %v1132 = vpack.c.b16 %v884, %v876
    %v1133 = vpack.c.b16 %v885, %v877
    %v1134 = vpack.c.b16 %v886, %v878
    %v1135 = vpack.c.b16 %v887, %v879
    %v1136 = vpack.c.b16 %v888, %v880
    %v1137 = vpack.c.b16 %v889, %v881
    %v1138 = vpack.c.b16 %v898, %v890
    %v1139 = vpack.c.b16 %v899, %v891
    %v1140 = vpack.c.b16 %v900, %v892
    %v1141 = vpack.c.b16 %v901, %v893
    %v1142 = vpack.c.b16 %v902, %v894
    %v1143 = vpack.c.b16 %v903, %v895
    %v1144 = vpack.c.b16 %v904, %v896
    %v1145 = vpack.c.b16 %v905, %v897
    %v1146 = vpack.c.b16 %v914, %v906
    %v1147 = vpack.c.b16 %v915, %v907
    %v1148 = vpack.c.b16 %v916, %v908
    %v1149 = vpack.c.b16 %v917, %v909
    %v1150 = vpack.c.b16 %v918, %v910
    %v1151 = vpack.c.b16 %v919, %v911
    %v1152 = vpack.c.b16 %v920, %v912
    %v1153 = vpack.c.b16 %v921, %v913
    %v1154 = vpack.c.b16 %v930, %v922
    %v1155 = vpack.c.b16 %v931, %v923
    %v1156 = vpack.c.b16 %v932, %v924
    %v1157 = vpack.c.b16 %v933, %v925
    %v1158 = vpack.c.b16 %v934, %v926
    %v1159 = vpack.c.b16 %v935, %v927
    %v1160 = vpack.c.b16 %v936, %v928
    %v1161 = vpack.c.b16 %v937, %v929
    %v1162 = vpack.c.b16 %v946, %v938
    %v1163 = vpack.c.b16 %v947, %v939
    %v1164 = vpack.c.b16 %v948, %v940
    %v1165 = vpack.c.b16 %v949, %v941
    %v1166 = vpack.c.b16 %v950, %v942
    %v1167 = vpack.c.b16 %v951, %v943
    %v1168 = vpack.c.b16 %v952, %v944
    %v1169 = vpack.c.b16 %v953, %v945
    %v1170 = vpack.c.b16 %v962, %v954
    %v1171 = vpack.c.b16 %v963, %v955
    %v1172 = vpack.c.b16 %v964, %v956
    %v1173 = vpack.c.b16 %v965, %v957
    %v1174 = vpack.c.b16 %v966, %v958
    %v1175 = vpack.c.b16 %v967, %v959
    %v1176 = vpack.c.b16 %v968, %v960
    %v1177 = vpack.c.b16 %v969, %v961
    %v1178 = vpack.c.b16 %v978, %v970
    %v1179 = vpack.c.b16 %v979, %v971
    %v1180 = vpack.c.b16 %v980, %v972
    %v1181 = vpack.c.b16 %v981, %v973
    %v1182 = vpack.c.b16 %v982, %v974
    %v1183 = vpack.c.b16 %v983, %v975
    %v1184 = vpack.c.b16 %v984, %v976
    %v1185 = vpack.c.b16 %v985, %v977
    %v1186 = vpack.c.b16 %v994, %v986
    %v1187 = vpack.c.b16 %v995, %v987
    %v1188 = vpack.c.b16 %v996, %v988
    %v1189 = vpack.c.b16 %v997, %v989
    %v1190 = vpack.c.b16 %v998, %v990
    %v1191 = vpack.c.b16 %v999, %v991
    %v1192 = vpack.c.b16 %v1000, %v992
    %v1193 = vpack.c.b16 %v1001, %v993
    %v1194 = vpack.c.b16 %v1010, %v1002
    %v1195 = vpack.c.b16 %v1011, %v1003
    %v1196 = vpack.c.b16 %v1012, %v1004
    %v1197 = vpack.c.b16 %v1013, %v1005
    %v1198 = vpack.c.b16 %v1014, %v1006
    %v1199 = vpack.c.b16 %v1015, %v1007
    %v1200 = vpack.c.b16 %v1016, %v1008
    %v1201 = vpack.c.b16 %v1017, %v1009
    %v1202 = vpack.c.b16 %v1026, %v1018
    %v1203 = vpack.c.b16 %v1027, %v1019
    %v1204 = vpack.c.b16 %v1028, %v1020
    %v1205 = vpack.c.b16 %v1029, %v1021
    %v1206 = vpack.c.b16 %v1030, %v1022
    %v1207 = vpack.c.b16 %v1031, %v1023
    %v1208 = vpack.c.b16 %v1032, %v1024
    %v1209 = vpack.c.b16 %v1033, %v1025
    %v1210 = vpack.c.b16 %v1042, %v1034
    %v1211 = vpack.c.b16 %v1043, %v1035
    %v1212 = vpack.c.b16 %v1044, %v1036
    %v1213 = vpack.c.b16 %v1045, %v1037
    %v1214 = vpack.c.b16 %v1046, %v1038
    %v1215 = vpack.c.b16 %v1047, %v1039
    %v1216 = vpack.c.b16 %v1048, %v1040
    %v1217 = vpack.c.b16 %v1049, %v1041
    %v1218 = vpack.c.b16 %v1058, %v1050
    %v1219 = vpack.c.b16 %v1059, %v1051
    %v1220 = vpack.c.b16 %v1060, %v1052
    %v1221 = vpack.c.b16 %v1061, %v1053
    %v1222 = vpack.c.b16 %v1062, %v1054
    %v1223 = vpack.c.b16 %v1063, %v1055
    %v1224 = vpack.c.b16 %v1064, %v1056
    %v1225 = vpack.c.b16 %v1065, %v1057
    %v1226 = vpack.c.b16 %v1074, %v1066
    %v1227 = vpack.c.b16 %v1075, %v1067
    %v1228 = vpack.c.b16 %v1076, %v1068
    %v1229 = vpack.c.b16 %v1077, %v1069
    %v1230 = vpack.c.b16 %v1078, %v1070
    %v1231 = vpack.c.b16 %v1079, %v1071
    %v1232 = vpack.c.b16 %v1080, %v1072
    %v1233 = vpack.c.b16 %v1081, %v1073
    %v1234 = vpack.c.b16 %v1090, %v1082
    %v1235 = vpack.c.b16 %v1091, %v1083
    %v1236 = vpack.c.b16 %v1092, %v1084
    %v1237 = vpack.c.b16 %v1093, %v1085
    %v1238 = vpack.c.b16 %v1094, %v1086
    %v1239 = vpack.c.b16 %v1095, %v1087
    %v1240 = vpack.c.b16 %v1096, %v1088
    %v1241 = vpack.c.b16 %v1097, %v1089
    %v1242 = vpack.c.b16 %v1106, %v1098
    %v1243 = vpack.c.b16 %v1107, %v1099
    %v1244 = vpack.c.b16 %v1108, %v1100
    %v1245 = vpack.c.b16 %v1109, %v1101
    %v1246 = vpack.c.b16 %v1110, %v1102
    %v1247 = vpack.c.b16 %v1111, %v1103
    %v1248 = vpack.c.b16 %v1112, %v1104
    %v1249 = vpack.c.b16 %v1113, %v1105
    %v1250 = vpack.c.b16 %v1122, %v1114
    %v1251 = vpack.c.b16 %v1123, %v1115
    %v1252 = vpack.c.b16 %v1124, %v1116
    %v1253 = vpack.c.b16 %v1125, %v1117
    %v1254 = vpack.c.b16 %v1126, %v1118
    %v1255 = vpack.c.b16 %v1127, %v1119
    %v1256 = vpack.c.b16 %v1128, %v1120
    %v1257 = vpack.c.b16 %v1129, %v1121
    %1386 = vmatpush.bf16.msra.mxu0 %v1186
    %1387 = vmatpush.bf16.msra.mxu0 %v1178
    %1388 = vmatpush.bf16.msra.mxu0 %v1170
    %1389 = vmatpush.bf16.msra.mxu0 %v1162
    %1390 = vmatpush.bf16.msra.mxu0 %v1154
    %1391 = vmatpush.bf16.msra.mxu0 %v1146
    %1392 = vmatpush.bf16.msra.mxu0 %v1138
    %1393 = vmatpush.bf16.msra.mxu0 %v1130
    %1394 = vmatmul.bf16.gmra.mxu0 0
    %v1395 = vpop.f32.mrf.mxu0
    %v1396 = vadd.f32 0.0, %v1395
    %v1397 = vpop.f32.mrf.mxu0
    %1398 = vdwg.mxu0
    %1399 = vmatpush.bf16.msra.mxu0 %v1250
    %1400 = vmatpush.bf16.msra.mxu0 %v1242
    %1401 = vmatpush.bf16.msra.mxu0 %v1234
    %1402 = vmatpush.bf16.msra.mxu0 %v1226
    %1403 = vmatpush.bf16.msra.mxu0 %v1218
    %1404 = vmatpush.bf16.msra.mxu0 %v1210
    %1405 = vmatpush.bf16.msra.mxu0 %v1202
    %1406 = vmatpush.bf16.msra.mxu0 %v1194
    %1407 = vmatmul.bf16.gmra.mxu0 0
    %v1408 = vpop.f32.mrf.mxu0
    %v1409 = vadd.f32 %v1396, %v1408
    %v1410 = vpop.f32.mrf.mxu0
    %1411 = vdwg.mxu0
    %1412 = vmatpush.bf16.msra.mxu0 %v1187
    %1413 = vmatpush.bf16.msra.mxu0 %v1179
    %1414 = vmatpush.bf16.msra.mxu0 %v1171
    %1415 = vmatpush.bf16.msra.mxu0 %v1163
    %1416 = vmatpush.bf16.msra.mxu0 %v1155
    %1417 = vmatpush.bf16.msra.mxu0 %v1147
    %1418 = vmatpush.bf16.msra.mxu0 %v1139
    %1419 = vmatpush.bf16.msra.mxu0 %v1131
    %1420 = vmatmul.bf16.gmra.mxu0 0
    %v1421 = vpop.f32.mrf.mxu0
    %v1422 = vadd.f32 0.0, %v1421
    %v1423 = vpop.f32.mrf.mxu0
    %1424 = vdwg.mxu0
    %1425 = vmatpush.bf16.msra.mxu0 %v1251
    %1426 = vmatpush.bf16.msra.mxu0 %v1243
    %1427 = vmatpush.bf16.msra.mxu0 %v1235
    %1428 = vmatpush.bf16.msra.mxu0 %v1227
    %1429 = vmatpush.bf16.msra.mxu0 %v1219
    %1430 = vmatpush.bf16.msra.mxu0 %v1211
    %1431 = vmatpush.bf16.msra.mxu0 %v1203
    %1432 = vmatpush.bf16.msra.mxu0 %v1195
    %1433 = vmatmul.bf16.gmra.mxu0 0
    %v1434 = vpop.f32.mrf.mxu0
    %v1435 = vadd.f32 %v1422, %v1434
    %v1436 = vpop.f32.mrf.mxu0
    %1437 = vdwg.mxu0
    %1438 = vmatpush.bf16.msra.mxu0 %v1188
    %1439 = vmatpush.bf16.msra.mxu0 %v1180
    %1440 = vmatpush.bf16.msra.mxu0 %v1172
    %1441 = vmatpush.bf16.msra.mxu0 %v1164
    %1442 = vmatpush.bf16.msra.mxu0 %v1156
    %1443 = vmatpush.bf16.msra.mxu0 %v1148
    %1444 = vmatpush.bf16.msra.mxu0 %v1140
    %1445 = vmatpush.bf16.msra.mxu0 %v1132
    %1446 = vmatmul.bf16.gmra.mxu0 0
    %v1447 = vpop.f32.mrf.mxu0
    %v1448 = vadd.f32 0.0, %v1447
    %v1449 = vpop.f32.mrf.mxu0
    %1450 = vdwg.mxu0
    %1451 = vmatpush.bf16.msra.mxu0 %v1252
    %1452 = vmatpush.bf16.msra.mxu0 %v1244
    %1453 = vmatpush.bf16.msra.mxu0 %v1236
    %1454 = vmatpush.bf16.msra.mxu0 %v1228
    %1455 = vmatpush.bf16.msra.mxu0 %v1220
    %1456 = vmatpush.bf16.msra.mxu0 %v1212
    %1457 = vmatpush.bf16.msra.mxu0 %v1204
    %1458 = vmatpush.bf16.msra.mxu0 %v1196
    %1459 = vmatmul.bf16.gmra.mxu0 0
    %v1460 = vpop.f32.mrf.mxu0
    %v1461 = vadd.f32 %v1448, %v1460
    %v1462 = vpop.f32.mrf.mxu0
    %1463 = vdwg.mxu0
    %1464 = vmatpush.bf16.msra.mxu0 %v1189
    %1465 = vmatpush.bf16.msra.mxu0 %v1181
    %1466 = vmatpush.bf16.msra.mxu0 %v1173
    %1467 = vmatpush.bf16.msra.mxu0 %v1165
    %1468 = vmatpush.bf16.msra.mxu0 %v1157
    %1469 = vmatpush.bf16.msra.mxu0 %v1149
    %1470 = vmatpush.bf16.msra.mxu0 %v1141
    %1471 = vmatpush.bf16.msra.mxu0 %v1133
    %1472 = vmatmul.bf16.gmra.mxu0 0
    %v1473 = vpop.f32.mrf.mxu0
    %v1474 = vadd.f32 0.0, %v1473
    %v1475 = vpop.f32.mrf.mxu0
    %1476 = vdwg.mxu0
    %1477 = vmatpush.bf16.msra.mxu0 %v1253
    %1478 = vmatpush.bf16.msra.mxu0 %v1245
    %1479 = vmatpush.bf16.msra.mxu0 %v1237
    %1480 = vmatpush.bf16.msra.mxu0 %v1229
    %1481 = vmatpush.bf16.msra.mxu0 %v1221
    %1482 = vmatpush.bf16.msra.mxu0 %v1213
    %1483 = vmatpush.bf16.msra.mxu0 %v1205
    %1484 = vmatpush.bf16.msra.mxu0 %v1197
    %1485 = vmatmul.bf16.gmra.mxu0 0
    %v1486 = vpop.f32.mrf.mxu0
    %v1487 = vadd.f32 %v1474, %v1486
    %v1488 = vpop.f32.mrf.mxu0
    %1489 = vdwg.mxu0
    %1490 = vmatpush.bf16.msra.mxu0 %v1190
    %1491 = vmatpush.bf16.msra.mxu0 %v1182
    %1492 = vmatpush.bf16.msra.mxu0 %v1174
    %1493 = vmatpush.bf16.msra.mxu0 %v1166
    %1494 = vmatpush.bf16.msra.mxu0 %v1158
    %1495 = vmatpush.bf16.msra.mxu0 %v1150
    %1496 = vmatpush.bf16.msra.mxu0 %v1142
    %1497 = vmatpush.bf16.msra.mxu0 %v1134
    %1498 = vmatmul.bf16.gmra.mxu0 0
    %v1499 = vpop.f32.mrf.mxu0
    %v1500 = vadd.f32 0.0, %v1499
    %v1501 = vpop.f32.mrf.mxu0
    %1502 = vdwg.mxu0
    %1503 = vmatpush.bf16.msra.mxu0 %v1254
    %1504 = vmatpush.bf16.msra.mxu0 %v1246
    %1505 = vmatpush.bf16.msra.mxu0 %v1238
    %1506 = vmatpush.bf16.msra.mxu0 %v1230
    %1507 = vmatpush.bf16.msra.mxu0 %v1222
    %1508 = vmatpush.bf16.msra.mxu0 %v1214
    %1509 = vmatpush.bf16.msra.mxu0 %v1206
    %1510 = vmatpush.bf16.msra.mxu0 %v1198
    %1511 = vmatmul.bf16.gmra.mxu0 0
    %v1512 = vpop.f32.mrf.mxu0
    %v1513 = vadd.f32 %v1500, %v1512
    %v1514 = vpop.f32.mrf.mxu0
    %1515 = vdwg.mxu0
    %1516 = vmatpush.bf16.msra.mxu0 %v1191
    %1517 = vmatpush.bf16.msra.mxu0 %v1183
    %1518 = vmatpush.bf16.msra.mxu0 %v1175
    %1519 = vmatpush.bf16.msra.mxu0 %v1167
    %1520 = vmatpush.bf16.msra.mxu0 %v1159
    %1521 = vmatpush.bf16.msra.mxu0 %v1151
    %1522 = vmatpush.bf16.msra.mxu0 %v1143
    %1523 = vmatpush.bf16.msra.mxu0 %v1135
    %1524 = vmatmul.bf16.gmra.mxu0 0
    %v1525 = vpop.f32.mrf.mxu0
    %v1526 = vadd.f32 0.0, %v1525
    %v1527 = vpop.f32.mrf.mxu0
    %1528 = vdwg.mxu0
    %1529 = vmatpush.bf16.msra.mxu0 %v1255
    %1530 = vmatpush.bf16.msra.mxu0 %v1247
    %1531 = vmatpush.bf16.msra.mxu0 %v1239
    %1532 = vmatpush.bf16.msra.mxu0 %v1231
    %1533 = vmatpush.bf16.msra.mxu0 %v1223
    %1534 = vmatpush.bf16.msra.mxu0 %v1215
    %1535 = vmatpush.bf16.msra.mxu0 %v1207
    %1536 = vmatpush.bf16.msra.mxu0 %v1199
    %1537 = vmatmul.bf16.gmra.mxu0 0
    %v1538 = vpop.f32.mrf.mxu0
    %v1539 = vadd.f32 %v1526, %v1538
    %v1540 = vpop.f32.mrf.mxu0
    %1541 = vdwg.mxu0
    %1542 = vmatpush.bf16.msra.mxu0 %v1192
    %1543 = vmatpush.bf16.msra.mxu0 %v1184
    %1544 = vmatpush.bf16.msra.mxu0 %v1176
    %1545 = vmatpush.bf16.msra.mxu0 %v1168
    %1546 = vmatpush.bf16.msra.mxu0 %v1160
    %1547 = vmatpush.bf16.msra.mxu0 %v1152
    %1548 = vmatpush.bf16.msra.mxu0 %v1144
    %1549 = vmatpush.bf16.msra.mxu0 %v1136
    %1550 = vmatmul.bf16.gmra.mxu0 0
    %v1551 = vpop.f32.mrf.mxu0
    %v1552 = vadd.f32 0.0, %v1551
    %v1553 = vpop.f32.mrf.mxu0
    %1554 = vdwg.mxu0
    %1555 = vmatpush.bf16.msra.mxu0 %v1256
    %1556 = vmatpush.bf16.msra.mxu0 %v1248
    %1557 = vmatpush.bf16.msra.mxu0 %v1240
    %1558 = vmatpush.bf16.msra.mxu0 %v1232
    %1559 = vmatpush.bf16.msra.mxu0 %v1224
    %1560 = vmatpush.bf16.msra.mxu0 %v1216
    %1561 = vmatpush.bf16.msra.mxu0 %v1208
    %1562 = vmatpush.bf16.msra.mxu0 %v1200
    %1563 = vmatmul.bf16.gmra.mxu0 0
    %v1564 = vpop.f32.mrf.mxu0
    %v1565 = vadd.f32 %v1552, %v1564
    %v1566 = vpop.f32.mrf.mxu0
    %1567 = vdwg.mxu0
    %1568 = vmatpush.bf16.msra.mxu0 %v1193
    %1569 = vmatpush.bf16.msra.mxu0 %v1185
    %1570 = vmatpush.bf16.msra.mxu0 %v1177
    %1571 = vmatpush.bf16.msra.mxu0 %v1169
    %1572 = vmatpush.bf16.msra.mxu0 %v1161
    %1573 = vmatpush.bf16.msra.mxu0 %v1153
    %1574 = vmatpush.bf16.msra.mxu0 %v1145
    %1575 = vmatpush.bf16.msra.mxu0 %v1137
    %1576 = vmatmul.bf16.gmra.mxu0 0
    %v1577 = vpop.f32.mrf.mxu0
    %v1578 = vadd.f32 0.0, %v1577
    %v1579 = vpop.f32.mrf.mxu0
    %1580 = vdwg.mxu0
    %1581 = vmatpush.bf16.msra.mxu0 %v1257
    %1582 = vmatpush.bf16.msra.mxu0 %v1249
    %1583 = vmatpush.bf16.msra.mxu0 %v1241
    %1584 = vmatpush.bf16.msra.mxu0 %v1233
    %1585 = vmatpush.bf16.msra.mxu0 %v1225
    %1586 = vmatpush.bf16.msra.mxu0 %v1217
    %1587 = vmatpush.bf16.msra.mxu0 %v1209
    %1588 = vmatpush.bf16.msra.mxu0 %v1201
    %1589 = vmatmul.bf16.gmra.mxu0 0
    %v1590 = vpop.f32.mrf.mxu0
    %v1591 = vadd.f32 %v1578, %v1590
    %v1592 = vpop.f32.mrf.mxu0
    %1593 = vdwg.mxu0
    %v1602 = vrot.slane %v1409, 1
    %v1603 = vrot.slane %v1435, 1
    %v1604 = vrot.slane %v1461, 1
    %v1605 = vrot.slane %v1487, 1
    %v1606 = vrot.slane %v1513, 1
    %v1607 = vrot.slane %v1539, 1
    %v1608 = vrot.slane %v1565, 1
    %v1609 = vrot.slane %v1591, 1
    %v1626 = vadd.f32 %v516, %v1409
    %v1627 = vadd.f32 %v530, %v1435
    %v1628 = vadd.f32 %v544, %v1461
    %v1629 = vadd.f32 %v558, %v1487
    %v1630 = vadd.f32 %v572, %v1513
    %v1631 = vadd.f32 %v586, %v1539
    %v1632 = vadd.f32 %v600, %v1565
    %v1633 = vadd.f32 %v614, %v1591
    %v1634 = vadd.f32 %v518, %v1602
    %v1635 = vadd.f32 %v532, %v1603
    %v1636 = vadd.f32 %v546, %v1604
    %v1637 = vadd.f32 %v560, %v1605
    %v1638 = vadd.f32 %v574, %v1606
    %v1639 = vadd.f32 %v588, %v1607
    %v1640 = vadd.f32 %v602, %v1608
    %v1641 = vadd.f32 %v616, %v1609
    %v1642 = vsub.f32 0.0, %v1626
    %v1643 = vsub.f32 0.0, %v1627
    %v1644 = vsub.f32 0.0, %v1634
    %v1645 = vsub.f32 0.0, %v1635
    %v1646 = vmul.f32 %v1642, 1.442695
    %v1647 = vpow.pop %v1646
    %v1648 = vmul.f32 %v1643, 1.442695
    %v1649 = vpow.pop %v1648
    %v1650 = vmul.f32 %v1644, 1.442695
    %v1651 = vpow.pop %v1650
    %v1652 = vmul.f32 %v1645, 1.442695
    %v1653 = vpow.pop %v1652
    %v1654 = vadd.f32 %v1647, 1.0
    %v1655 = vadd.f32 %v1649, 1.0
    %v1656 = vadd.f32 %v1651, 1.0
    %v1657 = vadd.f32 %v1653, 1.0
    %v1658 = vrcp.pop %v1654
    %v1659 = vmul.f32 %v1654, %v1658
    %v1660 = vsub.f32 1.0, %v1659
    %v1661 = vmul.f32 %v1658, %v1660
    %v1662 = vadd.f32 %v1658, %v1661
    %vm1663 = vweird.f32 %v1654
    %vm1664 = vweird.f32 %v1658
    %vm1665 = vmor %vm1663, %vm1664
    %v1666 = vsel %vm1665, %v1658, %v1662
    %v1667 = vand.u32 2147483647, %v1654
    %vm1668 = vcmp.eq.f32.partialorder %v1667, 8.507059e+37
    %v1669 = vand.u32 %v1654, 2147483648
    %v1670 = vor.u32 1.1754944e-38, %v1669
    %v1671 = vsel %vm1668, %v1670, %v1666
    %v1672 = vmul.f32 1.0, %v1671
    %v1673 = vrcp.pop %v1655
    %v1674 = vmul.f32 %v1655, %v1673
    %v1675 = vsub.f32 1.0, %v1674
    %v1676 = vmul.f32 %v1673, %v1675
    %v1677 = vadd.f32 %v1673, %v1676
    %vm1678 = vweird.f32 %v1655
    %vm1679 = vweird.f32 %v1673
    %vm1680 = vmor %vm1678, %vm1679
    %v1681 = vsel %vm1680, %v1673, %v1677
    %v1682 = vand.u32 2147483647, %v1655
    %vm1683 = vcmp.eq.f32.partialorder %v1682, 8.507059e+37
    %v1684 = vand.u32 %v1655, 2147483648
    %v1685 = vor.u32 1.1754944e-38, %v1684
    %v1686 = vsel %vm1683, %v1685, %v1681
    %v1687 = vmul.f32 1.0, %v1686
    %v1688 = vrcp.pop %v1656
    %v1689 = vmul.f32 %v1656, %v1688
    %v1690 = vsub.f32 1.0, %v1689
    %v1691 = vmul.f32 %v1688, %v1690
    %v1692 = vadd.f32 %v1688, %v1691
    %vm1693 = vweird.f32 %v1656
    %vm1694 = vweird.f32 %v1688
    %vm1695 = vmor %vm1693, %vm1694
    %v1696 = vsel %vm1695, %v1688, %v1692
    %v1697 = vand.u32 2147483647, %v1656
    %vm1698 = vcmp.eq.f32.partialorder %v1697, 8.507059e+37
    %v1699 = vand.u32 %v1656, 2147483648
    %v1700 = vor.u32 1.1754944e-38, %v1699
    %v1701 = vsel %vm1698, %v1700, %v1696
    %v1702 = vmul.f32 1.0, %v1701
    %v1703 = vrcp.pop %v1657
    %v1704 = vmul.f32 %v1657, %v1703
    %v1705 = vsub.f32 1.0, %v1704
    %v1706 = vmul.f32 %v1703, %v1705
    %v1707 = vadd.f32 %v1703, %v1706
    %vm1708 = vweird.f32 %v1657
    %vm1709 = vweird.f32 %v1703
    %vm1710 = vmor %vm1708, %vm1709
    %v1711 = vsel %vm1710, %v1703, %v1707
    %v1712 = vand.u32 2147483647, %v1657
    %vm1713 = vcmp.eq.f32.partialorder %v1712, 8.507059e+37
    %v1714 = vand.u32 %v1657, 2147483648
    %v1715 = vor.u32 1.1754944e-38, %v1714
    %v1716 = vsel %vm1713, %v1715, %v1711
    %v1717 = vmul.f32 1.0, %v1716
    %v1718 = vsub.f32 0.0, %v1628
    %v1719 = vsub.f32 0.0, %v1629
    %v1720 = vsub.f32 0.0, %v1636
    %v1721 = vsub.f32 0.0, %v1637
    %v1722 = vmul.f32 %v1718, 1.442695
    %v1723 = vpow.pop %v1722
    %v1724 = vmul.f32 %v1719, 1.442695
    %v1725 = vpow.pop %v1724
    %v1726 = vmul.f32 %v1720, 1.442695
    %v1727 = vpow.pop %v1726
    %v1728 = vmul.f32 %v1721, 1.442695
    %v1729 = vpow.pop %v1728
    %v1730 = vadd.f32 %v1723, 1.0
    %v1731 = vadd.f32 %v1725, 1.0
    %v1732 = vadd.f32 %v1727, 1.0
    %v1733 = vadd.f32 %v1729, 1.0
    %v1734 = vrcp.pop %v1730
    %v1735 = vmul.f32 %v1730, %v1734
    %v1736 = vsub.f32 1.0, %v1735
    %v1737 = vmul.f32 %v1734, %v1736
    %v1738 = vadd.f32 %v1734, %v1737
    %vm1739 = vweird.f32 %v1730
    %vm1740 = vweird.f32 %v1734
    %vm1741 = vmor %vm1739, %vm1740
    %v1742 = vsel %vm1741, %v1734, %v1738
    %v1743 = vand.u32 2147483647, %v1730
    %vm1744 = vcmp.eq.f32.partialorder %v1743, 8.507059e+37
    %v1745 = vand.u32 %v1730, 2147483648
    %v1746 = vor.u32 1.1754944e-38, %v1745
    %v1747 = vsel %vm1744, %v1746, %v1742
    %v1748 = vmul.f32 1.0, %v1747
    %v1749 = vrcp.pop %v1731
    %v1750 = vmul.f32 %v1731, %v1749
    %v1751 = vsub.f32 1.0, %v1750
    %v1752 = vmul.f32 %v1749, %v1751
    %v1753 = vadd.f32 %v1749, %v1752
    %vm1754 = vweird.f32 %v1731
    %vm1755 = vweird.f32 %v1749
    %vm1756 = vmor %vm1754, %vm1755
    %v1757 = vsel %vm1756, %v1749, %v1753
    %v1758 = vand.u32 2147483647, %v1731
    %vm1759 = vcmp.eq.f32.partialorder %v1758, 8.507059e+37
    %v1760 = vand.u32 %v1731, 2147483648
    %v1761 = vor.u32 1.1754944e-38, %v1760
    %v1762 = vsel %vm1759, %v1761, %v1757
    %v1763 = vmul.f32 1.0, %v1762
    %v1764 = vrcp.pop %v1732
    %v1765 = vmul.f32 %v1732, %v1764
    %v1766 = vsub.f32 1.0, %v1765
    %v1767 = vmul.f32 %v1764, %v1766
    %v1768 = vadd.f32 %v1764, %v1767
    %vm1769 = vweird.f32 %v1732
    %vm1770 = vweird.f32 %v1764
    %vm1771 = vmor %vm1769, %vm1770
    %v1772 = vsel %vm1771, %v1764, %v1768
    %v1773 = vand.u32 2147483647, %v1732
    %vm1774 = vcmp.eq.f32.partialorder %v1773, 8.507059e+37
    %v1775 = vand.u32 %v1732, 2147483648
    %v1776 = vor.u32 1.1754944e-38, %v1775
    %v1777 = vsel %vm1774, %v1776, %v1772
    %v1778 = vmul.f32 1.0, %v1777
    %v1779 = vrcp.pop %v1733
    %v1780 = vmul.f32 %v1733, %v1779
    %v1781 = vsub.f32 1.0, %v1780
    %v1782 = vmul.f32 %v1779, %v1781
    %v1783 = vadd.f32 %v1779, %v1782
    %vm1784 = vweird.f32 %v1733
    %vm1785 = vweird.f32 %v1779
    %vm1786 = vmor %vm1784, %vm1785
    %v1787 = vsel %vm1786, %v1779, %v1783
    %v1788 = vand.u32 2147483647, %v1733
    %vm1789 = vcmp.eq.f32.partialorder %v1788, 8.507059e+37
    %v1790 = vand.u32 %v1733, 2147483648
    %v1791 = vor.u32 1.1754944e-38, %v1790
    %v1792 = vsel %vm1789, %v1791, %v1787
    %v1793 = vmul.f32 1.0, %v1792
    %v1794 = vtanh.pop %v1630
    %v1795 = vtanh.pop %v1631
    %v1796 = vtanh.pop %v1638
    %v1797 = vtanh.pop %v1639
    %v1798 = vsub.f32 0.0, %v1632
    %v1799 = vsub.f32 0.0, %v1633
    %v1800 = vsub.f32 0.0, %v1640
    %v1801 = vsub.f32 0.0, %v1641
    %v1802 = vmul.f32 %v1798, 1.442695
    %v1803 = vpow.pop %v1802
    %v1804 = vmul.f32 %v1799, 1.442695
    %v1805 = vpow.pop %v1804
    %v1806 = vmul.f32 %v1800, 1.442695
    %v1807 = vpow.pop %v1806
    %v1808 = vmul.f32 %v1801, 1.442695
    %v1809 = vpow.pop %v1808
    %v1810 = vadd.f32 %v1803, 1.0
    %v1811 = vadd.f32 %v1805, 1.0
    %v1812 = vadd.f32 %v1807, 1.0
    %v1813 = vadd.f32 %v1809, 1.0
    %v1814 = vrcp.pop %v1810
    %v1815 = vmul.f32 %v1810, %v1814
    %v1816 = vsub.f32 1.0, %v1815
    %v1817 = vmul.f32 %v1814, %v1816
    %v1818 = vadd.f32 %v1814, %v1817
    %vm1819 = vweird.f32 %v1810
    %vm1820 = vweird.f32 %v1814
    %vm1821 = vmor %vm1819, %vm1820
    %v1822 = vsel %vm1821, %v1814, %v1818
    %v1823 = vand.u32 2147483647, %v1810
    %vm1824 = vcmp.eq.f32.partialorder %v1823, 8.507059e+37
    %v1825 = vand.u32 %v1810, 2147483648
    %v1826 = vor.u32 1.1754944e-38, %v1825
    %v1827 = vsel %vm1824, %v1826, %v1822
    %v1828 = vmul.f32 1.0, %v1827
    %v1829 = vrcp.pop %v1811
    %v1830 = vmul.f32 %v1811, %v1829
    %v1831 = vsub.f32 1.0, %v1830
    %v1832 = vmul.f32 %v1829, %v1831
    %v1833 = vadd.f32 %v1829, %v1832
    %vm1834 = vweird.f32 %v1811
    %vm1835 = vweird.f32 %v1829
    %vm1836 = vmor %vm1834, %vm1835
    %v1837 = vsel %vm1836, %v1829, %v1833
    %v1838 = vand.u32 2147483647, %v1811
    %vm1839 = vcmp.eq.f32.partialorder %v1838, 8.507059e+37
    %v1840 = vand.u32 %v1811, 2147483648
    %v1841 = vor.u32 1.1754944e-38, %v1840
    %v1842 = vsel %vm1839, %v1841, %v1837
    %v1843 = vmul.f32 1.0, %v1842
    %v1844 = vrcp.pop %v1812
    %v1845 = vmul.f32 %v1812, %v1844
    %v1846 = vsub.f32 1.0, %v1845
    %v1847 = vmul.f32 %v1844, %v1846
    %v1848 = vadd.f32 %v1844, %v1847
    %vm1849 = vweird.f32 %v1812
    %vm1850 = vweird.f32 %v1844
    %vm1851 = vmor %vm1849, %vm1850
    %v1852 = vsel %vm1851, %v1844, %v1848
    %v1853 = vand.u32 2147483647, %v1812
    %vm1854 = vcmp.eq.f32.partialorder %v1853, 8.507059e+37
    %v1855 = vand.u32 %v1812, 2147483648
    %v1856 = vor.u32 1.1754944e-38, %v1855
    %v1857 = vsel %vm1854, %v1856, %v1852
    %v1858 = vmul.f32 1.0, %v1857
    %v1859 = vrcp.pop %v1813
    %v1860 = vmul.f32 %v1813, %v1859
    %v1861 = vsub.f32 1.0, %v1860
    %v1862 = vmul.f32 %v1859, %v1861
    %v1863 = vadd.f32 %v1859, %v1862
    %vm1864 = vweird.f32 %v1813
    %vm1865 = vweird.f32 %v1859
    %vm1866 = vmor %vm1864, %vm1865
    %v1867 = vsel %vm1866, %v1859, %v1863
    %v1868 = vand.u32 2147483647, %v1813
    %vm1869 = vcmp.eq.f32.partialorder %v1868, 8.507059e+37
    %v1870 = vand.u32 %v1813, 2147483648
    %v1871 = vor.u32 1.1754944e-38, %v1870
    %v1872 = vsel %vm1869, %v1871, %v1867
    %v1873 = vmul.f32 1.0, %v1872
    %v1874 = vmul.f32 %v1748, 0.0
    %v1875 = vmul.f32 %v1763, 0.0
    %v1876 = vmul.f32 %v1778, 0.0
    %v1877 = vmul.f32 %v1793, 0.0
    %v1878 = vmul.f32 %v1672, %v1794
    %v1879 = vmul.f32 %v1687, %v1795
    %v1880 = vmul.f32 %v1702, %v1796
    %v1881 = vmul.f32 %v1717, %v1797
    %v1882 = vadd.f32 %v1874, %v1878
    %v1883 = vadd.f32 %v1875, %v1879
    %v1884 = vadd.f32 %v1876, %v1880
    %v1885 = vadd.f32 %v1877, %v1881
    %v1886 = vtanh.pop %v1882
    %v1887 = vtanh.pop %v1883
    %v1888 = vtanh.pop %v1884
    %v1889 = vtanh.pop %v1885
    %v1890 = vmul.f32 %v1828, %v1886
    %v1891 = vmul.f32 %v1843, %v1887
    %v1892 = vmul.f32 %v1858, %v1888
    %v1893 = vmul.f32 %v1873, %v1889
    %v1898 = vrot.slane %v1891, 7
    %v1899 = vrot.slane %v1893, 7
    %vm1900 = vcmask 1040384
    %v1901 = vsel %vm1900, %v1890, %v1898
    %v1902 = vsel %vm1900, %v1892, %v1899
    %v1905 = vlaneseq
    %vm1906 = vcmp.ge.s32.totalorder %v1905, 0
    %vm1907 = vcmp.lt.s32.totalorder %v1905, 256
    %vm1908 = vmand %vm1906, %vm1907
    %1909 = vst.msk [vmem:[#allocation2] ss:$8 sm:$0x3] %vm1908, %v1901
    %1910 = vst.msk [vmem:[#allocation2] ss:$8 sm:$0x0] %vm1908, %v1901
    %s1911 = scalar_lea.vmem [#allocation2], 16
    %1912 = vst.msk [vmem:[%s1911] ss:$8 sm:$0x3] %vm1908, %v1902
    %1913 = vst.msk [vmem:[%s1911] ss:$8 sm:$0x0] %vm1908, %v1902
    %v1914 = vpack.c.bf16 %v1890, %v1890
    %v1915 = vpack.c.bf16 %v1891, %v1891
    %v1916 = vpack.c.bf16 %v1892, %v1892
    %v1917 = vpack.c.bf16 %v1893, %v1893
    %v1922 = vunpack.c.l.b16 %v1914
    %v1923 = vunpack.c.l.b16 %v1915
    %v1924 = vunpack.c.l.b16 %v1916
    %v1925 = vunpack.c.l.b16 %v1917
    %v1926 = vrot.slane %v1924, 7
    %vm1927 = vcmask 1041409
    %v1928 = vsel %vm1927, %v1926, %v1922
    %v1929 = vrot.slane %v1925, 7
    %v1930 = vsel %vm1927, %v1929, %v1923
    %v1931 = vpack.c.b16 %v1928, %v1928
    %v1932 = vpack.c.b16 %v1930, %v1930
    %1935 = vmatpush.bf16.msra.mxu0 %v1186
    %1936 = vmatpush.bf16.msra.mxu0 %v1178
    %1937 = vmatpush.bf16.msra.mxu0 %v1170
    %1938 = vmatpush.bf16.msra.mxu0 %v1162
    %1939 = vmatpush.bf16.msra.mxu0 %v1154
    %1940 = vmatpush.bf16.msra.mxu0 %v1146
    %1941 = vmatpush.bf16.msra.mxu0 %v1138
    %1942 = vmatpush.bf16.msra.mxu0 %v1130
    %1943 = vmatmul.bf16.gmra.mxu0 %v1931
    %v1944 = vpop.f32.mrf.mxu0
    %v1945 = vadd.f32 0.0, %v1944
    %v1946 = vpop.f32.mrf.mxu0
    %1947 = vdwg.mxu0
    %1948 = vmatpush.bf16.msra.mxu0 %v1250
    %1949 = vmatpush.bf16.msra.mxu0 %v1242
    %1950 = vmatpush.bf16.msra.mxu0 %v1234
    %1951 = vmatpush.bf16.msra.mxu0 %v1226
    %1952 = vmatpush.bf16.msra.mxu0 %v1218
    %1953 = vmatpush.bf16.msra.mxu0 %v1210
    %1954 = vmatpush.bf16.msra.mxu0 %v1202
    %1955 = vmatpush.bf16.msra.mxu0 %v1194
    %1956 = vmatmul.bf16.gmra.mxu0 %v1932
    %v1957 = vpop.f32.mrf.mxu0
    %v1958 = vadd.f32 %v1945, %v1957
    %v1959 = vpop.f32.mrf.mxu0
    %1960 = vdwg.mxu0
    %1961 = vmatpush.bf16.msra.mxu0 %v1187
    %1962 = vmatpush.bf16.msra.mxu0 %v1179
    %1963 = vmatpush.bf16.msra.mxu0 %v1171
    %1964 = vmatpush.bf16.msra.mxu0 %v1163
    %1965 = vmatpush.bf16.msra.mxu0 %v1155
    %1966 = vmatpush.bf16.msra.mxu0 %v1147
    %1967 = vmatpush.bf16.msra.mxu0 %v1139
    %1968 = vmatpush.bf16.msra.mxu0 %v1131
    %1969 = vmatmul.bf16.gmra.mxu0 %v1931
    %v1970 = vpop.f32.mrf.mxu0
    %v1971 = vadd.f32 0.0, %v1970
    %v1972 = vpop.f32.mrf.mxu0
    %1973 = vdwg.mxu0
    %1974 = vmatpush.bf16.msra.mxu0 %v1251
    %1975 = vmatpush.bf16.msra.mxu0 %v1243
    %1976 = vmatpush.bf16.msra.mxu0 %v1235
    %1977 = vmatpush.bf16.msra.mxu0 %v1227
    %1978 = vmatpush.bf16.msra.mxu0 %v1219
    %1979 = vmatpush.bf16.msra.mxu0 %v1211
    %1980 = vmatpush.bf16.msra.mxu0 %v1203
    %1981 = vmatpush.bf16.msra.mxu0 %v1195
    %1982 = vmatmul.bf16.gmra.mxu0 %v1932
    %v1983 = vpop.f32.mrf.mxu0
    %v1984 = vadd.f32 %v1971, %v1983
    %v1985 = vpop.f32.mrf.mxu0
    %1986 = vdwg.mxu0
    %1987 = vmatpush.bf16.msra.mxu0 %v1188
    %1988 = vmatpush.bf16.msra.mxu0 %v1180
    %1989 = vmatpush.bf16.msra.mxu0 %v1172
    %1990 = vmatpush.bf16.msra.mxu0 %v1164
    %1991 = vmatpush.bf16.msra.mxu0 %v1156
    %1992 = vmatpush.bf16.msra.mxu0 %v1148
    %1993 = vmatpush.bf16.msra.mxu0 %v1140
    %1994 = vmatpush.bf16.msra.mxu0 %v1132
    %1995 = vmatmul.bf16.gmra.mxu0 %v1931
    %v1996 = vpop.f32.mrf.mxu0
    %v1997 = vadd.f32 0.0, %v1996
    %v1998 = vpop.f32.mrf.mxu0
    %1999 = vdwg.mxu0
    %2000 = vmatpush.bf16.msra.mxu0 %v1252
    %2001 = vmatpush.bf16.msra.mxu0 %v1244
    %2002 = vmatpush.bf16.msra.mxu0 %v1236
    %2003 = vmatpush.bf16.msra.mxu0 %v1228
    %2004 = vmatpush.bf16.msra.mxu0 %v1220
    %2005 = vmatpush.bf16.msra.mxu0 %v1212
    %2006 = vmatpush.bf16.msra.mxu0 %v1204
    %2007 = vmatpush.bf16.msra.mxu0 %v1196
    %2008 = vmatmul.bf16.gmra.mxu0 %v1932
    %v2009 = vpop.f32.mrf.mxu0
    %v2010 = vadd.f32 %v1997, %v2009
    %v2011 = vpop.f32.mrf.mxu0
    %2012 = vdwg.mxu0
    %2013 = vmatpush.bf16.msra.mxu0 %v1189
    %2014 = vmatpush.bf16.msra.mxu0 %v1181
    %2015 = vmatpush.bf16.msra.mxu0 %v1173
    %2016 = vmatpush.bf16.msra.mxu0 %v1165
    %2017 = vmatpush.bf16.msra.mxu0 %v1157
    %2018 = vmatpush.bf16.msra.mxu0 %v1149
    %2019 = vmatpush.bf16.msra.mxu0 %v1141
    %2020 = vmatpush.bf16.msra.mxu0 %v1133
    %2021 = vmatmul.bf16.gmra.mxu0 %v1931
    %v2022 = vpop.f32.mrf.mxu0
    %v2023 = vadd.f32 0.0, %v2022
    %v2024 = vpop.f32.mrf.mxu0
    %2025 = vdwg.mxu0
    %2026 = vmatpush.bf16.msra.mxu0 %v1253
    %2027 = vmatpush.bf16.msra.mxu0 %v1245
    %2028 = vmatpush.bf16.msra.mxu0 %v1237
    %2029 = vmatpush.bf16.msra.mxu0 %v1229
    %2030 = vmatpush.bf16.msra.mxu0 %v1221
    %2031 = vmatpush.bf16.msra.mxu0 %v1213
    %2032 = vmatpush.bf16.msra.mxu0 %v1205
    %2033 = vmatpush.bf16.msra.mxu0 %v1197
    %2034 = vmatmul.bf16.gmra.mxu0 %v1932
    %v2035 = vpop.f32.mrf.mxu0
    %v2036 = vadd.f32 %v2023, %v2035
    %v2037 = vpop.f32.mrf.mxu0
    %2038 = vdwg.mxu0
    %2039 = vmatpush.bf16.msra.mxu0 %v1190
    %2040 = vmatpush.bf16.msra.mxu0 %v1182
    %2041 = vmatpush.bf16.msra.mxu0 %v1174
    %2042 = vmatpush.bf16.msra.mxu0 %v1166
    %2043 = vmatpush.bf16.msra.mxu0 %v1158
    %2044 = vmatpush.bf16.msra.mxu0 %v1150
    %2045 = vmatpush.bf16.msra.mxu0 %v1142
    %2046 = vmatpush.bf16.msra.mxu0 %v1134
    %2047 = vmatmul.bf16.gmra.mxu0 %v1931
    %v2048 = vpop.f32.mrf.mxu0
    %v2049 = vadd.f32 0.0, %v2048
    %v2050 = vpop.f32.mrf.mxu0
    %2051 = vdwg.mxu0
    %2052 = vmatpush.bf16.msra.mxu0 %v1254
    %2053 = vmatpush.bf16.msra.mxu0 %v1246
    %2054 = vmatpush.bf16.msra.mxu0 %v1238
    %2055 = vmatpush.bf16.msra.mxu0 %v1230
    %2056 = vmatpush.bf16.msra.mxu0 %v1222
    %2057 = vmatpush.bf16.msra.mxu0 %v1214
    %2058 = vmatpush.bf16.msra.mxu0 %v1206
    %2059 = vmatpush.bf16.msra.mxu0 %v1198
    %2060 = vmatmul.bf16.gmra.mxu0 %v1932
    %v2061 = vpop.f32.mrf.mxu0
    %v2062 = vadd.f32 %v2049, %v2061
    %v2063 = vpop.f32.mrf.mxu0
    %2064 = vdwg.mxu0
    %2065 = vmatpush.bf16.msra.mxu0 %v1191
    %2066 = vmatpush.bf16.msra.mxu0 %v1183
    %2067 = vmatpush.bf16.msra.mxu0 %v1175
    %2068 = vmatpush.bf16.msra.mxu0 %v1167
    %2069 = vmatpush.bf16.msra.mxu0 %v1159
    %2070 = vmatpush.bf16.msra.mxu0 %v1151
    %2071 = vmatpush.bf16.msra.mxu0 %v1143
    %2072 = vmatpush.bf16.msra.mxu0 %v1135
    %2073 = vmatmul.bf16.gmra.mxu0 %v1931
    %v2074 = vpop.f32.mrf.mxu0
    %v2075 = vadd.f32 0.0, %v2074
    %v2076 = vpop.f32.mrf.mxu0
    %2077 = vdwg.mxu0
    %2078 = vmatpush.bf16.msra.mxu0 %v1255
    %2079 = vmatpush.bf16.msra.mxu0 %v1247
    %2080 = vmatpush.bf16.msra.mxu0 %v1239
    %2081 = vmatpush.bf16.msra.mxu0 %v1231
    %2082 = vmatpush.bf16.msra.mxu0 %v1223
    %2083 = vmatpush.bf16.msra.mxu0 %v1215
    %2084 = vmatpush.bf16.msra.mxu0 %v1207
    %2085 = vmatpush.bf16.msra.mxu0 %v1199
    %2086 = vmatmul.bf16.gmra.mxu0 %v1932
    %v2087 = vpop.f32.mrf.mxu0
    %v2088 = vadd.f32 %v2075, %v2087
    %v2089 = vpop.f32.mrf.mxu0
    %2090 = vdwg.mxu0
    %2091 = vmatpush.bf16.msra.mxu0 %v1192
    %2092 = vmatpush.bf16.msra.mxu0 %v1184
    %2093 = vmatpush.bf16.msra.mxu0 %v1176
    %2094 = vmatpush.bf16.msra.mxu0 %v1168
    %2095 = vmatpush.bf16.msra.mxu0 %v1160
    %2096 = vmatpush.bf16.msra.mxu0 %v1152
    %2097 = vmatpush.bf16.msra.mxu0 %v1144
    %2098 = vmatpush.bf16.msra.mxu0 %v1136
    %2099 = vmatmul.bf16.gmra.mxu0 %v1931
    %v2100 = vpop.f32.mrf.mxu0
    %v2101 = vadd.f32 0.0, %v2100
    %v2102 = vpop.f32.mrf.mxu0
    %2103 = vdwg.mxu0
    %2104 = vmatpush.bf16.msra.mxu0 %v1256
    %2105 = vmatpush.bf16.msra.mxu0 %v1248
    %2106 = vmatpush.bf16.msra.mxu0 %v1240
    %2107 = vmatpush.bf16.msra.mxu0 %v1232
    %2108 = vmatpush.bf16.msra.mxu0 %v1224
    %2109 = vmatpush.bf16.msra.mxu0 %v1216
    %2110 = vmatpush.bf16.msra.mxu0 %v1208
    %2111 = vmatpush.bf16.msra.mxu0 %v1200
    %2112 = vmatmul.bf16.gmra.mxu0 %v1932
    %v2113 = vpop.f32.mrf.mxu0
    %v2114 = vadd.f32 %v2101, %v2113
    %v2115 = vpop.f32.mrf.mxu0
    %2116 = vdwg.mxu0
    %2117 = vmatpush.bf16.msra.mxu0 %v1193
    %2118 = vmatpush.bf16.msra.mxu0 %v1185
    %2119 = vmatpush.bf16.msra.mxu0 %v1177
    %2120 = vmatpush.bf16.msra.mxu0 %v1169
    %2121 = vmatpush.bf16.msra.mxu0 %v1161
    %2122 = vmatpush.bf16.msra.mxu0 %v1153
    %2123 = vmatpush.bf16.msra.mxu0 %v1145
    %2124 = vmatpush.bf16.msra.mxu0 %v1137
    %2125 = vmatmul.bf16.gmra.mxu0 %v1931
    %v2126 = vpop.f32.mrf.mxu0
    %v2127 = vadd.f32 0.0, %v2126
    %v2128 = vpop.f32.mrf.mxu0
    %2129 = vdwg.mxu0
    %2130 = vmatpush.bf16.msra.mxu0 %v1257
    %2131 = vmatpush.bf16.msra.mxu0 %v1249
    %2132 = vmatpush.bf16.msra.mxu0 %v1241
    %2133 = vmatpush.bf16.msra.mxu0 %v1233
    %2134 = vmatpush.bf16.msra.mxu0 %v1225
    %2135 = vmatpush.bf16.msra.mxu0 %v1217
    %2136 = vmatpush.bf16.msra.mxu0 %v1209
    %2137 = vmatpush.bf16.msra.mxu0 %v1201
    %2138 = vmatmul.bf16.gmra.mxu0 %v1932
    %v2139 = vpop.f32.mrf.mxu0
    %v2140 = vadd.f32 %v2127, %v2139
    %v2141 = vpop.f32.mrf.mxu0
    %2142 = vdwg.mxu0
    %v2151 = vrot.slane %v1958, 7
    %v2152 = vrot.slane %v1984, 7
    %v2153 = vrot.slane %v2010, 7
    %v2154 = vrot.slane %v2036, 7
    %v2155 = vrot.slane %v2062, 7
    %v2156 = vrot.slane %v2088, 7
    %v2157 = vrot.slane %v2114, 7
    %v2158 = vrot.slane %v2140, 7
    %v2175 = vadd.f32 %v516, %v2151
    %v2176 = vadd.f32 %v530, %v2152
    %v2177 = vadd.f32 %v544, %v2153
    %v2178 = vadd.f32 %v558, %v2154
    %v2179 = vadd.f32 %v572, %v2155
    %v2180 = vadd.f32 %v586, %v2156
    %v2181 = vadd.f32 %v600, %v2157
    %v2182 = vadd.f32 %v614, %v2158
    %v2183 = vadd.f32 %v518, %v1958
    %v2184 = vadd.f32 %v532, %v1984
    %v2185 = vadd.f32 %v546, %v2010
    %v2186 = vadd.f32 %v560, %v2036
    %v2187 = vadd.f32 %v574, %v2062
    %v2188 = vadd.f32 %v588, %v2088
    %v2189 = vadd.f32 %v602, %v2114
    %v2190 = vadd.f32 %v616, %v2140
    %v2191 = vsub.f32 0.0, %v2175
    %v2192 = vsub.f32 0.0, %v2176
    %v2193 = vsub.f32 0.0, %v2183
    %v2194 = vsub.f32 0.0, %v2184
    %v2195 = vmul.f32 %v2191, 1.442695
    %v2196 = vpow.pop %v2195
    %v2197 = vmul.f32 %v2192, 1.442695
    %v2198 = vpow.pop %v2197
    %v2199 = vmul.f32 %v2193, 1.442695
    %v2200 = vpow.pop %v2199
    %v2201 = vmul.f32 %v2194, 1.442695
    %v2202 = vpow.pop %v2201
    %v2203 = vadd.f32 %v2196, 1.0
    %v2204 = vadd.f32 %v2198, 1.0
    %v2205 = vadd.f32 %v2200, 1.0
    %v2206 = vadd.f32 %v2202, 1.0
    %v2207 = vrcp.pop %v2203
    %v2208 = vmul.f32 %v2203, %v2207
    %v2209 = vsub.f32 1.0, %v2208
    %v2210 = vmul.f32 %v2207, %v2209
    %v2211 = vadd.f32 %v2207, %v2210
    %vm2212 = vweird.f32 %v2203
    %vm2213 = vweird.f32 %v2207
    %vm2214 = vmor %vm2212, %vm2213
    %v2215 = vsel %vm2214, %v2207, %v2211
    %v2216 = vand.u32 2147483647, %v2203
    %vm2217 = vcmp.eq.f32.partialorder %v2216, 8.507059e+37
    %v2218 = vand.u32 %v2203, 2147483648
    %v2219 = vor.u32 1.1754944e-38, %v2218
    %v2220 = vsel %vm2217, %v2219, %v2215
    %v2221 = vmul.f32 1.0, %v2220
    %v2222 = vrcp.pop %v2204
    %v2223 = vmul.f32 %v2204, %v2222
    %v2224 = vsub.f32 1.0, %v2223
    %v2225 = vmul.f32 %v2222, %v2224
    %v2226 = vadd.f32 %v2222, %v2225
    %vm2227 = vweird.f32 %v2204
    %vm2228 = vweird.f32 %v2222
    %vm2229 = vmor %vm2227, %vm2228
    %v2230 = vsel %vm2229, %v2222, %v2226
    %v2231 = vand.u32 2147483647, %v2204
    %vm2232 = vcmp.eq.f32.partialorder %v2231, 8.507059e+37
    %v2233 = vand.u32 %v2204, 2147483648
    %v2234 = vor.u32 1.1754944e-38, %v2233
    %v2235 = vsel %vm2232, %v2234, %v2230
    %v2236 = vmul.f32 1.0, %v2235
    %v2237 = vrcp.pop %v2205
    %v2238 = vmul.f32 %v2205, %v2237
    %v2239 = vsub.f32 1.0, %v2238
    %v2240 = vmul.f32 %v2237, %v2239
    %v2241 = vadd.f32 %v2237, %v2240
    %vm2242 = vweird.f32 %v2205
    %vm2243 = vweird.f32 %v2237
    %vm2244 = vmor %vm2242, %vm2243
    %v2245 = vsel %vm2244, %v2237, %v2241
    %v2246 = vand.u32 2147483647, %v2205
    %vm2247 = vcmp.eq.f32.partialorder %v2246, 8.507059e+37
    %v2248 = vand.u32 %v2205, 2147483648
    %v2249 = vor.u32 1.1754944e-38, %v2248
    %v2250 = vsel %vm2247, %v2249, %v2245
    %v2251 = vmul.f32 1.0, %v2250
    %v2252 = vrcp.pop %v2206
    %v2253 = vmul.f32 %v2206, %v2252
    %v2254 = vsub.f32 1.0, %v2253
    %v2255 = vmul.f32 %v2252, %v2254
    %v2256 = vadd.f32 %v2252, %v2255
    %vm2257 = vweird.f32 %v2206
    %vm2258 = vweird.f32 %v2252
    %vm2259 = vmor %vm2257, %vm2258
    %v2260 = vsel %vm2259, %v2252, %v2256
    %v2261 = vand.u32 2147483647, %v2206
    %vm2262 = vcmp.eq.f32.partialorder %v2261, 8.507059e+37
    %v2263 = vand.u32 %v2206, 2147483648
    %v2264 = vor.u32 1.1754944e-38, %v2263
    %v2265 = vsel %vm2262, %v2264, %v2260
    %v2266 = vmul.f32 1.0, %v2265
    %v2267 = vsub.f32 0.0, %v2177
    %v2268 = vsub.f32 0.0, %v2178
    %v2269 = vsub.f32 0.0, %v2185
    %v2270 = vsub.f32 0.0, %v2186
    %v2271 = vmul.f32 %v2267, 1.442695
    %v2272 = vpow.pop %v2271
    %v2273 = vmul.f32 %v2268, 1.442695
    %v2274 = vpow.pop %v2273
    %v2275 = vmul.f32 %v2269, 1.442695
    %v2276 = vpow.pop %v2275
    %v2277 = vmul.f32 %v2270, 1.442695
    %v2278 = vpow.pop %v2277
    %v2279 = vadd.f32 %v2272, 1.0
    %v2280 = vadd.f32 %v2274, 1.0
    %v2281 = vadd.f32 %v2276, 1.0
    %v2282 = vadd.f32 %v2278, 1.0
    %v2283 = vrcp.pop %v2279
    %v2284 = vmul.f32 %v2279, %v2283
    %v2285 = vsub.f32 1.0, %v2284
    %v2286 = vmul.f32 %v2283, %v2285
    %v2287 = vadd.f32 %v2283, %v2286
    %vm2288 = vweird.f32 %v2279
    %vm2289 = vweird.f32 %v2283
    %vm2290 = vmor %vm2288, %vm2289
    %v2291 = vsel %vm2290, %v2283, %v2287
    %v2292 = vand.u32 2147483647, %v2279
    %vm2293 = vcmp.eq.f32.partialorder %v2292, 8.507059e+37
    %v2294 = vand.u32 %v2279, 2147483648
    %v2295 = vor.u32 1.1754944e-38, %v2294
    %v2296 = vsel %vm2293, %v2295, %v2291
    %v2297 = vmul.f32 1.0, %v2296
    %v2298 = vrcp.pop %v2280
    %v2299 = vmul.f32 %v2280, %v2298
    %v2300 = vsub.f32 1.0, %v2299
    %v2301 = vmul.f32 %v2298, %v2300
    %v2302 = vadd.f32 %v2298, %v2301
    %vm2303 = vweird.f32 %v2280
    %vm2304 = vweird.f32 %v2298
    %vm2305 = vmor %vm2303, %vm2304
    %v2306 = vsel %vm2305, %v2298, %v2302
    %v2307 = vand.u32 2147483647, %v2280
    %vm2308 = vcmp.eq.f32.partialorder %v2307, 8.507059e+37
    %v2309 = vand.u32 %v2280, 2147483648
    %v2310 = vor.u32 1.1754944e-38, %v2309
    %v2311 = vsel %vm2308, %v2310, %v2306
    %v2312 = vmul.f32 1.0, %v2311
    %v2313 = vrcp.pop %v2281
    %v2314 = vmul.f32 %v2281, %v2313
    %v2315 = vsub.f32 1.0, %v2314
    %v2316 = vmul.f32 %v2313, %v2315
    %v2317 = vadd.f32 %v2313, %v2316
    %vm2318 = vweird.f32 %v2281
    %vm2319 = vweird.f32 %v2313
    %vm2320 = vmor %vm2318, %vm2319
    %v2321 = vsel %vm2320, %v2313, %v2317
    %v2322 = vand.u32 2147483647, %v2281
    %vm2323 = vcmp.eq.f32.partialorder %v2322, 8.507059e+37
    %v2324 = vand.u32 %v2281, 2147483648
    %v2325 = vor.u32 1.1754944e-38, %v2324
    %v2326 = vsel %vm2323, %v2325, %v2321
    %v2327 = vmul.f32 1.0, %v2326
    %v2328 = vrcp.pop %v2282
    %v2329 = vmul.f32 %v2282, %v2328
    %v2330 = vsub.f32 1.0, %v2329
    %v2331 = vmul.f32 %v2328, %v2330
    %v2332 = vadd.f32 %v2328, %v2331
    %vm2333 = vweird.f32 %v2282
    %vm2334 = vweird.f32 %v2328
    %vm2335 = vmor %vm2333, %vm2334
    %v2336 = vsel %vm2335, %v2328, %v2332
    %v2337 = vand.u32 2147483647, %v2282
    %vm2338 = vcmp.eq.f32.partialorder %v2337, 8.507059e+37
    %v2339 = vand.u32 %v2282, 2147483648
    %v2340 = vor.u32 1.1754944e-38, %v2339
    %v2341 = vsel %vm2338, %v2340, %v2336
    %v2342 = vmul.f32 1.0, %v2341
    %v2343 = vtanh.pop %v2179
    %v2344 = vtanh.pop %v2180
    %v2345 = vtanh.pop %v2187
    %v2346 = vtanh.pop %v2188
    %v2347 = vsub.f32 0.0, %v2181
    %v2348 = vsub.f32 0.0, %v2182
    %v2349 = vsub.f32 0.0, %v2189
    %v2350 = vsub.f32 0.0, %v2190
    %v2351 = vmul.f32 %v2347, 1.442695
    %v2352 = vpow.pop %v2351
    %v2353 = vmul.f32 %v2348, 1.442695
    %v2354 = vpow.pop %v2353
    %v2355 = vmul.f32 %v2349, 1.442695
    %v2356 = vpow.pop %v2355
    %v2357 = vmul.f32 %v2350, 1.442695
    %v2358 = vpow.pop %v2357
    %v2359 = vadd.f32 %v2352, 1.0
    %v2360 = vadd.f32 %v2354, 1.0
    %v2361 = vadd.f32 %v2356, 1.0
    %v2362 = vadd.f32 %v2358, 1.0
    %v2363 = vrcp.pop %v2359
    %v2364 = vmul.f32 %v2359, %v2363
    %v2365 = vsub.f32 1.0, %v2364
    %v2366 = vmul.f32 %v2363, %v2365
    %v2367 = vadd.f32 %v2363, %v2366
    %vm2368 = vweird.f32 %v2359
    %vm2369 = vweird.f32 %v2363
    %vm2370 = vmor %vm2368, %vm2369
    %v2371 = vsel %vm2370, %v2363, %v2367
    %v2372 = vand.u32 2147483647, %v2359
    %vm2373 = vcmp.eq.f32.partialorder %v2372, 8.507059e+37
    %v2374 = vand.u32 %v2359, 2147483648
    %v2375 = vor.u32 1.1754944e-38, %v2374
    %v2376 = vsel %vm2373, %v2375, %v2371
    %v2377 = vmul.f32 1.0, %v2376
    %v2378 = vrcp.pop %v2360
    %v2379 = vmul.f32 %v2360, %v2378
    %v2380 = vsub.f32 1.0, %v2379
    %v2381 = vmul.f32 %v2378, %v2380
    %v2382 = vadd.f32 %v2378, %v2381
    %vm2383 = vweird.f32 %v2360
    %vm2384 = vweird.f32 %v2378
    %vm2385 = vmor %vm2383, %vm2384
    %v2386 = vsel %vm2385, %v2378, %v2382
    %v2387 = vand.u32 2147483647, %v2360
    %vm2388 = vcmp.eq.f32.partialorder %v2387, 8.507059e+37
    %v2389 = vand.u32 %v2360, 2147483648
    %v2390 = vor.u32 1.1754944e-38, %v2389
    %v2391 = vsel %vm2388, %v2390, %v2386
    %v2392 = vmul.f32 1.0, %v2391
    %v2393 = vrcp.pop %v2361
    %v2394 = vmul.f32 %v2361, %v2393
    %v2395 = vsub.f32 1.0, %v2394
    %v2396 = vmul.f32 %v2393, %v2395
    %v2397 = vadd.f32 %v2393, %v2396
    %vm2398 = vweird.f32 %v2361
    %vm2399 = vweird.f32 %v2393
    %vm2400 = vmor %vm2398, %vm2399
    %v2401 = vsel %vm2400, %v2393, %v2397
    %v2402 = vand.u32 2147483647, %v2361
    %vm2403 = vcmp.eq.f32.partialorder %v2402, 8.507059e+37
    %v2404 = vand.u32 %v2361, 2147483648
    %v2405 = vor.u32 1.1754944e-38, %v2404
    %v2406 = vsel %vm2403, %v2405, %v2401
    %v2407 = vmul.f32 1.0, %v2406
    %v2408 = vrcp.pop %v2362
    %v2409 = vmul.f32 %v2362, %v2408
    %v2410 = vsub.f32 1.0, %v2409
    %v2411 = vmul.f32 %v2408, %v2410
    %v2412 = vadd.f32 %v2408, %v2411
    %vm2413 = vweird.f32 %v2362
    %vm2414 = vweird.f32 %v2408
    %vm2415 = vmor %vm2413, %vm2414
    %v2416 = vsel %vm2415, %v2408, %v2412
    %v2417 = vand.u32 2147483647, %v2362
    %vm2418 = vcmp.eq.f32.partialorder %v2417, 8.507059e+37
    %v2419 = vand.u32 %v2362, 2147483648
    %v2420 = vor.u32 1.1754944e-38, %v2419
    %v2421 = vsel %vm2418, %v2420, %v2416
    %v2422 = vmul.f32 1.0, %v2421
    %v2427 = vrot.slane %v1882, 7
    %v2428 = vrot.slane %v1883, 7
    %v2429 = vrot.slane %v1884, 7
    %v2430 = vrot.slane %v1885, 7
    %v2435 = vmul.f32 %v2297, %v2427
    %v2436 = vmul.f32 %v2312, %v2428
    %v2437 = vmul.f32 %v2327, %v2429
    %v2438 = vmul.f32 %v2342, %v2430
    %v2439 = vmul.f32 %v2221, %v2343
    %v2440 = vmul.f32 %v2236, %v2344
    %v2441 = vmul.f32 %v2251, %v2345
    %v2442 = vmul.f32 %v2266, %v2346
    %v2443 = vadd.f32 %v2435, %v2439
    %v2444 = vadd.f32 %v2436, %v2440
    %v2445 = vadd.f32 %v2437, %v2441
    %v2446 = vadd.f32 %v2438, %v2442
    %v2447 = vtanh.pop %v2443
    %v2448 = vtanh.pop %v2444
    %v2449 = vtanh.pop %v2445
    %v2450 = vtanh.pop %v2446
    %v2451 = vmul.f32 %v2377, %v2447
    %v2452 = vmul.f32 %v2392, %v2448
    %v2453 = vmul.f32 %v2407, %v2449
    %v2454 = vmul.f32 %v2422, %v2450
    %2459 = vst [vmem:[#allocation1] sm:$0xff] %v2451
    %2460 = vst [vmem:[#allocation1 + $0x9] sm:$0xff] %v2452
    %s2461 = scalar_lea.vmem [#allocation1], 1
    %v2462 = vld [vmem:[%s2461] ss:$9 sm:$0xff]
    %2463 = vst [vmem:[#allocation1] sm:$0xff] %v2453
    %2464 = vst [vmem:[#allocation1 + $0x9] sm:$0xff] %v2454
    %v2465 = vld [vmem:[%s2461] ss:$9 sm:$0xff]
    %s2468 = scalar_lea.vmem [#allocation2], 1
    %2469 = vst.msk [vmem:[%s2468] ss:$8 sm:$0x3] %vm1908, %v2462
    %2470 = vst.msk [vmem:[%s2468] ss:$8 sm:$0x0] %vm1908, %v2462
    %s2471 = scalar_lea.vmem [#allocation2], 17
    %2472 = vst.msk [vmem:[%s2471] ss:$8 sm:$0x3] %vm1908, %v2465
    %2473 = vst.msk [vmem:[%s2471] ss:$8 sm:$0x0] %vm1908, %v2465
    %v2474 = vpack.c.bf16 %v2451, %v2451
    %v2475 = vpack.c.bf16 %v2452, %v2452
    %v2476 = vpack.c.bf16 %v2453, %v2453
    %v2477 = vpack.c.bf16 %v2454, %v2454
    %v2482 = vunpack.c.l.b16 %v2474
    %v2483 = vunpack.c.l.b16 %v2475
    %v2484 = vunpack.c.l.b16 %v2476
    %v2485 = vunpack.c.l.b16 %v2477
    %v2486 = vrot.slane %v2482, 1
    %v2487 = vsel %vm1927, %v2484, %v2486
    %v2488 = vrot.slane %v2483, 1
    %v2489 = vsel %vm1927, %v2485, %v2488
    %v2490 = vpack.c.b16 %v2487, %v2487
    %v2491 = vpack.c.b16 %v2489, %v2489
    %2494 = vmatpush.bf16.msra.mxu0 %v1186
    %2495 = vmatpush.bf16.msra.mxu0 %v1178
    %2496 = vmatpush.bf16.msra.mxu0 %v1170
    %2497 = vmatpush.bf16.msra.mxu0 %v1162
    %2498 = vmatpush.bf16.msra.mxu0 %v1154
    %2499 = vmatpush.bf16.msra.mxu0 %v1146
    %2500 = vmatpush.bf16.msra.mxu0 %v1138
    %2501 = vmatpush.bf16.msra.mxu0 %v1130
    %2502 = vmatmul.bf16.gmra.mxu0 %v2490
    %v2503 = vpop.f32.mrf.mxu0
    %v2504 = vadd.f32 0.0, %v2503
    %v2505 = vpop.f32.mrf.mxu0
    %2506 = vdwg.mxu0
    %2507 = vmatpush.bf16.msra.mxu0 %v1250
    %2508 = vmatpush.bf16.msra.mxu0 %v1242
    %2509 = vmatpush.bf16.msra.mxu0 %v1234
    %2510 = vmatpush.bf16.msra.mxu0 %v1226
    %2511 = vmatpush.bf16.msra.mxu0 %v1218
    %2512 = vmatpush.bf16.msra.mxu0 %v1210
    %2513 = vmatpush.bf16.msra.mxu0 %v1202
    %2514 = vmatpush.bf16.msra.mxu0 %v1194
    %2515 = vmatmul.bf16.gmra.mxu0 %v2491
    %v2516 = vpop.f32.mrf.mxu0
    %v2517 = vadd.f32 %v2504, %v2516
    %v2518 = vpop.f32.mrf.mxu0
    %2519 = vdwg.mxu0
    %2520 = vmatpush.bf16.msra.mxu0 %v1187
    %2521 = vmatpush.bf16.msra.mxu0 %v1179
    %2522 = vmatpush.bf16.msra.mxu0 %v1171
    %2523 = vmatpush.bf16.msra.mxu0 %v1163
    %2524 = vmatpush.bf16.msra.mxu0 %v1155
    %2525 = vmatpush.bf16.msra.mxu0 %v1147
    %2526 = vmatpush.bf16.msra.mxu0 %v1139
    %2527 = vmatpush.bf16.msra.mxu0 %v1131
    %2528 = vmatmul.bf16.gmra.mxu0 %v2490
    %v2529 = vpop.f32.mrf.mxu0
    %v2530 = vadd.f32 0.0, %v2529
    %v2531 = vpop.f32.mrf.mxu0
    %2532 = vdwg.mxu0
    %2533 = vmatpush.bf16.msra.mxu0 %v1251
    %2534 = vmatpush.bf16.msra.mxu0 %v1243
    %2535 = vmatpush.bf16.msra.mxu0 %v1235
    %2536 = vmatpush.bf16.msra.mxu0 %v1227
    %2537 = vmatpush.bf16.msra.mxu0 %v1219
    %2538 = vmatpush.bf16.msra.mxu0 %v1211
    %2539 = vmatpush.bf16.msra.mxu0 %v1203
    %2540 = vmatpush.bf16.msra.mxu0 %v1195
    %2541 = vmatmul.bf16.gmra.mxu0 %v2491
    %v2542 = vpop.f32.mrf.mxu0
    %v2543 = vadd.f32 %v2530, %v2542
    %v2544 = vpop.f32.mrf.mxu0
    %2545 = vdwg.mxu0
    %2546 = vmatpush.bf16.msra.mxu0 %v1188
    %2547 = vmatpush.bf16.msra.mxu0 %v1180
    %2548 = vmatpush.bf16.msra.mxu0 %v1172
    %2549 = vmatpush.bf16.msra.mxu0 %v1164
    %2550 = vmatpush.bf16.msra.mxu0 %v1156
    %2551 = vmatpush.bf16.msra.mxu0 %v1148
    %2552 = vmatpush.bf16.msra.mxu0 %v1140
    %2553 = vmatpush.bf16.msra.mxu0 %v1132
    %2554 = vmatmul.bf16.gmra.mxu0 %v2490
    %v2555 = vpop.f32.mrf.mxu0
    %v2556 = vadd.f32 0.0, %v2555
    %v2557 = vpop.f32.mrf.mxu0
    %2558 = vdwg.mxu0
    %2559 = vmatpush.bf16.msra.mxu0 %v1252
    %2560 = vmatpush.bf16.msra.mxu0 %v1244
    %2561 = vmatpush.bf16.msra.mxu0 %v1236
    %2562 = vmatpush.bf16.msra.mxu0 %v1228
    %2563 = vmatpush.bf16.msra.mxu0 %v1220
    %2564 = vmatpush.bf16.msra.mxu0 %v1212
    %2565 = vmatpush.bf16.msra.mxu0 %v1204
    %2566 = vmatpush.bf16.msra.mxu0 %v1196
    %2567 = vmatmul.bf16.gmra.mxu0 %v2491
    %v2568 = vpop.f32.mrf.mxu0
    %v2569 = vadd.f32 %v2556, %v2568
    %v2570 = vpop.f32.mrf.mxu0
    %2571 = vdwg.mxu0
    %2572 = vmatpush.bf16.msra.mxu0 %v1189
    %2573 = vmatpush.bf16.msra.mxu0 %v1181
    %2574 = vmatpush.bf16.msra.mxu0 %v1173
    %2575 = vmatpush.bf16.msra.mxu0 %v1165
    %2576 = vmatpush.bf16.msra.mxu0 %v1157
    %2577 = vmatpush.bf16.msra.mxu0 %v1149
    %2578 = vmatpush.bf16.msra.mxu0 %v1141
    %2579 = vmatpush.bf16.msra.mxu0 %v1133
    %2580 = vmatmul.bf16.gmra.mxu0 %v2490
    %v2581 = vpop.f32.mrf.mxu0
    %v2582 = vadd.f32 0.0, %v2581
    %v2583 = vpop.f32.mrf.mxu0
    %2584 = vdwg.mxu0
    %2585 = vmatpush.bf16.msra.mxu0 %v1253
    %2586 = vmatpush.bf16.msra.mxu0 %v1245
    %2587 = vmatpush.bf16.msra.mxu0 %v1237
    %2588 = vmatpush.bf16.msra.mxu0 %v1229
    %2589 = vmatpush.bf16.msra.mxu0 %v1221
    %2590 = vmatpush.bf16.msra.mxu0 %v1213
    %2591 = vmatpush.bf16.msra.mxu0 %v1205
    %2592 = vmatpush.bf16.msra.mxu0 %v1197
    %2593 = vmatmul.bf16.gmra.mxu0 %v2491
    %v2594 = vpop.f32.mrf.mxu0
    %v2595 = vadd.f32 %v2582, %v2594
    %v2596 = vpop.f32.mrf.mxu0
    %2597 = vdwg.mxu0
    %2598 = vmatpush.bf16.msra.mxu0 %v1190
    %2599 = vmatpush.bf16.msra.mxu0 %v1182
    %2600 = vmatpush.bf16.msra.mxu0 %v1174
    %2601 = vmatpush.bf16.msra.mxu0 %v1166
    %2602 = vmatpush.bf16.msra.mxu0 %v1158
    %2603 = vmatpush.bf16.msra.mxu0 %v1150
    %2604 = vmatpush.bf16.msra.mxu0 %v1142
    %2605 = vmatpush.bf16.msra.mxu0 %v1134
    %2606 = vmatmul.bf16.gmra.mxu0 %v2490
    %v2607 = vpop.f32.mrf.mxu0
    %v2608 = vadd.f32 0.0, %v2607
    %v2609 = vpop.f32.mrf.mxu0
    %2610 = vdwg.mxu0
    %2611 = vmatpush.bf16.msra.mxu0 %v1254
    %2612 = vmatpush.bf16.msra.mxu0 %v1246
    %2613 = vmatpush.bf16.msra.mxu0 %v1238
    %2614 = vmatpush.bf16.msra.mxu0 %v1230
    %2615 = vmatpush.bf16.msra.mxu0 %v1222
    %2616 = vmatpush.bf16.msra.mxu0 %v1214
    %2617 = vmatpush.bf16.msra.mxu0 %v1206
    %2618 = vmatpush.bf16.msra.mxu0 %v1198
    %2619 = vmatmul.bf16.gmra.mxu0 %v2491
    %v2620 = vpop.f32.mrf.mxu0
    %v2621 = vadd.f32 %v2608, %v2620
    %v2622 = vpop.f32.mrf.mxu0
    %2623 = vdwg.mxu0
    %2624 = vmatpush.bf16.msra.mxu0 %v1191
    %2625 = vmatpush.bf16.msra.mxu0 %v1183
    %2626 = vmatpush.bf16.msra.mxu0 %v1175
    %2627 = vmatpush.bf16.msra.mxu0 %v1167
    %2628 = vmatpush.bf16.msra.mxu0 %v1159
    %2629 = vmatpush.bf16.msra.mxu0 %v1151
    %2630 = vmatpush.bf16.msra.mxu0 %v1143
    %2631 = vmatpush.bf16.msra.mxu0 %v1135
    %2632 = vmatmul.bf16.gmra.mxu0 %v2490
    %v2633 = vpop.f32.mrf.mxu0
    %v2634 = vadd.f32 0.0, %v2633
    %v2635 = vpop.f32.mrf.mxu0
    %2636 = vdwg.mxu0
    %2637 = vmatpush.bf16.msra.mxu0 %v1255
    %2638 = vmatpush.bf16.msra.mxu0 %v1247
    %2639 = vmatpush.bf16.msra.mxu0 %v1239
    %2640 = vmatpush.bf16.msra.mxu0 %v1231
    %2641 = vmatpush.bf16.msra.mxu0 %v1223
    %2642 = vmatpush.bf16.msra.mxu0 %v1215
    %2643 = vmatpush.bf16.msra.mxu0 %v1207
    %2644 = vmatpush.bf16.msra.mxu0 %v1199
    %2645 = vmatmul.bf16.gmra.mxu0 %v2491
    %v2646 = vpop.f32.mrf.mxu0
    %v2647 = vadd.f32 %v2634, %v2646
    %v2648 = vpop.f32.mrf.mxu0
    %2649 = vdwg.mxu0
    %2650 = vmatpush.bf16.msra.mxu0 %v1192
    %2651 = vmatpush.bf16.msra.mxu0 %v1184
    %2652 = vmatpush.bf16.msra.mxu0 %v1176
    %2653 = vmatpush.bf16.msra.mxu0 %v1168
    %2654 = vmatpush.bf16.msra.mxu0 %v1160
    %2655 = vmatpush.bf16.msra.mxu0 %v1152
    %2656 = vmatpush.bf16.msra.mxu0 %v1144
    %2657 = vmatpush.bf16.msra.mxu0 %v1136
    %2658 = vmatmul.bf16.gmra.mxu0 %v2490
    %v2659 = vpop.f32.mrf.mxu0
    %v2660 = vadd.f32 0.0, %v2659
    %v2661 = vpop.f32.mrf.mxu0
    %2662 = vdwg.mxu0
    %2663 = vmatpush.bf16.msra.mxu0 %v1256
    %2664 = vmatpush.bf16.msra.mxu0 %v1248
    %2665 = vmatpush.bf16.msra.mxu0 %v1240
    %2666 = vmatpush.bf16.msra.mxu0 %v1232
    %2667 = vmatpush.bf16.msra.mxu0 %v1224
    %2668 = vmatpush.bf16.msra.mxu0 %v1216
    %2669 = vmatpush.bf16.msra.mxu0 %v1208
    %2670 = vmatpush.bf16.msra.mxu0 %v1200
    %2671 = vmatmul.bf16.gmra.mxu0 %v2491
    %v2672 = vpop.f32.mrf.mxu0
    %v2673 = vadd.f32 %v2660, %v2672
    %v2674 = vpop.f32.mrf.mxu0
    %2675 = vdwg.mxu0
    %2676 = vmatpush.bf16.msra.mxu0 %v1193
    %2677 = vmatpush.bf16.msra.mxu0 %v1185
    %2678 = vmatpush.bf16.msra.mxu0 %v1177
    %2679 = vmatpush.bf16.msra.mxu0 %v1169
    %2680 = vmatpush.bf16.msra.mxu0 %v1161
    %2681 = vmatpush.bf16.msra.mxu0 %v1153
    %2682 = vmatpush.bf16.msra.mxu0 %v1145
    %2683 = vmatpush.bf16.msra.mxu0 %v1137
    %2684 = vmatmul.bf16.gmra.mxu0 %v2490
    %v2685 = vpop.f32.mrf.mxu0
    %v2686 = vadd.f32 0.0, %v2685
    %v2687 = vpop.f32.mrf.mxu0
    %2688 = vdwg.mxu0
    %2689 = vmatpush.bf16.msra.mxu0 %v1257
    %2690 = vmatpush.bf16.msra.mxu0 %v1249
    %2691 = vmatpush.bf16.msra.mxu0 %v1241
    %2692 = vmatpush.bf16.msra.mxu0 %v1233
    %2693 = vmatpush.bf16.msra.mxu0 %v1225
    %2694 = vmatpush.bf16.msra.mxu0 %v1217
    %2695 = vmatpush.bf16.msra.mxu0 %v1209
    %2696 = vmatpush.bf16.msra.mxu0 %v1201
    %2697 = vmatmul.bf16.gmra.mxu0 %v2491
    %v2698 = vpop.f32.mrf.mxu0
    %v2699 = vadd.f32 %v2686, %v2698
    %v2700 = vpop.f32.mrf.mxu0
    %2701 = vdwg.mxu0
    %v2710 = vrot.slane %v2517, 6
    %v2711 = vrot.slane %v2543, 6
    %v2712 = vrot.slane %v2569, 6
    %v2713 = vrot.slane %v2595, 6
    %v2714 = vrot.slane %v2621, 6
    %v2715 = vrot.slane %v2647, 6
    %v2716 = vrot.slane %v2673, 6
    %v2717 = vrot.slane %v2699, 6
    %v2718 = vrot.slane %v2517, 7
    %v2719 = vrot.slane %v2543, 7
    %v2720 = vrot.slane %v2569, 7
    %v2721 = vrot.slane %v2595, 7
    %v2722 = vrot.slane %v2621, 7
    %v2723 = vrot.slane %v2647, 7
    %v2724 = vrot.slane %v2673, 7
    %v2725 = vrot.slane %v2699, 7
    %v2742 = vadd.f32 %v516, %v2710
    %v2743 = vadd.f32 %v530, %v2711
    %v2744 = vadd.f32 %v544, %v2712
    %v2745 = vadd.f32 %v558, %v2713
    %v2746 = vadd.f32 %v572, %v2714
    %v2747 = vadd.f32 %v586, %v2715
    %v2748 = vadd.f32 %v600, %v2716
    %v2749 = vadd.f32 %v614, %v2717
    %v2750 = vadd.f32 %v518, %v2718
    %v2751 = vadd.f32 %v532, %v2719
    %v2752 = vadd.f32 %v546, %v2720
    %v2753 = vadd.f32 %v560, %v2721
    %v2754 = vadd.f32 %v574, %v2722
    %v2755 = vadd.f32 %v588, %v2723
    %v2756 = vadd.f32 %v602, %v2724
    %v2757 = vadd.f32 %v616, %v2725
    %v2758 = vsub.f32 0.0, %v2742
    %v2759 = vsub.f32 0.0, %v2743
    %v2760 = vsub.f32 0.0, %v2750
    %v2761 = vsub.f32 0.0, %v2751
    %v2762 = vmul.f32 %v2758, 1.442695
    %v2763 = vpow.pop %v2762
    %v2764 = vmul.f32 %v2759, 1.442695
    %v2765 = vpow.pop %v2764
    %v2766 = vmul.f32 %v2760, 1.442695
    %v2767 = vpow.pop %v2766
    %v2768 = vmul.f32 %v2761, 1.442695
    %v2769 = vpow.pop %v2768
    %v2770 = vadd.f32 %v2763, 1.0
    %v2771 = vadd.f32 %v2765, 1.0
    %v2772 = vadd.f32 %v2767, 1.0
    %v2773 = vadd.f32 %v2769, 1.0
    %v2774 = vrcp.pop %v2770
    %v2775 = vmul.f32 %v2770, %v2774
    %v2776 = vsub.f32 1.0, %v2775
    %v2777 = vmul.f32 %v2774, %v2776
    %v2778 = vadd.f32 %v2774, %v2777
    %vm2779 = vweird.f32 %v2770
    %vm2780 = vweird.f32 %v2774
    %vm2781 = vmor %vm2779, %vm2780
    %v2782 = vsel %vm2781, %v2774, %v2778
    %v2783 = vand.u32 2147483647, %v2770
    %vm2784 = vcmp.eq.f32.partialorder %v2783, 8.507059e+37
    %v2785 = vand.u32 %v2770, 2147483648
    %v2786 = vor.u32 1.1754944e-38, %v2785
    %v2787 = vsel %vm2784, %v2786, %v2782
    %v2788 = vmul.f32 1.0, %v2787
    %v2789 = vrcp.pop %v2771
    %v2790 = vmul.f32 %v2771, %v2789
    %v2791 = vsub.f32 1.0, %v2790
    %v2792 = vmul.f32 %v2789, %v2791
    %v2793 = vadd.f32 %v2789, %v2792
    %vm2794 = vweird.f32 %v2771
    %vm2795 = vweird.f32 %v2789
    %vm2796 = vmor %vm2794, %vm2795
    %v2797 = vsel %vm2796, %v2789, %v2793
    %v2798 = vand.u32 2147483647, %v2771
    %vm2799 = vcmp.eq.f32.partialorder %v2798, 8.507059e+37
    %v2800 = vand.u32 %v2771, 2147483648
    %v2801 = vor.u32 1.1754944e-38, %v2800
    %v2802 = vsel %vm2799, %v2801, %v2797
    %v2803 = vmul.f32 1.0, %v2802
    %v2804 = vrcp.pop %v2772
    %v2805 = vmul.f32 %v2772, %v2804
    %v2806 = vsub.f32 1.0, %v2805
    %v2807 = vmul.f32 %v2804, %v2806
    %v2808 = vadd.f32 %v2804, %v2807
    %vm2809 = vweird.f32 %v2772
    %vm2810 = vweird.f32 %v2804
    %vm2811 = vmor %vm2809, %vm2810
    %v2812 = vsel %vm2811, %v2804, %v2808
    %v2813 = vand.u32 2147483647, %v2772
    %vm2814 = vcmp.eq.f32.partialorder %v2813, 8.507059e+37
    %v2815 = vand.u32 %v2772, 2147483648
    %v2816 = vor.u32 1.1754944e-38, %v2815
    %v2817 = vsel %vm2814, %v2816, %v2812
    %v2818 = vmul.f32 1.0, %v2817
    %v2819 = vrcp.pop %v2773
    %v2820 = vmul.f32 %v2773, %v2819
    %v2821 = vsub.f32 1.0, %v2820
    %v2822 = vmul.f32 %v2819, %v2821
    %v2823 = vadd.f32 %v2819, %v2822
    %vm2824 = vweird.f32 %v2773
    %vm2825 = vweird.f32 %v2819
    %vm2826 = vmor %vm2824, %vm2825
    %v2827 = vsel %vm2826, %v2819, %v2823
    %v2828 = vand.u32 2147483647, %v2773
    %vm2829 = vcmp.eq.f32.partialorder %v2828, 8.507059e+37
    %v2830 = vand.u32 %v2773, 2147483648
    %v2831 = vor.u32 1.1754944e-38, %v2830
    %v2832 = vsel %vm2829, %v2831, %v2827
    %v2833 = vmul.f32 1.0, %v2832
    %v2834 = vsub.f32 0.0, %v2744
    %v2835 = vsub.f32 0.0, %v2745
    %v2836 = vsub.f32 0.0, %v2752
    %v2837 = vsub.f32 0.0, %v2753
    %v2838 = vmul.f32 %v2834, 1.442695
    %v2839 = vpow.pop %v2838
    %v2840 = vmul.f32 %v2835, 1.442695
    %v2841 = vpow.pop %v2840
    %v2842 = vmul.f32 %v2836, 1.442695
    %v2843 = vpow.pop %v2842
    %v2844 = vmul.f32 %v2837, 1.442695
    %v2845 = vpow.pop %v2844
    %v2846 = vadd.f32 %v2839, 1.0
    %v2847 = vadd.f32 %v2841, 1.0
    %v2848 = vadd.f32 %v2843, 1.0
    %v2849 = vadd.f32 %v2845, 1.0
    %v2850 = vrcp.pop %v2846
    %v2851 = vmul.f32 %v2846, %v2850
    %v2852 = vsub.f32 1.0, %v2851
    %v2853 = vmul.f32 %v2850, %v2852
    %v2854 = vadd.f32 %v2850, %v2853
    %vm2855 = vweird.f32 %v2846
    %vm2856 = vweird.f32 %v2850
    %vm2857 = vmor %vm2855, %vm2856
    %v2858 = vsel %vm2857, %v2850, %v2854
    %v2859 = vand.u32 2147483647, %v2846
    %vm2860 = vcmp.eq.f32.partialorder %v2859, 8.507059e+37
    %v2861 = vand.u32 %v2846, 2147483648
    %v2862 = vor.u32 1.1754944e-38, %v2861
    %v2863 = vsel %vm2860, %v2862, %v2858
    %v2864 = vmul.f32 1.0, %v2863
    %v2865 = vrcp.pop %v2847
    %v2866 = vmul.f32 %v2847, %v2865
    %v2867 = vsub.f32 1.0, %v2866
    %v2868 = vmul.f32 %v2865, %v2867
    %v2869 = vadd.f32 %v2865, %v2868
    %vm2870 = vweird.f32 %v2847
    %vm2871 = vweird.f32 %v2865
    %vm2872 = vmor %vm2870, %vm2871
    %v2873 = vsel %vm2872, %v2865, %v2869
    %v2874 = vand.u32 2147483647, %v2847
    %vm2875 = vcmp.eq.f32.partialorder %v2874, 8.507059e+37
    %v2876 = vand.u32 %v2847, 2147483648
    %v2877 = vor.u32 1.1754944e-38, %v2876
    %v2878 = vsel %vm2875, %v2877, %v2873
    %v2879 = vmul.f32 1.0, %v2878
    %v2880 = vrcp.pop %v2848
    %v2881 = vmul.f32 %v2848, %v2880
    %v2882 = vsub.f32 1.0, %v2881
    %v2883 = vmul.f32 %v2880, %v2882
    %v2884 = vadd.f32 %v2880, %v2883
    %vm2885 = vweird.f32 %v2848
    %vm2886 = vweird.f32 %v2880
    %vm2887 = vmor %vm2885, %vm2886
    %v2888 = vsel %vm2887, %v2880, %v2884
    %v2889 = vand.u32 2147483647, %v2848
    %vm2890 = vcmp.eq.f32.partialorder %v2889, 8.507059e+37
    %v2891 = vand.u32 %v2848, 2147483648
    %v2892 = vor.u32 1.1754944e-38, %v2891
    %v2893 = vsel %vm2890, %v2892, %v2888
    %v2894 = vmul.f32 1.0, %v2893
    %v2895 = vrcp.pop %v2849
    %v2896 = vmul.f32 %v2849, %v2895
    %v2897 = vsub.f32 1.0, %v2896
    %v2898 = vmul.f32 %v2895, %v2897
    %v2899 = vadd.f32 %v2895, %v2898
    %vm2900 = vweird.f32 %v2849
    %vm2901 = vweird.f32 %v2895
    %vm2902 = vmor %vm2900, %vm2901
    %v2903 = vsel %vm2902, %v2895, %v2899
    %v2904 = vand.u32 2147483647, %v2849
    %vm2905 = vcmp.eq.f32.partialorder %v2904, 8.507059e+37
    %v2906 = vand.u32 %v2849, 2147483648
    %v2907 = vor.u32 1.1754944e-38, %v2906
    %v2908 = vsel %vm2905, %v2907, %v2903
    %v2909 = vmul.f32 1.0, %v2908
    %v2910 = vtanh.pop %v2746
    %v2911 = vtanh.pop %v2747
    %v2912 = vtanh.pop %v2754
    %v2913 = vtanh.pop %v2755
    %v2914 = vsub.f32 0.0, %v2748
    %v2915 = vsub.f32 0.0, %v2749
    %v2916 = vsub.f32 0.0, %v2756
    %v2917 = vsub.f32 0.0, %v2757
    %v2918 = vmul.f32 %v2914, 1.442695
    %v2919 = vpow.pop %v2918
    %v2920 = vmul.f32 %v2915, 1.442695
    %v2921 = vpow.pop %v2920
    %v2922 = vmul.f32 %v2916, 1.442695
    %v2923 = vpow.pop %v2922
    %v2924 = vmul.f32 %v2917, 1.442695
    %v2925 = vpow.pop %v2924
    %v2926 = vadd.f32 %v2919, 1.0
    %v2927 = vadd.f32 %v2921, 1.0
    %v2928 = vadd.f32 %v2923, 1.0
    %v2929 = vadd.f32 %v2925, 1.0
    %v2930 = vrcp.pop %v2926
    %v2931 = vmul.f32 %v2926, %v2930
    %v2932 = vsub.f32 1.0, %v2931
    %v2933 = vmul.f32 %v2930, %v2932
    %v2934 = vadd.f32 %v2930, %v2933
    %vm2935 = vweird.f32 %v2926
    %vm2936 = vweird.f32 %v2930
    %vm2937 = vmor %vm2935, %vm2936
    %v2938 = vsel %vm2937, %v2930, %v2934
    %v2939 = vand.u32 2147483647, %v2926
    %vm2940 = vcmp.eq.f32.partialorder %v2939, 8.507059e+37
    %v2941 = vand.u32 %v2926, 2147483648
    %v2942 = vor.u32 1.1754944e-38, %v2941
    %v2943 = vsel %vm2940, %v2942, %v2938
    %v2944 = vmul.f32 1.0, %v2943
    %v2945 = vrcp.pop %v2927
    %v2946 = vmul.f32 %v2927, %v2945
    %v2947 = vsub.f32 1.0, %v2946
    %v2948 = vmul.f32 %v2945, %v2947
    %v2949 = vadd.f32 %v2945, %v2948
    %vm2950 = vweird.f32 %v2927
    %vm2951 = vweird.f32 %v2945
    %vm2952 = vmor %vm2950, %vm2951
    %v2953 = vsel %vm2952, %v2945, %v2949
    %v2954 = vand.u32 2147483647, %v2927
    %vm2955 = vcmp.eq.f32.partialorder %v2954, 8.507059e+37
    %v2956 = vand.u32 %v2927, 2147483648
    %v2957 = vor.u32 1.1754944e-38, %v2956
    %v2958 = vsel %vm2955, %v2957, %v2953
    %v2959 = vmul.f32 1.0, %v2958
    %v2960 = vrcp.pop %v2928
    %v2961 = vmul.f32 %v2928, %v2960
    %v2962 = vsub.f32 1.0, %v2961
    %v2963 = vmul.f32 %v2960, %v2962
    %v2964 = vadd.f32 %v2960, %v2963
    %vm2965 = vweird.f32 %v2928
    %vm2966 = vweird.f32 %v2960
    %vm2967 = vmor %vm2965, %vm2966
    %v2968 = vsel %vm2967, %v2960, %v2964
    %v2969 = vand.u32 2147483647, %v2928
    %vm2970 = vcmp.eq.f32.partialorder %v2969, 8.507059e+37
    %v2971 = vand.u32 %v2928, 2147483648
    %v2972 = vor.u32 1.1754944e-38, %v2971
    %v2973 = vsel %vm2970, %v2972, %v2968
    %v2974 = vmul.f32 1.0, %v2973
    %v2975 = vrcp.pop %v2929
    %v2976 = vmul.f32 %v2929, %v2975
    %v2977 = vsub.f32 1.0, %v2976
    %v2978 = vmul.f32 %v2975, %v2977
    %v2979 = vadd.f32 %v2975, %v2978
    %vm2980 = vweird.f32 %v2929
    %vm2981 = vweird.f32 %v2975
    %vm2982 = vmor %vm2980, %vm2981
    %v2983 = vsel %vm2982, %v2975, %v2979
    %v2984 = vand.u32 2147483647, %v2929
    %vm2985 = vcmp.eq.f32.partialorder %v2984, 8.507059e+37
    %v2986 = vand.u32 %v2929, 2147483648
    %v2987 = vor.u32 1.1754944e-38, %v2986
    %v2988 = vsel %vm2985, %v2987, %v2983
    %v2989 = vmul.f32 1.0, %v2988
    %v2994 = vrot.slane %v2443, 7
    %v2995 = vrot.slane %v2444, 7
    %v2996 = vrot.slane %v2445, 7
    %v2997 = vrot.slane %v2446, 7
    %v3002 = vmul.f32 %v2864, %v2994
    %v3003 = vmul.f32 %v2879, %v2995
    %v3004 = vmul.f32 %v2894, %v2996
    %v3005 = vmul.f32 %v2909, %v2997
    %v3006 = vmul.f32 %v2788, %v2910
    %v3007 = vmul.f32 %v2803, %v2911
    %v3008 = vmul.f32 %v2818, %v2912
    %v3009 = vmul.f32 %v2833, %v2913
    %v3010 = vadd.f32 %v3002, %v3006
    %v3011 = vadd.f32 %v3003, %v3007
    %v3012 = vadd.f32 %v3004, %v3008
    %v3013 = vadd.f32 %v3005, %v3009
    %v3014 = vtanh.pop %v3010
    %v3015 = vtanh.pop %v3011
    %v3016 = vtanh.pop %v3012
    %v3017 = vtanh.pop %v3013
    %v3018 = vmul.f32 %v2944, %v3014
    %v3019 = vmul.f32 %v2959, %v3015
    %v3020 = vmul.f32 %v2974, %v3016
    %v3021 = vmul.f32 %v2989, %v3017
    %3026 = vst [vmem:[#allocation1] sm:$0xff] %v3018
    %3027 = vst [vmem:[#allocation1 + $0x9] sm:$0xff] %v3019
    %s3028 = scalar_lea.vmem [#allocation1], 2
    %v3029 = vld [vmem:[%s3028] ss:$9 sm:$0xff]
    %3030 = vst [vmem:[#allocation1] sm:$0xff] %v3020
    %3031 = vst [vmem:[#allocation1 + $0x9] sm:$0xff] %v3021
    %v3032 = vld [vmem:[%s3028] ss:$9 sm:$0xff]
    %s3035 = scalar_lea.vmem [#allocation2], 2
    %3036 = vst.msk [vmem:[%s3035] ss:$8 sm:$0x3] %vm1908, %v3029
    %3037 = vst.msk [vmem:[%s3035] ss:$8 sm:$0x0] %vm1908, %v3029
    %s3038 = scalar_lea.vmem [#allocation2], 18
    %3039 = vst.msk [vmem:[%s3038] ss:$8 sm:$0x3] %vm1908, %v3032
    %3040 = vst.msk [vmem:[%s3038] ss:$8 sm:$0x0] %vm1908, %v3032
    %v3041 = vpack.c.bf16 %v3018, %v3018
    %v3042 = vpack.c.bf16 %v3019, %v3019
    %v3043 = vpack.c.bf16 %v3020, %v3020
    %v3044 = vpack.c.bf16 %v3021, %v3021
    %v3049 = vunpack.c.l.b16 %v3041
    %v3050 = vunpack.c.l.b16 %v3042
    %v3051 = vunpack.c.l.b16 %v3043
    %v3052 = vunpack.c.l.b16 %v3044
    %v3053 = vrot.slane %v3049, 2
    %v3054 = vrot.slane %v3051, 1
    %v3055 = vsel %vm1927, %v3054, %v3053
    %v3056 = vrot.slane %v3050, 2
    %v3057 = vrot.slane %v3052, 1
    %v3058 = vsel %vm1927, %v3057, %v3056
    %v3059 = vpack.c.b16 %v3055, %v3055
    %v3060 = vpack.c.b16 %v3058, %v3058
    %3063 = vmatpush.bf16.msra.mxu0 %v1186
    %3064 = vmatpush.bf16.msra.mxu0 %v1178
    %3065 = vmatpush.bf16.msra.mxu0 %v1170
    %3066 = vmatpush.bf16.msra.mxu0 %v1162
    %3067 = vmatpush.bf16.msra.mxu0 %v1154
    %3068 = vmatpush.bf16.msra.mxu0 %v1146
    %3069 = vmatpush.bf16.msra.mxu0 %v1138
    %3070 = vmatpush.bf16.msra.mxu0 %v1130
    %3071 = vmatmul.bf16.gmra.mxu0 %v3059
    %v3072 = vpop.f32.mrf.mxu0
    %v3073 = vadd.f32 0.0, %v3072
    %v3074 = vpop.f32.mrf.mxu0
    %3075 = vdwg.mxu0
    %3076 = vmatpush.bf16.msra.mxu0 %v1250
    %3077 = vmatpush.bf16.msra.mxu0 %v1242
    %3078 = vmatpush.bf16.msra.mxu0 %v1234
    %3079 = vmatpush.bf16.msra.mxu0 %v1226
    %3080 = vmatpush.bf16.msra.mxu0 %v1218
    %3081 = vmatpush.bf16.msra.mxu0 %v1210
    %3082 = vmatpush.bf16.msra.mxu0 %v1202
    %3083 = vmatpush.bf16.msra.mxu0 %v1194
    %3084 = vmatmul.bf16.gmra.mxu0 %v3060
    %v3085 = vpop.f32.mrf.mxu0
    %v3086 = vadd.f32 %v3073, %v3085
    %v3087 = vpop.f32.mrf.mxu0
    %3088 = vdwg.mxu0
    %3089 = vmatpush.bf16.msra.mxu0 %v1187
    %3090 = vmatpush.bf16.msra.mxu0 %v1179
    %3091 = vmatpush.bf16.msra.mxu0 %v1171
    %3092 = vmatpush.bf16.msra.mxu0 %v1163
    %3093 = vmatpush.bf16.msra.mxu0 %v1155
    %3094 = vmatpush.bf16.msra.mxu0 %v1147
    %3095 = vmatpush.bf16.msra.mxu0 %v1139
    %3096 = vmatpush.bf16.msra.mxu0 %v1131
    %3097 = vmatmul.bf16.gmra.mxu0 %v3059
    %v3098 = vpop.f32.mrf.mxu0
    %v3099 = vadd.f32 0.0, %v3098
    %v3100 = vpop.f32.mrf.mxu0
    %3101 = vdwg.mxu0
    %3102 = vmatpush.bf16.msra.mxu0 %v1251
    %3103 = vmatpush.bf16.msra.mxu0 %v1243
    %3104 = vmatpush.bf16.msra.mxu0 %v1235
    %3105 = vmatpush.bf16.msra.mxu0 %v1227
    %3106 = vmatpush.bf16.msra.mxu0 %v1219
    %3107 = vmatpush.bf16.msra.mxu0 %v1211
    %3108 = vmatpush.bf16.msra.mxu0 %v1203
    %3109 = vmatpush.bf16.msra.mxu0 %v1195
    %3110 = vmatmul.bf16.gmra.mxu0 %v3060
    %v3111 = vpop.f32.mrf.mxu0
    %v3112 = vadd.f32 %v3099, %v3111
    %v3113 = vpop.f32.mrf.mxu0
    %3114 = vdwg.mxu0
    %3115 = vmatpush.bf16.msra.mxu0 %v1188
    %3116 = vmatpush.bf16.msra.mxu0 %v1180
    %3117 = vmatpush.bf16.msra.mxu0 %v1172
    %3118 = vmatpush.bf16.msra.mxu0 %v1164
    %3119 = vmatpush.bf16.msra.mxu0 %v1156
    %3120 = vmatpush.bf16.msra.mxu0 %v1148
    %3121 = vmatpush.bf16.msra.mxu0 %v1140
    %3122 = vmatpush.bf16.msra.mxu0 %v1132
    %3123 = vmatmul.bf16.gmra.mxu0 %v3059
    %v3124 = vpop.f32.mrf.mxu0
    %v3125 = vadd.f32 0.0, %v3124
    %v3126 = vpop.f32.mrf.mxu0
    %3127 = vdwg.mxu0
    %3128 = vmatpush.bf16.msra.mxu0 %v1252
    %3129 = vmatpush.bf16.msra.mxu0 %v1244
    %3130 = vmatpush.bf16.msra.mxu0 %v1236
    %3131 = vmatpush.bf16.msra.mxu0 %v1228
    %3132 = vmatpush.bf16.msra.mxu0 %v1220
    %3133 = vmatpush.bf16.msra.mxu0 %v1212
    %3134 = vmatpush.bf16.msra.mxu0 %v1204
    %3135 = vmatpush.bf16.msra.mxu0 %v1196
    %3136 = vmatmul.bf16.gmra.mxu0 %v3060
    %v3137 = vpop.f32.mrf.mxu0
    %v3138 = vadd.f32 %v3125, %v3137
    %v3139 = vpop.f32.mrf.mxu0
    %3140 = vdwg.mxu0
    %3141 = vmatpush.bf16.msra.mxu0 %v1189
    %3142 = vmatpush.bf16.msra.mxu0 %v1181
    %3143 = vmatpush.bf16.msra.mxu0 %v1173
    %3144 = vmatpush.bf16.msra.mxu0 %v1165
    %3145 = vmatpush.bf16.msra.mxu0 %v1157
    %3146 = vmatpush.bf16.msra.mxu0 %v1149
    %3147 = vmatpush.bf16.msra.mxu0 %v1141
    %3148 = vmatpush.bf16.msra.mxu0 %v1133
    %3149 = vmatmul.bf16.gmra.mxu0 %v3059
    %v3150 = vpop.f32.mrf.mxu0
    %v3151 = vadd.f32 0.0, %v3150
    %v3152 = vpop.f32.mrf.mxu0
    %3153 = vdwg.mxu0
    %3154 = vmatpush.bf16.msra.mxu0 %v1253
    %3155 = vmatpush.bf16.msra.mxu0 %v1245
    %3156 = vmatpush.bf16.msra.mxu0 %v1237
    %3157 = vmatpush.bf16.msra.mxu0 %v1229
    %3158 = vmatpush.bf16.msra.mxu0 %v1221
    %3159 = vmatpush.bf16.msra.mxu0 %v1213
    %3160 = vmatpush.bf16.msra.mxu0 %v1205
    %3161 = vmatpush.bf16.msra.mxu0 %v1197
    %3162 = vmatmul.bf16.gmra.mxu0 %v3060
    %v3163 = vpop.f32.mrf.mxu0
    %v3164 = vadd.f32 %v3151, %v3163
    %v3165 = vpop.f32.mrf.mxu0
    %3166 = vdwg.mxu0
    %3167 = vmatpush.bf16.msra.mxu0 %v1190
    %3168 = vmatpush.bf16.msra.mxu0 %v1182
    %3169 = vmatpush.bf16.msra.mxu0 %v1174
    %3170 = vmatpush.bf16.msra.mxu0 %v1166
    %3171 = vmatpush.bf16.msra.mxu0 %v1158
    %3172 = vmatpush.bf16.msra.mxu0 %v1150
    %3173 = vmatpush.bf16.msra.mxu0 %v1142
    %3174 = vmatpush.bf16.msra.mxu0 %v1134
    %3175 = vmatmul.bf16.gmra.mxu0 %v3059
    %v3176 = vpop.f32.mrf.mxu0
    %v3177 = vadd.f32 0.0, %v3176
    %v3178 = vpop.f32.mrf.mxu0
    %3179 = vdwg.mxu0
    %3180 = vmatpush.bf16.msra.mxu0 %v1254
    %3181 = vmatpush.bf16.msra.mxu0 %v1246
    %3182 = vmatpush.bf16.msra.mxu0 %v1238
    %3183 = vmatpush.bf16.msra.mxu0 %v1230
    %3184 = vmatpush.bf16.msra.mxu0 %v1222
    %3185 = vmatpush.bf16.msra.mxu0 %v1214
    %3186 = vmatpush.bf16.msra.mxu0 %v1206
    %3187 = vmatpush.bf16.msra.mxu0 %v1198
    %3188 = vmatmul.bf16.gmra.mxu0 %v3060
    %v3189 = vpop.f32.mrf.mxu0
    %v3190 = vadd.f32 %v3177, %v3189
    %v3191 = vpop.f32.mrf.mxu0
    %3192 = vdwg.mxu0
    %3193 = vmatpush.bf16.msra.mxu0 %v1191
    %3194 = vmatpush.bf16.msra.mxu0 %v1183
    %3195 = vmatpush.bf16.msra.mxu0 %v1175
    %3196 = vmatpush.bf16.msra.mxu0 %v1167
    %3197 = vmatpush.bf16.msra.mxu0 %v1159
    %3198 = vmatpush.bf16.msra.mxu0 %v1151
    %3199 = vmatpush.bf16.msra.mxu0 %v1143
    %3200 = vmatpush.bf16.msra.mxu0 %v1135
    %3201 = vmatmul.bf16.gmra.mxu0 %v3059
    %v3202 = vpop.f32.mrf.mxu0
    %v3203 = vadd.f32 0.0, %v3202
    %v3204 = vpop.f32.mrf.mxu0
    %3205 = vdwg.mxu0
    %3206 = vmatpush.bf16.msra.mxu0 %v1255
    %3207 = vmatpush.bf16.msra.mxu0 %v1247
    %3208 = vmatpush.bf16.msra.mxu0 %v1239
    %3209 = vmatpush.bf16.msra.mxu0 %v1231
    %3210 = vmatpush.bf16.msra.mxu0 %v1223
    %3211 = vmatpush.bf16.msra.mxu0 %v1215
    %3212 = vmatpush.bf16.msra.mxu0 %v1207
    %3213 = vmatpush.bf16.msra.mxu0 %v1199
    %3214 = vmatmul.bf16.gmra.mxu0 %v3060
    %v3215 = vpop.f32.mrf.mxu0
    %v3216 = vadd.f32 %v3203, %v3215
    %v3217 = vpop.f32.mrf.mxu0
    %3218 = vdwg.mxu0
    %3219 = vmatpush.bf16.msra.mxu0 %v1192
    %3220 = vmatpush.bf16.msra.mxu0 %v1184
    %3221 = vmatpush.bf16.msra.mxu0 %v1176
    %3222 = vmatpush.bf16.msra.mxu0 %v1168
    %3223 = vmatpush.bf16.msra.mxu0 %v1160
    %3224 = vmatpush.bf16.msra.mxu0 %v1152
    %3225 = vmatpush.bf16.msra.mxu0 %v1144
    %3226 = vmatpush.bf16.msra.mxu0 %v1136
    %3227 = vmatmul.bf16.gmra.mxu0 %v3059
    %v3228 = vpop.f32.mrf.mxu0
    %v3229 = vadd.f32 0.0, %v3228
    %v3230 = vpop.f32.mrf.mxu0
    %3231 = vdwg.mxu0
    %3232 = vmatpush.bf16.msra.mxu0 %v1256
    %3233 = vmatpush.bf16.msra.mxu0 %v1248
    %3234 = vmatpush.bf16.msra.mxu0 %v1240
    %3235 = vmatpush.bf16.msra.mxu0 %v1232
    %3236 = vmatpush.bf16.msra.mxu0 %v1224
    %3237 = vmatpush.bf16.msra.mxu0 %v1216
    %3238 = vmatpush.bf16.msra.mxu0 %v1208
    %3239 = vmatpush.bf16.msra.mxu0 %v1200
    %3240 = vmatmul.bf16.gmra.mxu0 %v3060
    %v3241 = vpop.f32.mrf.mxu0
    %v3242 = vadd.f32 %v3229, %v3241
    %v3243 = vpop.f32.mrf.mxu0
    %3244 = vdwg.mxu0
    %3245 = vmatpush.bf16.msra.mxu0 %v1193
    %3246 = vmatpush.bf16.msra.mxu0 %v1185
    %3247 = vmatpush.bf16.msra.mxu0 %v1177
    %3248 = vmatpush.bf16.msra.mxu0 %v1169
    %3249 = vmatpush.bf16.msra.mxu0 %v1161
    %3250 = vmatpush.bf16.msra.mxu0 %v1153
    %3251 = vmatpush.bf16.msra.mxu0 %v1145
    %3252 = vmatpush.bf16.msra.mxu0 %v1137
    %3253 = vmatmul.bf16.gmra.mxu0 %v3059
    %v3254 = vpop.f32.mrf.mxu0
    %v3255 = vadd.f32 0.0, %v3254
    %v3256 = vpop.f32.mrf.mxu0
    %3257 = vdwg.mxu0
    %3258 = vmatpush.bf16.msra.mxu0 %v1257
    %3259 = vmatpush.bf16.msra.mxu0 %v1249
    %3260 = vmatpush.bf16.msra.mxu0 %v1241
    %3261 = vmatpush.bf16.msra.mxu0 %v1233
    %3262 = vmatpush.bf16.msra.mxu0 %v1225
    %3263 = vmatpush.bf16.msra.mxu0 %v1217
    %3264 = vmatpush.bf16.msra.mxu0 %v1209
    %3265 = vmatpush.bf16.msra.mxu0 %v1201
    %3266 = vmatmul.bf16.gmra.mxu0 %v3060
    %v3267 = vpop.f32.mrf.mxu0
    %v3268 = vadd.f32 %v3255, %v3267
    %v3269 = vpop.f32.mrf.mxu0
    %3270 = vdwg.mxu0
    %v3279 = vrot.slane %v3086, 5
    %v3280 = vrot.slane %v3112, 5
    %v3281 = vrot.slane %v3138, 5
    %v3282 = vrot.slane %v3164, 5
    %v3283 = vrot.slane %v3190, 5
    %v3284 = vrot.slane %v3216, 5
    %v3285 = vrot.slane %v3242, 5
    %v3286 = vrot.slane %v3268, 5
    %v3287 = vrot.slane %v3086, 6
    %v3288 = vrot.slane %v3112, 6
    %v3289 = vrot.slane %v3138, 6
    %v3290 = vrot.slane %v3164, 6
    %v3291 = vrot.slane %v3190, 6
    %v3292 = vrot.slane %v3216, 6
    %v3293 = vrot.slane %v3242, 6
    %v3294 = vrot.slane %v3268, 6
    %v3311 = vadd.f32 %v516, %v3279
    %v3312 = vadd.f32 %v530, %v3280
    %v3313 = vadd.f32 %v544, %v3281
    %v3314 = vadd.f32 %v558, %v3282
    %v3315 = vadd.f32 %v572, %v3283
    %v3316 = vadd.f32 %v586, %v3284
    %v3317 = vadd.f32 %v600, %v3285
    %v3318 = vadd.f32 %v614, %v3286
    %v3319 = vadd.f32 %v518, %v3287
    %v3320 = vadd.f32 %v532, %v3288
    %v3321 = vadd.f32 %v546, %v3289
    %v3322 = vadd.f32 %v560, %v3290
    %v3323 = vadd.f32 %v574, %v3291
    %v3324 = vadd.f32 %v588, %v3292
    %v3325 = vadd.f32 %v602, %v3293
    %v3326 = vadd.f32 %v616, %v3294
    %v3327 = vsub.f32 0.0, %v3311
    %v3328 = vsub.f32 0.0, %v3312
    %v3329 = vsub.f32 0.0, %v3319
    %v3330 = vsub.f32 0.0, %v3320
    %v3331 = vmul.f32 %v3327, 1.442695
    %v3332 = vpow.pop %v3331
    %v3333 = vmul.f32 %v3328, 1.442695
    %v3334 = vpow.pop %v3333
    %v3335 = vmul.f32 %v3329, 1.442695
    %v3336 = vpow.pop %v3335
    %v3337 = vmul.f32 %v3330, 1.442695
    %v3338 = vpow.pop %v3337
    %v3339 = vadd.f32 %v3332, 1.0
    %v3340 = vadd.f32 %v3334, 1.0
    %v3341 = vadd.f32 %v3336, 1.0
    %v3342 = vadd.f32 %v3338, 1.0
    %v3343 = vrcp.pop %v3339
    %v3344 = vmul.f32 %v3339, %v3343
    %v3345 = vsub.f32 1.0, %v3344
    %v3346 = vmul.f32 %v3343, %v3345
    %v3347 = vadd.f32 %v3343, %v3346
    %vm3348 = vweird.f32 %v3339
    %vm3349 = vweird.f32 %v3343
    %vm3350 = vmor %vm3348, %vm3349
    %v3351 = vsel %vm3350, %v3343, %v3347
    %v3352 = vand.u32 2147483647, %v3339
    %vm3353 = vcmp.eq.f32.partialorder %v3352, 8.507059e+37
    %v3354 = vand.u32 %v3339, 2147483648
    %v3355 = vor.u32 1.1754944e-38, %v3354
    %v3356 = vsel %vm3353, %v3355, %v3351
    %v3357 = vmul.f32 1.0, %v3356
    %v3358 = vrcp.pop %v3340
    %v3359 = vmul.f32 %v3340, %v3358
    %v3360 = vsub.f32 1.0, %v3359
    %v3361 = vmul.f32 %v3358, %v3360
    %v3362 = vadd.f32 %v3358, %v3361
    %vm3363 = vweird.f32 %v3340
    %vm3364 = vweird.f32 %v3358
    %vm3365 = vmor %vm3363, %vm3364
    %v3366 = vsel %vm3365, %v3358, %v3362
    %v3367 = vand.u32 2147483647, %v3340
    %vm3368 = vcmp.eq.f32.partialorder %v3367, 8.507059e+37
    %v3369 = vand.u32 %v3340, 2147483648
    %v3370 = vor.u32 1.1754944e-38, %v3369
    %v3371 = vsel %vm3368, %v3370, %v3366
    %v3372 = vmul.f32 1.0, %v3371
    %v3373 = vrcp.pop %v3341
    %v3374 = vmul.f32 %v3341, %v3373
    %v3375 = vsub.f32 1.0, %v3374
    %v3376 = vmul.f32 %v3373, %v3375
    %v3377 = vadd.f32 %v3373, %v3376
    %vm3378 = vweird.f32 %v3341
    %vm3379 = vweird.f32 %v3373
    %vm3380 = vmor %vm3378, %vm3379
    %v3381 = vsel %vm3380, %v3373, %v3377
    %v3382 = vand.u32 2147483647, %v3341
    %vm3383 = vcmp.eq.f32.partialorder %v3382, 8.507059e+37
    %v3384 = vand.u32 %v3341, 2147483648
    %v3385 = vor.u32 1.1754944e-38, %v3384
    %v3386 = vsel %vm3383, %v3385, %v3381
    %v3387 = vmul.f32 1.0, %v3386
    %v3388 = vrcp.pop %v3342
    %v3389 = vmul.f32 %v3342, %v3388
    %v3390 = vsub.f32 1.0, %v3389
    %v3391 = vmul.f32 %v3388, %v3390
    %v3392 = vadd.f32 %v3388, %v3391
    %vm3393 = vweird.f32 %v3342
    %vm3394 = vweird.f32 %v3388
    %vm3395 = vmor %vm3393, %vm3394
    %v3396 = vsel %vm3395, %v3388, %v3392
    %v3397 = vand.u32 2147483647, %v3342
    %vm3398 = vcmp.eq.f32.partialorder %v3397, 8.507059e+37
    %v3399 = vand.u32 %v3342, 2147483648
    %v3400 = vor.u32 1.1754944e-38, %v3399
    %v3401 = vsel %vm3398, %v3400, %v3396
    %v3402 = vmul.f32 1.0, %v3401
    %v3403 = vsub.f32 0.0, %v3313
    %v3404 = vsub.f32 0.0, %v3314
    %v3405 = vsub.f32 0.0, %v3321
    %v3406 = vsub.f32 0.0, %v3322
    %v3407 = vmul.f32 %v3403, 1.442695
    %v3408 = vpow.pop %v3407
    %v3409 = vmul.f32 %v3404, 1.442695
    %v3410 = vpow.pop %v3409
    %v3411 = vmul.f32 %v3405, 1.442695
    %v3412 = vpow.pop %v3411
    %v3413 = vmul.f32 %v3406, 1.442695
    %v3414 = vpow.pop %v3413
    %v3415 = vadd.f32 %v3408, 1.0
    %v3416 = vadd.f32 %v3410, 1.0
    %v3417 = vadd.f32 %v3412, 1.0
    %v3418 = vadd.f32 %v3414, 1.0
    %v3419 = vrcp.pop %v3415
    %v3420 = vmul.f32 %v3415, %v3419
    %v3421 = vsub.f32 1.0, %v3420
    %v3422 = vmul.f32 %v3419, %v3421
    %v3423 = vadd.f32 %v3419, %v3422
    %vm3424 = vweird.f32 %v3415
    %vm3425 = vweird.f32 %v3419
    %vm3426 = vmor %vm3424, %vm3425
    %v3427 = vsel %vm3426, %v3419, %v3423
    %v3428 = vand.u32 2147483647, %v3415
    %vm3429 = vcmp.eq.f32.partialorder %v3428, 8.507059e+37
    %v3430 = vand.u32 %v3415, 2147483648
    %v3431 = vor.u32 1.1754944e-38, %v3430
    %v3432 = vsel %vm3429, %v3431, %v3427
    %v3433 = vmul.f32 1.0, %v3432
    %v3434 = vrcp.pop %v3416
    %v3435 = vmul.f32 %v3416, %v3434
    %v3436 = vsub.f32 1.0, %v3435
    %v3437 = vmul.f32 %v3434, %v3436
    %v3438 = vadd.f32 %v3434, %v3437
    %vm3439 = vweird.f32 %v3416
    %vm3440 = vweird.f32 %v3434
    %vm3441 = vmor %vm3439, %vm3440
    %v3442 = vsel %vm3441, %v3434, %v3438
    %v3443 = vand.u32 2147483647, %v3416
    %vm3444 = vcmp.eq.f32.partialorder %v3443, 8.507059e+37
    %v3445 = vand.u32 %v3416, 2147483648
    %v3446 = vor.u32 1.1754944e-38, %v3445
    %v3447 = vsel %vm3444, %v3446, %v3442
    %v3448 = vmul.f32 1.0, %v3447
    %v3449 = vrcp.pop %v3417
    %v3450 = vmul.f32 %v3417, %v3449
    %v3451 = vsub.f32 1.0, %v3450
    %v3452 = vmul.f32 %v3449, %v3451
    %v3453 = vadd.f32 %v3449, %v3452
    %vm3454 = vweird.f32 %v3417
    %vm3455 = vweird.f32 %v3449
    %vm3456 = vmor %vm3454, %vm3455
    %v3457 = vsel %vm3456, %v3449, %v3453
    %v3458 = vand.u32 2147483647, %v3417
    %vm3459 = vcmp.eq.f32.partialorder %v3458, 8.507059e+37
    %v3460 = vand.u32 %v3417, 2147483648
    %v3461 = vor.u32 1.1754944e-38, %v3460
    %v3462 = vsel %vm3459, %v3461, %v3457
    %v3463 = vmul.f32 1.0, %v3462
    %v3464 = vrcp.pop %v3418
    %v3465 = vmul.f32 %v3418, %v3464
    %v3466 = vsub.f32 1.0, %v3465
    %v3467 = vmul.f32 %v3464, %v3466
    %v3468 = vadd.f32 %v3464, %v3467
    %vm3469 = vweird.f32 %v3418
    %vm3470 = vweird.f32 %v3464
    %vm3471 = vmor %vm3469, %vm3470
    %v3472 = vsel %vm3471, %v3464, %v3468
    %v3473 = vand.u32 2147483647, %v3418
    %vm3474 = vcmp.eq.f32.partialorder %v3473, 8.507059e+37
    %v3475 = vand.u32 %v3418, 2147483648
    %v3476 = vor.u32 1.1754944e-38, %v3475
    %v3477 = vsel %vm3474, %v3476, %v3472
    %v3478 = vmul.f32 1.0, %v3477
    %v3479 = vtanh.pop %v3315
    %v3480 = vtanh.pop %v3316
    %v3481 = vtanh.pop %v3323
    %v3482 = vtanh.pop %v3324
    %v3483 = vsub.f32 0.0, %v3317
    %v3484 = vsub.f32 0.0, %v3318
    %v3485 = vsub.f32 0.0, %v3325
    %v3486 = vsub.f32 0.0, %v3326
    %v3487 = vmul.f32 %v3483, 1.442695
    %v3488 = vpow.pop %v3487
    %v3489 = vmul.f32 %v3484, 1.442695
    %v3490 = vpow.pop %v3489
    %v3491 = vmul.f32 %v3485, 1.442695
    %v3492 = vpow.pop %v3491
    %v3493 = vmul.f32 %v3486, 1.442695
    %v3494 = vpow.pop %v3493
    %v3495 = vadd.f32 %v3488, 1.0
    %v3496 = vadd.f32 %v3490, 1.0
    %v3497 = vadd.f32 %v3492, 1.0
    %v3498 = vadd.f32 %v3494, 1.0
    %v3499 = vrcp.pop %v3495
    %v3500 = vmul.f32 %v3495, %v3499
    %v3501 = vsub.f32 1.0, %v3500
    %v3502 = vmul.f32 %v3499, %v3501
    %v3503 = vadd.f32 %v3499, %v3502
    %vm3504 = vweird.f32 %v3495
    %vm3505 = vweird.f32 %v3499
    %vm3506 = vmor %vm3504, %vm3505
    %v3507 = vsel %vm3506, %v3499, %v3503
    %v3508 = vand.u32 2147483647, %v3495
    %vm3509 = vcmp.eq.f32.partialorder %v3508, 8.507059e+37
    %v3510 = vand.u32 %v3495, 2147483648
    %v3511 = vor.u32 1.1754944e-38, %v3510
    %v3512 = vsel %vm3509, %v3511, %v3507
    %v3513 = vmul.f32 1.0, %v3512
    %v3514 = vrcp.pop %v3496
    %v3515 = vmul.f32 %v3496, %v3514
    %v3516 = vsub.f32 1.0, %v3515
    %v3517 = vmul.f32 %v3514, %v3516
    %v3518 = vadd.f32 %v3514, %v3517
    %vm3519 = vweird.f32 %v3496
    %vm3520 = vweird.f32 %v3514
    %vm3521 = vmor %vm3519, %vm3520
    %v3522 = vsel %vm3521, %v3514, %v3518
    %v3523 = vand.u32 2147483647, %v3496
    %vm3524 = vcmp.eq.f32.partialorder %v3523, 8.507059e+37
    %v3525 = vand.u32 %v3496, 2147483648
    %v3526 = vor.u32 1.1754944e-38, %v3525
    %v3527 = vsel %vm3524, %v3526, %v3522
    %v3528 = vmul.f32 1.0, %v3527
    %v3529 = vrcp.pop %v3497
    %v3530 = vmul.f32 %v3497, %v3529
    %v3531 = vsub.f32 1.0, %v3530
    %v3532 = vmul.f32 %v3529, %v3531
    %v3533 = vadd.f32 %v3529, %v3532
    %vm3534 = vweird.f32 %v3497
    %vm3535 = vweird.f32 %v3529
    %vm3536 = vmor %vm3534, %vm3535
    %v3537 = vsel %vm3536, %v3529, %v3533
    %v3538 = vand.u32 2147483647, %v3497
    %vm3539 = vcmp.eq.f32.partialorder %v3538, 8.507059e+37
    %v3540 = vand.u32 %v3497, 2147483648
    %v3541 = vor.u32 1.1754944e-38, %v3540
    %v3542 = vsel %vm3539, %v3541, %v3537
    %v3543 = vmul.f32 1.0, %v3542
    %v3544 = vrcp.pop %v3498
    %v3545 = vmul.f32 %v3498, %v3544
    %v3546 = vsub.f32 1.0, %v3545
    %v3547 = vmul.f32 %v3544, %v3546
    %v3548 = vadd.f32 %v3544, %v3547
    %vm3549 = vweird.f32 %v3498
    %vm3550 = vweird.f32 %v3544
    %vm3551 = vmor %vm3549, %vm3550
    %v3552 = vsel %vm3551, %v3544, %v3548
    %v3553 = vand.u32 2147483647, %v3498
    %vm3554 = vcmp.eq.f32.partialorder %v3553, 8.507059e+37
    %v3555 = vand.u32 %v3498, 2147483648
    %v3556 = vor.u32 1.1754944e-38, %v3555
    %v3557 = vsel %vm3554, %v3556, %v3552
    %v3558 = vmul.f32 1.0, %v3557
    %v3563 = vrot.slane %v3010, 7
    %v3564 = vrot.slane %v3011, 7
    %v3565 = vrot.slane %v3012, 7
    %v3566 = vrot.slane %v3013, 7
    %v3571 = vmul.f32 %v3433, %v3563
    %v3572 = vmul.f32 %v3448, %v3564
    %v3573 = vmul.f32 %v3463, %v3565
    %v3574 = vmul.f32 %v3478, %v3566
    %v3575 = vmul.f32 %v3357, %v3479
    %v3576 = vmul.f32 %v3372, %v3480
    %v3577 = vmul.f32 %v3387, %v3481
    %v3578 = vmul.f32 %v3402, %v3482
    %v3579 = vadd.f32 %v3571, %v3575
    %v3580 = vadd.f32 %v3572, %v3576
    %v3581 = vadd.f32 %v3573, %v3577
    %v3582 = vadd.f32 %v3574, %v3578
    %v3583 = vtanh.pop %v3579
    %v3584 = vtanh.pop %v3580
    %v3585 = vtanh.pop %v3581
    %v3586 = vtanh.pop %v3582
    %v3587 = vmul.f32 %v3513, %v3583
    %v3588 = vmul.f32 %v3528, %v3584
    %v3589 = vmul.f32 %v3543, %v3585
    %v3590 = vmul.f32 %v3558, %v3586
    %3595 = vst [vmem:[#allocation1] sm:$0xff] %v3587
    %3596 = vst [vmem:[#allocation1 + $0x9] sm:$0xff] %v3588
    %s3597 = scalar_lea.vmem [#allocation1], 3
    %v3598 = vld [vmem:[%s3597] ss:$9 sm:$0xff]
    %3599 = vst [vmem:[#allocation1] sm:$0xff] %v3589
    %3600 = vst [vmem:[#allocation1 + $0x9] sm:$0xff] %v3590
    %v3601 = vld [vmem:[%s3597] ss:$9 sm:$0xff]
    %s3604 = scalar_lea.vmem [#allocation2], 3
    %3605 = vst.msk [vmem:[%s3604] ss:$8 sm:$0x3] %vm1908, %v3598
    %3606 = vst.msk [vmem:[%s3604] ss:$8 sm:$0x0] %vm1908, %v3598
    %s3607 = scalar_lea.vmem [#allocation2], 19
    %3608 = vst.msk [vmem:[%s3607] ss:$8 sm:$0x3] %vm1908, %v3601
    %3609 = vst.msk [vmem:[%s3607] ss:$8 sm:$0x0] %vm1908, %v3601
    %v3610 = vpack.c.bf16 %v3587, %v3587
    %v3611 = vpack.c.bf16 %v3588, %v3588
    %v3612 = vpack.c.bf16 %v3589, %v3589
    %v3613 = vpack.c.bf16 %v3590, %v3590
    %v3618 = vunpack.c.l.b16 %v3610
    %v3619 = vunpack.c.l.b16 %v3611
    %v3620 = vunpack.c.l.b16 %v3612
    %v3621 = vunpack.c.l.b16 %v3613
    %v3622 = vrot.slane %v3618, 3
    %v3623 = vrot.slane %v3620, 2
    %v3624 = vsel %vm1927, %v3623, %v3622
    %v3625 = vrot.slane %v3619, 3
    %v3626 = vrot.slane %v3621, 2
    %v3627 = vsel %vm1927, %v3626, %v3625
    %v3628 = vpack.c.b16 %v3624, %v3624
    %v3629 = vpack.c.b16 %v3627, %v3627
    %3632 = vmatpush.bf16.msra.mxu0 %v1186
    %3633 = vmatpush.bf16.msra.mxu0 %v1178
    %3634 = vmatpush.bf16.msra.mxu0 %v1170
    %3635 = vmatpush.bf16.msra.mxu0 %v1162
    %3636 = vmatpush.bf16.msra.mxu0 %v1154
    %3637 = vmatpush.bf16.msra.mxu0 %v1146
    %3638 = vmatpush.bf16.msra.mxu0 %v1138
    %3639 = vmatpush.bf16.msra.mxu0 %v1130
    %3640 = vmatmul.bf16.gmra.mxu0 %v3628
    %v3641 = vpop.f32.mrf.mxu0
    %v3642 = vadd.f32 0.0, %v3641
    %v3643 = vpop.f32.mrf.mxu0
    %3644 = vdwg.mxu0
    %3645 = vmatpush.bf16.msra.mxu0 %v1250
    %3646 = vmatpush.bf16.msra.mxu0 %v1242
    %3647 = vmatpush.bf16.msra.mxu0 %v1234
    %3648 = vmatpush.bf16.msra.mxu0 %v1226
    %3649 = vmatpush.bf16.msra.mxu0 %v1218
    %3650 = vmatpush.bf16.msra.mxu0 %v1210
    %3651 = vmatpush.bf16.msra.mxu0 %v1202
    %3652 = vmatpush.bf16.msra.mxu0 %v1194
    %3653 = vmatmul.bf16.gmra.mxu0 %v3629
    %v3654 = vpop.f32.mrf.mxu0
    %v3655 = vadd.f32 %v3642, %v3654
    %v3656 = vpop.f32.mrf.mxu0
    %3657 = vdwg.mxu0
    %3658 = vmatpush.bf16.msra.mxu0 %v1187
    %3659 = vmatpush.bf16.msra.mxu0 %v1179
    %3660 = vmatpush.bf16.msra.mxu0 %v1171
    %3661 = vmatpush.bf16.msra.mxu0 %v1163
    %3662 = vmatpush.bf16.msra.mxu0 %v1155
    %3663 = vmatpush.bf16.msra.mxu0 %v1147
    %3664 = vmatpush.bf16.msra.mxu0 %v1139
    %3665 = vmatpush.bf16.msra.mxu0 %v1131
    %3666 = vmatmul.bf16.gmra.mxu0 %v3628
    %v3667 = vpop.f32.mrf.mxu0
    %v3668 = vadd.f32 0.0, %v3667
    %v3669 = vpop.f32.mrf.mxu0
    %3670 = vdwg.mxu0
    %3671 = vmatpush.bf16.msra.mxu0 %v1251
    %3672 = vmatpush.bf16.msra.mxu0 %v1243
    %3673 = vmatpush.bf16.msra.mxu0 %v1235
    %3674 = vmatpush.bf16.msra.mxu0 %v1227
    %3675 = vmatpush.bf16.msra.mxu0 %v1219
    %3676 = vmatpush.bf16.msra.mxu0 %v1211
    %3677 = vmatpush.bf16.msra.mxu0 %v1203
    %3678 = vmatpush.bf16.msra.mxu0 %v1195
    %3679 = vmatmul.bf16.gmra.mxu0 %v3629
    %v3680 = vpop.f32.mrf.mxu0
    %v3681 = vadd.f32 %v3668, %v3680
    %v3682 = vpop.f32.mrf.mxu0
    %3683 = vdwg.mxu0
    %3684 = vmatpush.bf16.msra.mxu0 %v1188
    %3685 = vmatpush.bf16.msra.mxu0 %v1180
    %3686 = vmatpush.bf16.msra.mxu0 %v1172
    %3687 = vmatpush.bf16.msra.mxu0 %v1164
    %3688 = vmatpush.bf16.msra.mxu0 %v1156
    %3689 = vmatpush.bf16.msra.mxu0 %v1148
    %3690 = vmatpush.bf16.msra.mxu0 %v1140
    %3691 = vmatpush.bf16.msra.mxu0 %v1132
    %3692 = vmatmul.bf16.gmra.mxu0 %v3628
    %v3693 = vpop.f32.mrf.mxu0
    %v3694 = vadd.f32 0.0, %v3693
    %v3695 = vpop.f32.mrf.mxu0
    %3696 = vdwg.mxu0
    %3697 = vmatpush.bf16.msra.mxu0 %v1252
    %3698 = vmatpush.bf16.msra.mxu0 %v1244
    %3699 = vmatpush.bf16.msra.mxu0 %v1236
    %3700 = vmatpush.bf16.msra.mxu0 %v1228
    %3701 = vmatpush.bf16.msra.mxu0 %v1220
    %3702 = vmatpush.bf16.msra.mxu0 %v1212
    %3703 = vmatpush.bf16.msra.mxu0 %v1204
    %3704 = vmatpush.bf16.msra.mxu0 %v1196
    %3705 = vmatmul.bf16.gmra.mxu0 %v3629
    %v3706 = vpop.f32.mrf.mxu0
    %v3707 = vadd.f32 %v3694, %v3706
    %v3708 = vpop.f32.mrf.mxu0
    %3709 = vdwg.mxu0
    %3710 = vmatpush.bf16.msra.mxu0 %v1189
    %3711 = vmatpush.bf16.msra.mxu0 %v1181
    %3712 = vmatpush.bf16.msra.mxu0 %v1173
    %3713 = vmatpush.bf16.msra.mxu0 %v1165
    %3714 = vmatpush.bf16.msra.mxu0 %v1157
    %3715 = vmatpush.bf16.msra.mxu0 %v1149
    %3716 = vmatpush.bf16.msra.mxu0 %v1141
    %3717 = vmatpush.bf16.msra.mxu0 %v1133
    %3718 = vmatmul.bf16.gmra.mxu0 %v3628
    %v3719 = vpop.f32.mrf.mxu0
    %v3720 = vadd.f32 0.0, %v3719
    %v3721 = vpop.f32.mrf.mxu0
    %3722 = vdwg.mxu0
    %3723 = vmatpush.bf16.msra.mxu0 %v1253
    %3724 = vmatpush.bf16.msra.mxu0 %v1245
    %3725 = vmatpush.bf16.msra.mxu0 %v1237
    %3726 = vmatpush.bf16.msra.mxu0 %v1229
    %3727 = vmatpush.bf16.msra.mxu0 %v1221
    %3728 = vmatpush.bf16.msra.mxu0 %v1213
    %3729 = vmatpush.bf16.msra.mxu0 %v1205
    %3730 = vmatpush.bf16.msra.mxu0 %v1197
    %3731 = vmatmul.bf16.gmra.mxu0 %v3629
    %v3732 = vpop.f32.mrf.mxu0
    %v3733 = vadd.f32 %v3720, %v3732
    %v3734 = vpop.f32.mrf.mxu0
    %3735 = vdwg.mxu0
    %3736 = vmatpush.bf16.msra.mxu0 %v1190
    %3737 = vmatpush.bf16.msra.mxu0 %v1182
    %3738 = vmatpush.bf16.msra.mxu0 %v1174
    %3739 = vmatpush.bf16.msra.mxu0 %v1166
    %3740 = vmatpush.bf16.msra.mxu0 %v1158
    %3741 = vmatpush.bf16.msra.mxu0 %v1150
    %3742 = vmatpush.bf16.msra.mxu0 %v1142
    %3743 = vmatpush.bf16.msra.mxu0 %v1134
    %3744 = vmatmul.bf16.gmra.mxu0 %v3628
    %v3745 = vpop.f32.mrf.mxu0
    %v3746 = vadd.f32 0.0, %v3745
    %v3747 = vpop.f32.mrf.mxu0
    %3748 = vdwg.mxu0
    %3749 = vmatpush.bf16.msra.mxu0 %v1254
    %3750 = vmatpush.bf16.msra.mxu0 %v1246
    %3751 = vmatpush.bf16.msra.mxu0 %v1238
    %3752 = vmatpush.bf16.msra.mxu0 %v1230
    %3753 = vmatpush.bf16.msra.mxu0 %v1222
    %3754 = vmatpush.bf16.msra.mxu0 %v1214
    %3755 = vmatpush.bf16.msra.mxu0 %v1206
    %3756 = vmatpush.bf16.msra.mxu0 %v1198
    %3757 = vmatmul.bf16.gmra.mxu0 %v3629
    %v3758 = vpop.f32.mrf.mxu0
    %v3759 = vadd.f32 %v3746, %v3758
    %v3760 = vpop.f32.mrf.mxu0
    %3761 = vdwg.mxu0
    %3762 = vmatpush.bf16.msra.mxu0 %v1191
    %3763 = vmatpush.bf16.msra.mxu0 %v1183
    %3764 = vmatpush.bf16.msra.mxu0 %v1175
    %3765 = vmatpush.bf16.msra.mxu0 %v1167
    %3766 = vmatpush.bf16.msra.mxu0 %v1159
    %3767 = vmatpush.bf16.msra.mxu0 %v1151
    %3768 = vmatpush.bf16.msra.mxu0 %v1143
    %3769 = vmatpush.bf16.msra.mxu0 %v1135
    %3770 = vmatmul.bf16.gmra.mxu0 %v3628
    %v3771 = vpop.f32.mrf.mxu0
    %v3772 = vadd.f32 0.0, %v3771
    %v3773 = vpop.f32.mrf.mxu0
    %3774 = vdwg.mxu0
    %3775 = vmatpush.bf16.msra.mxu0 %v1255
    %3776 = vmatpush.bf16.msra.mxu0 %v1247
    %3777 = vmatpush.bf16.msra.mxu0 %v1239
    %3778 = vmatpush.bf16.msra.mxu0 %v1231
    %3779 = vmatpush.bf16.msra.mxu0 %v1223
    %3780 = vmatpush.bf16.msra.mxu0 %v1215
    %3781 = vmatpush.bf16.msra.mxu0 %v1207
    %3782 = vmatpush.bf16.msra.mxu0 %v1199
    %3783 = vmatmul.bf16.gmra.mxu0 %v3629
    %v3784 = vpop.f32.mrf.mxu0
    %v3785 = vadd.f32 %v3772, %v3784
    %v3786 = vpop.f32.mrf.mxu0
    %3787 = vdwg.mxu0
    %3788 = vmatpush.bf16.msra.mxu0 %v1192
    %3789 = vmatpush.bf16.msra.mxu0 %v1184
    %3790 = vmatpush.bf16.msra.mxu0 %v1176
    %3791 = vmatpush.bf16.msra.mxu0 %v1168
    %3792 = vmatpush.bf16.msra.mxu0 %v1160
    %3793 = vmatpush.bf16.msra.mxu0 %v1152
    %3794 = vmatpush.bf16.msra.mxu0 %v1144
    %3795 = vmatpush.bf16.msra.mxu0 %v1136
    %3796 = vmatmul.bf16.gmra.mxu0 %v3628
    %v3797 = vpop.f32.mrf.mxu0
    %v3798 = vadd.f32 0.0, %v3797
    %v3799 = vpop.f32.mrf.mxu0
    %3800 = vdwg.mxu0
    %3801 = vmatpush.bf16.msra.mxu0 %v1256
    %3802 = vmatpush.bf16.msra.mxu0 %v1248
    %3803 = vmatpush.bf16.msra.mxu0 %v1240
    %3804 = vmatpush.bf16.msra.mxu0 %v1232
    %3805 = vmatpush.bf16.msra.mxu0 %v1224
    %3806 = vmatpush.bf16.msra.mxu0 %v1216
    %3807 = vmatpush.bf16.msra.mxu0 %v1208
    %3808 = vmatpush.bf16.msra.mxu0 %v1200
    %3809 = vmatmul.bf16.gmra.mxu0 %v3629
    %v3810 = vpop.f32.mrf.mxu0
    %v3811 = vadd.f32 %v3798, %v3810
    %v3812 = vpop.f32.mrf.mxu0
    %3813 = vdwg.mxu0
    %3814 = vmatpush.bf16.msra.mxu0 %v1193
    %3815 = vmatpush.bf16.msra.mxu0 %v1185
    %3816 = vmatpush.bf16.msra.mxu0 %v1177
    %3817 = vmatpush.bf16.msra.mxu0 %v1169
    %3818 = vmatpush.bf16.msra.mxu0 %v1161
    %3819 = vmatpush.bf16.msra.mxu0 %v1153
    %3820 = vmatpush.bf16.msra.mxu0 %v1145
    %3821 = vmatpush.bf16.msra.mxu0 %v1137
    %3822 = vmatmul.bf16.gmra.mxu0 %v3628
    %v3823 = vpop.f32.mrf.mxu0
    %v3824 = vadd.f32 0.0, %v3823
    %v3825 = vpop.f32.mrf.mxu0
    %3826 = vdwg.mxu0
    %3827 = vmatpush.bf16.msra.mxu0 %v1257
    %3828 = vmatpush.bf16.msra.mxu0 %v1249
    %3829 = vmatpush.bf16.msra.mxu0 %v1241
    %3830 = vmatpush.bf16.msra.mxu0 %v1233
    %3831 = vmatpush.bf16.msra.mxu0 %v1225
    %3832 = vmatpush.bf16.msra.mxu0 %v1217
    %3833 = vmatpush.bf16.msra.mxu0 %v1209
    %3834 = vmatpush.bf16.msra.mxu0 %v1201
    %3835 = vmatmul.bf16.gmra.mxu0 %v3629
    %v3836 = vpop.f32.mrf.mxu0
    %v3837 = vadd.f32 %v3824, %v3836
    %v3838 = vpop.f32.mrf.mxu0
    %3839 = vdwg.mxu0
    %v3848 = vrot.slane %v3655, 4
    %v3849 = vrot.slane %v3681, 4
    %v3850 = vrot.slane %v3707, 4
    %v3851 = vrot.slane %v3733, 4
    %v3852 = vrot.slane %v3759, 4
    %v3853 = vrot.slane %v3785, 4
    %v3854 = vrot.slane %v3811, 4
    %v3855 = vrot.slane %v3837, 4
    %v3856 = vrot.slane %v3655, 5
    %v3857 = vrot.slane %v3681, 5
    %v3858 = vrot.slane %v3707, 5
    %v3859 = vrot.slane %v3733, 5
    %v3860 = vrot.slane %v3759, 5
    %v3861 = vrot.slane %v3785, 5
    %v3862 = vrot.slane %v3811, 5
    %v3863 = vrot.slane %v3837, 5
    %v3880 = vadd.f32 %v516, %v3848
    %v3881 = vadd.f32 %v530, %v3849
    %v3882 = vadd.f32 %v544, %v3850
    %v3883 = vadd.f32 %v558, %v3851
    %v3884 = vadd.f32 %v572, %v3852
    %v3885 = vadd.f32 %v586, %v3853
    %v3886 = vadd.f32 %v600, %v3854
    %v3887 = vadd.f32 %v614, %v3855
    %v3888 = vadd.f32 %v518, %v3856
    %v3889 = vadd.f32 %v532, %v3857
    %v3890 = vadd.f32 %v546, %v3858
    %v3891 = vadd.f32 %v560, %v3859
    %v3892 = vadd.f32 %v574, %v3860
    %v3893 = vadd.f32 %v588, %v3861
    %v3894 = vadd.f32 %v602, %v3862
    %v3895 = vadd.f32 %v616, %v3863
    %v3896 = vsub.f32 0.0, %v3880
    %v3897 = vsub.f32 0.0, %v3881
    %v3898 = vsub.f32 0.0, %v3888
    %v3899 = vsub.f32 0.0, %v3889
    %v3900 = vmul.f32 %v3896, 1.442695
    %v3901 = vpow.pop %v3900
    %v3902 = vmul.f32 %v3897, 1.442695
    %v3903 = vpow.pop %v3902
    %v3904 = vmul.f32 %v3898, 1.442695
    %v3905 = vpow.pop %v3904
    %v3906 = vmul.f32 %v3899, 1.442695
    %v3907 = vpow.pop %v3906
    %v3908 = vadd.f32 %v3901, 1.0
    %v3909 = vadd.f32 %v3903, 1.0
    %v3910 = vadd.f32 %v3905, 1.0
    %v3911 = vadd.f32 %v3907, 1.0
    %v3912 = vrcp.pop %v3908
    %v3913 = vmul.f32 %v3908, %v3912
    %v3914 = vsub.f32 1.0, %v3913
    %v3915 = vmul.f32 %v3912, %v3914
    %v3916 = vadd.f32 %v3912, %v3915
    %vm3917 = vweird.f32 %v3908
    %vm3918 = vweird.f32 %v3912
    %vm3919 = vmor %vm3917, %vm3918
    %v3920 = vsel %vm3919, %v3912, %v3916
    %v3921 = vand.u32 2147483647, %v3908
    %vm3922 = vcmp.eq.f32.partialorder %v3921, 8.507059e+37
    %v3923 = vand.u32 %v3908, 2147483648
    %v3924 = vor.u32 1.1754944e-38, %v3923
    %v3925 = vsel %vm3922, %v3924, %v3920
    %v3926 = vmul.f32 1.0, %v3925
    %v3927 = vrcp.pop %v3909
    %v3928 = vmul.f32 %v3909, %v3927
    %v3929 = vsub.f32 1.0, %v3928
    %v3930 = vmul.f32 %v3927, %v3929
    %v3931 = vadd.f32 %v3927, %v3930
    %vm3932 = vweird.f32 %v3909
    %vm3933 = vweird.f32 %v3927
    %vm3934 = vmor %vm3932, %vm3933
    %v3935 = vsel %vm3934, %v3927, %v3931
    %v3936 = vand.u32 2147483647, %v3909
    %vm3937 = vcmp.eq.f32.partialorder %v3936, 8.507059e+37
    %v3938 = vand.u32 %v3909, 2147483648
    %v3939 = vor.u32 1.1754944e-38, %v3938
    %v3940 = vsel %vm3937, %v3939, %v3935
    %v3941 = vmul.f32 1.0, %v3940
    %v3942 = vrcp.pop %v3910
    %v3943 = vmul.f32 %v3910, %v3942
    %v3944 = vsub.f32 1.0, %v3943
    %v3945 = vmul.f32 %v3942, %v3944
    %v3946 = vadd.f32 %v3942, %v3945
    %vm3947 = vweird.f32 %v3910
    %vm3948 = vweird.f32 %v3942
    %vm3949 = vmor %vm3947, %vm3948
    %v3950 = vsel %vm3949, %v3942, %v3946
    %v3951 = vand.u32 2147483647, %v3910
    %vm3952 = vcmp.eq.f32.partialorder %v3951, 8.507059e+37
    %v3953 = vand.u32 %v3910, 2147483648
    %v3954 = vor.u32 1.1754944e-38, %v3953
    %v3955 = vsel %vm3952, %v3954, %v3950
    %v3956 = vmul.f32 1.0, %v3955
    %v3957 = vrcp.pop %v3911
    %v3958 = vmul.f32 %v3911, %v3957
    %v3959 = vsub.f32 1.0, %v3958
    %v3960 = vmul.f32 %v3957, %v3959
    %v3961 = vadd.f32 %v3957, %v3960
    %vm3962 = vweird.f32 %v3911
    %vm3963 = vweird.f32 %v3957
    %vm3964 = vmor %vm3962, %vm3963
    %v3965 = vsel %vm3964, %v3957, %v3961
    %v3966 = vand.u32 2147483647, %v3911
    %vm3967 = vcmp.eq.f32.partialorder %v3966, 8.507059e+37
    %v3968 = vand.u32 %v3911, 2147483648
    %v3969 = vor.u32 1.1754944e-38, %v3968
    %v3970 = vsel %vm3967, %v3969, %v3965
    %v3971 = vmul.f32 1.0, %v3970
    %v3972 = vsub.f32 0.0, %v3882
    %v3973 = vsub.f32 0.0, %v3883
    %v3974 = vsub.f32 0.0, %v3890
    %v3975 = vsub.f32 0.0, %v3891
    %v3976 = vmul.f32 %v3972, 1.442695
    %v3977 = vpow.pop %v3976
    %v3978 = vmul.f32 %v3973, 1.442695
    %v3979 = vpow.pop %v3978
    %v3980 = vmul.f32 %v3974, 1.442695
    %v3981 = vpow.pop %v3980
    %v3982 = vmul.f32 %v3975, 1.442695
    %v3983 = vpow.pop %v3982
    %v3984 = vadd.f32 %v3977, 1.0
    %v3985 = vadd.f32 %v3979, 1.0
    %v3986 = vadd.f32 %v3981, 1.0
    %v3987 = vadd.f32 %v3983, 1.0
    %v3988 = vrcp.pop %v3984
    %v3989 = vmul.f32 %v3984, %v3988
    %v3990 = vsub.f32 1.0, %v3989
    %v3991 = vmul.f32 %v3988, %v3990
    %v3992 = vadd.f32 %v3988, %v3991
    %vm3993 = vweird.f32 %v3984
    %vm3994 = vweird.f32 %v3988
    %vm3995 = vmor %vm3993, %vm3994
    %v3996 = vsel %vm3995, %v3988, %v3992
    %v3997 = vand.u32 2147483647, %v3984
    %vm3998 = vcmp.eq.f32.partialorder %v3997, 8.507059e+37
    %v3999 = vand.u32 %v3984, 2147483648
    %v4000 = vor.u32 1.1754944e-38, %v3999
    %v4001 = vsel %vm3998, %v4000, %v3996
    %v4002 = vmul.f32 1.0, %v4001
    %v4003 = vrcp.pop %v3985
    %v4004 = vmul.f32 %v3985, %v4003
    %v4005 = vsub.f32 1.0, %v4004
    %v4006 = vmul.f32 %v4003, %v4005
    %v4007 = vadd.f32 %v4003, %v4006
    %vm4008 = vweird.f32 %v3985
    %vm4009 = vweird.f32 %v4003
    %vm4010 = vmor %vm4008, %vm4009
    %v4011 = vsel %vm4010, %v4003, %v4007
    %v4012 = vand.u32 2147483647, %v3985
    %vm4013 = vcmp.eq.f32.partialorder %v4012, 8.507059e+37
    %v4014 = vand.u32 %v3985, 2147483648
    %v4015 = vor.u32 1.1754944e-38, %v4014
    %v4016 = vsel %vm4013, %v4015, %v4011
    %v4017 = vmul.f32 1.0, %v4016
    %v4018 = vrcp.pop %v3986
    %v4019 = vmul.f32 %v3986, %v4018
    %v4020 = vsub.f32 1.0, %v4019
    %v4021 = vmul.f32 %v4018, %v4020
    %v4022 = vadd.f32 %v4018, %v4021
    %vm4023 = vweird.f32 %v3986
    %vm4024 = vweird.f32 %v4018
    %vm4025 = vmor %vm4023, %vm4024
    %v4026 = vsel %vm4025, %v4018, %v4022
    %v4027 = vand.u32 2147483647, %v3986
    %vm4028 = vcmp.eq.f32.partialorder %v4027, 8.507059e+37
    %v4029 = vand.u32 %v3986, 2147483648
    %v4030 = vor.u32 1.1754944e-38, %v4029
    %v4031 = vsel %vm4028, %v4030, %v4026
    %v4032 = vmul.f32 1.0, %v4031
    %v4033 = vrcp.pop %v3987
    %v4034 = vmul.f32 %v3987, %v4033
    %v4035 = vsub.f32 1.0, %v4034
    %v4036 = vmul.f32 %v4033, %v4035
    %v4037 = vadd.f32 %v4033, %v4036
    %vm4038 = vweird.f32 %v3987
    %vm4039 = vweird.f32 %v4033
    %vm4040 = vmor %vm4038, %vm4039
    %v4041 = vsel %vm4040, %v4033, %v4037
    %v4042 = vand.u32 2147483647, %v3987
    %vm4043 = vcmp.eq.f32.partialorder %v4042, 8.507059e+37
    %v4044 = vand.u32 %v3987, 2147483648
    %v4045 = vor.u32 1.1754944e-38, %v4044
    %v4046 = vsel %vm4043, %v4045, %v4041
    %v4047 = vmul.f32 1.0, %v4046
    %v4048 = vtanh.pop %v3884
    %v4049 = vtanh.pop %v3885
    %v4050 = vtanh.pop %v3892
    %v4051 = vtanh.pop %v3893
    %v4052 = vsub.f32 0.0, %v3886
    %v4053 = vsub.f32 0.0, %v3887
    %v4054 = vsub.f32 0.0, %v3894
    %v4055 = vsub.f32 0.0, %v3895
    %v4056 = vmul.f32 %v4052, 1.442695
    %v4057 = vpow.pop %v4056
    %v4058 = vmul.f32 %v4053, 1.442695
    %v4059 = vpow.pop %v4058
    %v4060 = vmul.f32 %v4054, 1.442695
    %v4061 = vpow.pop %v4060
    %v4062 = vmul.f32 %v4055, 1.442695
    %v4063 = vpow.pop %v4062
    %v4064 = vadd.f32 %v4057, 1.0
    %v4065 = vadd.f32 %v4059, 1.0
    %v4066 = vadd.f32 %v4061, 1.0
    %v4067 = vadd.f32 %v4063, 1.0
    %v4068 = vrcp.pop %v4064
    %v4069 = vmul.f32 %v4064, %v4068
    %v4070 = vsub.f32 1.0, %v4069
    %v4071 = vmul.f32 %v4068, %v4070
    %v4072 = vadd.f32 %v4068, %v4071
    %vm4073 = vweird.f32 %v4064
    %vm4074 = vweird.f32 %v4068
    %vm4075 = vmor %vm4073, %vm4074
    %v4076 = vsel %vm4075, %v4068, %v4072
    %v4077 = vand.u32 2147483647, %v4064
    %vm4078 = vcmp.eq.f32.partialorder %v4077, 8.507059e+37
    %v4079 = vand.u32 %v4064, 2147483648
    %v4080 = vor.u32 1.1754944e-38, %v4079
    %v4081 = vsel %vm4078, %v4080, %v4076
    %v4082 = vmul.f32 1.0, %v4081
    %v4083 = vrcp.pop %v4065
    %v4084 = vmul.f32 %v4065, %v4083
    %v4085 = vsub.f32 1.0, %v4084
    %v4086 = vmul.f32 %v4083, %v4085
    %v4087 = vadd.f32 %v4083, %v4086
    %vm4088 = vweird.f32 %v4065
    %vm4089 = vweird.f32 %v4083
    %vm4090 = vmor %vm4088, %vm4089
    %v4091 = vsel %vm4090, %v4083, %v4087
    %v4092 = vand.u32 2147483647, %v4065
    %vm4093 = vcmp.eq.f32.partialorder %v4092, 8.507059e+37
    %v4094 = vand.u32 %v4065, 2147483648
    %v4095 = vor.u32 1.1754944e-38, %v4094
    %v4096 = vsel %vm4093, %v4095, %v4091
    %v4097 = vmul.f32 1.0, %v4096
    %v4098 = vrcp.pop %v4066
    %v4099 = vmul.f32 %v4066, %v4098
    %v4100 = vsub.f32 1.0, %v4099
    %v4101 = vmul.f32 %v4098, %v4100
    %v4102 = vadd.f32 %v4098, %v4101
    %vm4103 = vweird.f32 %v4066
    %vm4104 = vweird.f32 %v4098
    %vm4105 = vmor %vm4103, %vm4104
    %v4106 = vsel %vm4105, %v4098, %v4102
    %v4107 = vand.u32 2147483647, %v4066
    %vm4108 = vcmp.eq.f32.partialorder %v4107, 8.507059e+37
    %v4109 = vand.u32 %v4066, 2147483648
    %v4110 = vor.u32 1.1754944e-38, %v4109
    %v4111 = vsel %vm4108, %v4110, %v4106
    %v4112 = vmul.f32 1.0, %v4111
    %v4113 = vrcp.pop %v4067
    %v4114 = vmul.f32 %v4067, %v4113
    %v4115 = vsub.f32 1.0, %v4114
    %v4116 = vmul.f32 %v4113, %v4115
    %v4117 = vadd.f32 %v4113, %v4116
    %vm4118 = vweird.f32 %v4067
    %vm4119 = vweird.f32 %v4113
    %vm4120 = vmor %vm4118, %vm4119
    %v4121 = vsel %vm4120, %v4113, %v4117
    %v4122 = vand.u32 2147483647, %v4067
    %vm4123 = vcmp.eq.f32.partialorder %v4122, 8.507059e+37
    %v4124 = vand.u32 %v4067, 2147483648
    %v4125 = vor.u32 1.1754944e-38, %v4124
    %v4126 = vsel %vm4123, %v4125, %v4121
    %v4127 = vmul.f32 1.0, %v4126
    %v4132 = vrot.slane %v3579, 7
    %v4133 = vrot.slane %v3580, 7
    %v4134 = vrot.slane %v3581, 7
    %v4135 = vrot.slane %v3582, 7
    %v4140 = vmul.f32 %v4002, %v4132
    %v4141 = vmul.f32 %v4017, %v4133
    %v4142 = vmul.f32 %v4032, %v4134
    %v4143 = vmul.f32 %v4047, %v4135
    %v4144 = vmul.f32 %v3926, %v4048
    %v4145 = vmul.f32 %v3941, %v4049
    %v4146 = vmul.f32 %v3956, %v4050
    %v4147 = vmul.f32 %v3971, %v4051
    %v4148 = vadd.f32 %v4140, %v4144
    %v4149 = vadd.f32 %v4141, %v4145
    %v4150 = vadd.f32 %v4142, %v4146
    %v4151 = vadd.f32 %v4143, %v4147
    %v4152 = vtanh.pop %v4148
    %v4153 = vtanh.pop %v4149
    %v4154 = vtanh.pop %v4150
    %v4155 = vtanh.pop %v4151
    %v4156 = vmul.f32 %v4082, %v4152
    %v4157 = vmul.f32 %v4097, %v4153
    %v4158 = vmul.f32 %v4112, %v4154
    %v4159 = vmul.f32 %v4127, %v4155
    %4164 = vst [vmem:[#allocation1] sm:$0xff] %v4156
    %4165 = vst [vmem:[#allocation1 + $0x9] sm:$0xff] %v4157
    %s4166 = scalar_lea.vmem [#allocation1], 4
    %v4167 = vld [vmem:[%s4166] ss:$9 sm:$0xff]
    %4168 = vst [vmem:[#allocation1] sm:$0xff] %v4158
    %4169 = vst [vmem:[#allocation1 + $0x9] sm:$0xff] %v4159
    %v4170 = vld [vmem:[%s4166] ss:$9 sm:$0xff]
    %s4173 = scalar_lea.vmem [#allocation2], 4
    %4174 = vst.msk [vmem:[%s4173] ss:$8 sm:$0x3] %vm1908, %v4167
    %4175 = vst.msk [vmem:[%s4173] ss:$8 sm:$0x0] %vm1908, %v4167
    %s4176 = scalar_lea.vmem [#allocation2], 20
    %4177 = vst.msk [vmem:[%s4176] ss:$8 sm:$0x3] %vm1908, %v4170
    %4178 = vst.msk [vmem:[%s4176] ss:$8 sm:$0x0] %vm1908, %v4170
    %v4179 = vpack.c.bf16 %v4156, %v4156
    %v4180 = vpack.c.bf16 %v4157, %v4157
    %v4181 = vpack.c.bf16 %v4158, %v4158
    %v4182 = vpack.c.bf16 %v4159, %v4159
    %v4187 = vunpack.c.l.b16 %v4179
    %v4188 = vunpack.c.l.b16 %v4180
    %v4189 = vunpack.c.l.b16 %v4181
    %v4190 = vunpack.c.l.b16 %v4182
    %v4191 = vrot.slane %v4187, 4
    %v4192 = vrot.slane %v4189, 3
    %v4193 = vsel %vm1927, %v4192, %v4191
    %v4194 = vrot.slane %v4188, 4
    %v4195 = vrot.slane %v4190, 3
    %v4196 = vsel %vm1927, %v4195, %v4194
    %v4197 = vpack.c.b16 %v4193, %v4193
    %v4198 = vpack.c.b16 %v4196, %v4196
    %4201 = vmatpush.bf16.msra.mxu0 %v1186
    %4202 = vmatpush.bf16.msra.mxu0 %v1178
    %4203 = vmatpush.bf16.msra.mxu0 %v1170
    %4204 = vmatpush.bf16.msra.mxu0 %v1162
    %4205 = vmatpush.bf16.msra.mxu0 %v1154
    %4206 = vmatpush.bf16.msra.mxu0 %v1146
    %4207 = vmatpush.bf16.msra.mxu0 %v1138
    %4208 = vmatpush.bf16.msra.mxu0 %v1130
    %4209 = vmatmul.bf16.gmra.mxu0 %v4197
    %v4210 = vpop.f32.mrf.mxu0
    %v4211 = vadd.f32 0.0, %v4210
    %v4212 = vpop.f32.mrf.mxu0
    %4213 = vdwg.mxu0
    %4214 = vmatpush.bf16.msra.mxu0 %v1250
    %4215 = vmatpush.bf16.msra.mxu0 %v1242
    %4216 = vmatpush.bf16.msra.mxu0 %v1234
    %4217 = vmatpush.bf16.msra.mxu0 %v1226
    %4218 = vmatpush.bf16.msra.mxu0 %v1218
    %4219 = vmatpush.bf16.msra.mxu0 %v1210
    %4220 = vmatpush.bf16.msra.mxu0 %v1202
    %4221 = vmatpush.bf16.msra.mxu0 %v1194
    %4222 = vmatmul.bf16.gmra.mxu0 %v4198
    %v4223 = vpop.f32.mrf.mxu0
    %v4224 = vadd.f32 %v4211, %v4223
    %v4225 = vpop.f32.mrf.mxu0
    %4226 = vdwg.mxu0
    %4227 = vmatpush.bf16.msra.mxu0 %v1187
    %4228 = vmatpush.bf16.msra.mxu0 %v1179
    %4229 = vmatpush.bf16.msra.mxu0 %v1171
    %4230 = vmatpush.bf16.msra.mxu0 %v1163
    %4231 = vmatpush.bf16.msra.mxu0 %v1155
    %4232 = vmatpush.bf16.msra.mxu0 %v1147
    %4233 = vmatpush.bf16.msra.mxu0 %v1139
    %4234 = vmatpush.bf16.msra.mxu0 %v1131
    %4235 = vmatmul.bf16.gmra.mxu0 %v4197
    %v4236 = vpop.f32.mrf.mxu0
    %v4237 = vadd.f32 0.0, %v4236
    %v4238 = vpop.f32.mrf.mxu0
    %4239 = vdwg.mxu0
    %4240 = vmatpush.bf16.msra.mxu0 %v1251
    %4241 = vmatpush.bf16.msra.mxu0 %v1243
    %4242 = vmatpush.bf16.msra.mxu0 %v1235
    %4243 = vmatpush.bf16.msra.mxu0 %v1227
    %4244 = vmatpush.bf16.msra.mxu0 %v1219
    %4245 = vmatpush.bf16.msra.mxu0 %v1211
    %4246 = vmatpush.bf16.msra.mxu0 %v1203
    %4247 = vmatpush.bf16.msra.mxu0 %v1195
    %4248 = vmatmul.bf16.gmra.mxu0 %v4198
    %v4249 = vpop.f32.mrf.mxu0
    %v4250 = vadd.f32 %v4237, %v4249
    %v4251 = vpop.f32.mrf.mxu0
    %4252 = vdwg.mxu0
    %4253 = vmatpush.bf16.msra.mxu0 %v1188
    %4254 = vmatpush.bf16.msra.mxu0 %v1180
    %4255 = vmatpush.bf16.msra.mxu0 %v1172
    %4256 = vmatpush.bf16.msra.mxu0 %v1164
    %4257 = vmatpush.bf16.msra.mxu0 %v1156
    %4258 = vmatpush.bf16.msra.mxu0 %v1148
    %4259 = vmatpush.bf16.msra.mxu0 %v1140
    %4260 = vmatpush.bf16.msra.mxu0 %v1132
    %4261 = vmatmul.bf16.gmra.mxu0 %v4197
    %v4262 = vpop.f32.mrf.mxu0
    %v4263 = vadd.f32 0.0, %v4262
    %v4264 = vpop.f32.mrf.mxu0
    %4265 = vdwg.mxu0
    %4266 = vmatpush.bf16.msra.mxu0 %v1252
    %4267 = vmatpush.bf16.msra.mxu0 %v1244
    %4268 = vmatpush.bf16.msra.mxu0 %v1236
    %4269 = vmatpush.bf16.msra.mxu0 %v1228
    %4270 = vmatpush.bf16.msra.mxu0 %v1220
    %4271 = vmatpush.bf16.msra.mxu0 %v1212
    %4272 = vmatpush.bf16.msra.mxu0 %v1204
    %4273 = vmatpush.bf16.msra.mxu0 %v1196
    %4274 = vmatmul.bf16.gmra.mxu0 %v4198
    %v4275 = vpop.f32.mrf.mxu0
    %v4276 = vadd.f32 %v4263, %v4275
    %v4277 = vpop.f32.mrf.mxu0
    %4278 = vdwg.mxu0
    %4279 = vmatpush.bf16.msra.mxu0 %v1189
    %4280 = vmatpush.bf16.msra.mxu0 %v1181
    %4281 = vmatpush.bf16.msra.mxu0 %v1173
    %4282 = vmatpush.bf16.msra.mxu0 %v1165
    %4283 = vmatpush.bf16.msra.mxu0 %v1157
    %4284 = vmatpush.bf16.msra.mxu0 %v1149
    %4285 = vmatpush.bf16.msra.mxu0 %v1141
    %4286 = vmatpush.bf16.msra.mxu0 %v1133
    %4287 = vmatmul.bf16.gmra.mxu0 %v4197
    %v4288 = vpop.f32.mrf.mxu0
    %v4289 = vadd.f32 0.0, %v4288
    %v4290 = vpop.f32.mrf.mxu0
    %4291 = vdwg.mxu0
    %4292 = vmatpush.bf16.msra.mxu0 %v1253
    %4293 = vmatpush.bf16.msra.mxu0 %v1245
    %4294 = vmatpush.bf16.msra.mxu0 %v1237
    %4295 = vmatpush.bf16.msra.mxu0 %v1229
    %4296 = vmatpush.bf16.msra.mxu0 %v1221
    %4297 = vmatpush.bf16.msra.mxu0 %v1213
    %4298 = vmatpush.bf16.msra.mxu0 %v1205
    %4299 = vmatpush.bf16.msra.mxu0 %v1197
    %4300 = vmatmul.bf16.gmra.mxu0 %v4198
    %v4301 = vpop.f32.mrf.mxu0
    %v4302 = vadd.f32 %v4289, %v4301
    %v4303 = vpop.f32.mrf.mxu0
    %4304 = vdwg.mxu0
    %4305 = vmatpush.bf16.msra.mxu0 %v1190
    %4306 = vmatpush.bf16.msra.mxu0 %v1182
    %4307 = vmatpush.bf16.msra.mxu0 %v1174
    %4308 = vmatpush.bf16.msra.mxu0 %v1166
    %4309 = vmatpush.bf16.msra.mxu0 %v1158
    %4310 = vmatpush.bf16.msra.mxu0 %v1150
    %4311 = vmatpush.bf16.msra.mxu0 %v1142
    %4312 = vmatpush.bf16.msra.mxu0 %v1134
    %4313 = vmatmul.bf16.gmra.mxu0 %v4197
    %v4314 = vpop.f32.mrf.mxu0
    %v4315 = vadd.f32 0.0, %v4314
    %v4316 = vpop.f32.mrf.mxu0
    %4317 = vdwg.mxu0
    %4318 = vmatpush.bf16.msra.mxu0 %v1254
    %4319 = vmatpush.bf16.msra.mxu0 %v1246
    %4320 = vmatpush.bf16.msra.mxu0 %v1238
    %4321 = vmatpush.bf16.msra.mxu0 %v1230
    %4322 = vmatpush.bf16.msra.mxu0 %v1222
    %4323 = vmatpush.bf16.msra.mxu0 %v1214
    %4324 = vmatpush.bf16.msra.mxu0 %v1206
    %4325 = vmatpush.bf16.msra.mxu0 %v1198
    %4326 = vmatmul.bf16.gmra.mxu0 %v4198
    %v4327 = vpop.f32.mrf.mxu0
    %v4328 = vadd.f32 %v4315, %v4327
    %v4329 = vpop.f32.mrf.mxu0
    %4330 = vdwg.mxu0
    %4331 = vmatpush.bf16.msra.mxu0 %v1191
    %4332 = vmatpush.bf16.msra.mxu0 %v1183
    %4333 = vmatpush.bf16.msra.mxu0 %v1175
    %4334 = vmatpush.bf16.msra.mxu0 %v1167
    %4335 = vmatpush.bf16.msra.mxu0 %v1159
    %4336 = vmatpush.bf16.msra.mxu0 %v1151
    %4337 = vmatpush.bf16.msra.mxu0 %v1143
    %4338 = vmatpush.bf16.msra.mxu0 %v1135
    %4339 = vmatmul.bf16.gmra.mxu0 %v4197
    %v4340 = vpop.f32.mrf.mxu0
    %v4341 = vadd.f32 0.0, %v4340
    %v4342 = vpop.f32.mrf.mxu0
    %4343 = vdwg.mxu0
    %4344 = vmatpush.bf16.msra.mxu0 %v1255
    %4345 = vmatpush.bf16.msra.mxu0 %v1247
    %4346 = vmatpush.bf16.msra.mxu0 %v1239
    %4347 = vmatpush.bf16.msra.mxu0 %v1231
    %4348 = vmatpush.bf16.msra.mxu0 %v1223
    %4349 = vmatpush.bf16.msra.mxu0 %v1215
    %4350 = vmatpush.bf16.msra.mxu0 %v1207
    %4351 = vmatpush.bf16.msra.mxu0 %v1199
    %4352 = vmatmul.bf16.gmra.mxu0 %v4198
    %v4353 = vpop.f32.mrf.mxu0
    %v4354 = vadd.f32 %v4341, %v4353
    %v4355 = vpop.f32.mrf.mxu0
    %4356 = vdwg.mxu0
    %4357 = vmatpush.bf16.msra.mxu0 %v1192
    %4358 = vmatpush.bf16.msra.mxu0 %v1184
    %4359 = vmatpush.bf16.msra.mxu0 %v1176
    %4360 = vmatpush.bf16.msra.mxu0 %v1168
    %4361 = vmatpush.bf16.msra.mxu0 %v1160
    %4362 = vmatpush.bf16.msra.mxu0 %v1152
    %4363 = vmatpush.bf16.msra.mxu0 %v1144
    %4364 = vmatpush.bf16.msra.mxu0 %v1136
    %4365 = vmatmul.bf16.gmra.mxu0 %v4197
    %v4366 = vpop.f32.mrf.mxu0
    %v4367 = vadd.f32 0.0, %v4366
    %v4368 = vpop.f32.mrf.mxu0
    %4369 = vdwg.mxu0
    %4370 = vmatpush.bf16.msra.mxu0 %v1256
    %4371 = vmatpush.bf16.msra.mxu0 %v1248
    %4372 = vmatpush.bf16.msra.mxu0 %v1240
    %4373 = vmatpush.bf16.msra.mxu0 %v1232
    %4374 = vmatpush.bf16.msra.mxu0 %v1224
    %4375 = vmatpush.bf16.msra.mxu0 %v1216
    %4376 = vmatpush.bf16.msra.mxu0 %v1208
    %4377 = vmatpush.bf16.msra.mxu0 %v1200
    %4378 = vmatmul.bf16.gmra.mxu0 %v4198
    %v4379 = vpop.f32.mrf.mxu0
    %v4380 = vadd.f32 %v4367, %v4379
    %v4381 = vpop.f32.mrf.mxu0
    %4382 = vdwg.mxu0
    %4383 = vmatpush.bf16.msra.mxu0 %v1193
    %4384 = vmatpush.bf16.msra.mxu0 %v1185
    %4385 = vmatpush.bf16.msra.mxu0 %v1177
    %4386 = vmatpush.bf16.msra.mxu0 %v1169
    %4387 = vmatpush.bf16.msra.mxu0 %v1161
    %4388 = vmatpush.bf16.msra.mxu0 %v1153
    %4389 = vmatpush.bf16.msra.mxu0 %v1145
    %4390 = vmatpush.bf16.msra.mxu0 %v1137
    %4391 = vmatmul.bf16.gmra.mxu0 %v4197
    %v4392 = vpop.f32.mrf.mxu0
    %v4393 = vadd.f32 0.0, %v4392
    %v4394 = vpop.f32.mrf.mxu0
    %4395 = vdwg.mxu0
    %4396 = vmatpush.bf16.msra.mxu0 %v1257
    %4397 = vmatpush.bf16.msra.mxu0 %v1249
    %4398 = vmatpush.bf16.msra.mxu0 %v1241
    %4399 = vmatpush.bf16.msra.mxu0 %v1233
    %4400 = vmatpush.bf16.msra.mxu0 %v1225
    %4401 = vmatpush.bf16.msra.mxu0 %v1217
    %4402 = vmatpush.bf16.msra.mxu0 %v1209
    %4403 = vmatpush.bf16.msra.mxu0 %v1201
    %4404 = vmatmul.bf16.gmra.mxu0 %v4198
    %v4405 = vpop.f32.mrf.mxu0
    %v4406 = vadd.f32 %v4393, %v4405
    %v4407 = vpop.f32.mrf.mxu0
    %4408 = vdwg.mxu0
    %v4417 = vrot.slane %v4224, 3
    %v4418 = vrot.slane %v4250, 3
    %v4419 = vrot.slane %v4276, 3
    %v4420 = vrot.slane %v4302, 3
    %v4421 = vrot.slane %v4328, 3
    %v4422 = vrot.slane %v4354, 3
    %v4423 = vrot.slane %v4380, 3
    %v4424 = vrot.slane %v4406, 3
    %v4425 = vrot.slane %v4224, 4
    %v4426 = vrot.slane %v4250, 4
    %v4427 = vrot.slane %v4276, 4
    %v4428 = vrot.slane %v4302, 4
    %v4429 = vrot.slane %v4328, 4
    %v4430 = vrot.slane %v4354, 4
    %v4431 = vrot.slane %v4380, 4
    %v4432 = vrot.slane %v4406, 4
    %v4449 = vadd.f32 %v516, %v4417
    %v4450 = vadd.f32 %v530, %v4418
    %v4451 = vadd.f32 %v544, %v4419
    %v4452 = vadd.f32 %v558, %v4420
    %v4453 = vadd.f32 %v572, %v4421
    %v4454 = vadd.f32 %v586, %v4422
    %v4455 = vadd.f32 %v600, %v4423
    %v4456 = vadd.f32 %v614, %v4424
    %v4457 = vadd.f32 %v518, %v4425
    %v4458 = vadd.f32 %v532, %v4426
    %v4459 = vadd.f32 %v546, %v4427
    %v4460 = vadd.f32 %v560, %v4428
    %v4461 = vadd.f32 %v574, %v4429
    %v4462 = vadd.f32 %v588, %v4430
    %v4463 = vadd.f32 %v602, %v4431
    %v4464 = vadd.f32 %v616, %v4432
    %v4465 = vsub.f32 0.0, %v4449
    %v4466 = vsub.f32 0.0, %v4450
    %v4467 = vsub.f32 0.0, %v4457
    %v4468 = vsub.f32 0.0, %v4458
    %v4469 = vmul.f32 %v4465, 1.442695
    %v4470 = vpow.pop %v4469
    %v4471 = vmul.f32 %v4466, 1.442695
    %v4472 = vpow.pop %v4471
    %v4473 = vmul.f32 %v4467, 1.442695
    %v4474 = vpow.pop %v4473
    %v4475 = vmul.f32 %v4468, 1.442695
    %v4476 = vpow.pop %v4475
    %v4477 = vadd.f32 %v4470, 1.0
    %v4478 = vadd.f32 %v4472, 1.0
    %v4479 = vadd.f32 %v4474, 1.0
    %v4480 = vadd.f32 %v4476, 1.0
    %v4481 = vrcp.pop %v4477
    %v4482 = vmul.f32 %v4477, %v4481
    %v4483 = vsub.f32 1.0, %v4482
    %v4484 = vmul.f32 %v4481, %v4483
    %v4485 = vadd.f32 %v4481, %v4484
    %vm4486 = vweird.f32 %v4477
    %vm4487 = vweird.f32 %v4481
    %vm4488 = vmor %vm4486, %vm4487
    %v4489 = vsel %vm4488, %v4481, %v4485
    %v4490 = vand.u32 2147483647, %v4477
    %vm4491 = vcmp.eq.f32.partialorder %v4490, 8.507059e+37
    %v4492 = vand.u32 %v4477, 2147483648
    %v4493 = vor.u32 1.1754944e-38, %v4492
    %v4494 = vsel %vm4491, %v4493, %v4489
    %v4495 = vmul.f32 1.0, %v4494
    %v4496 = vrcp.pop %v4478
    %v4497 = vmul.f32 %v4478, %v4496
    %v4498 = vsub.f32 1.0, %v4497
    %v4499 = vmul.f32 %v4496, %v4498
    %v4500 = vadd.f32 %v4496, %v4499
    %vm4501 = vweird.f32 %v4478
    %vm4502 = vweird.f32 %v4496
    %vm4503 = vmor %vm4501, %vm4502
    %v4504 = vsel %vm4503, %v4496, %v4500
    %v4505 = vand.u32 2147483647, %v4478
    %vm4506 = vcmp.eq.f32.partialorder %v4505, 8.507059e+37
    %v4507 = vand.u32 %v4478, 2147483648
    %v4508 = vor.u32 1.1754944e-38, %v4507
    %v4509 = vsel %vm4506, %v4508, %v4504
    %v4510 = vmul.f32 1.0, %v4509
    %v4511 = vrcp.pop %v4479
    %v4512 = vmul.f32 %v4479, %v4511
    %v4513 = vsub.f32 1.0, %v4512
    %v4514 = vmul.f32 %v4511, %v4513
    %v4515 = vadd.f32 %v4511, %v4514
    %vm4516 = vweird.f32 %v4479
    %vm4517 = vweird.f32 %v4511
    %vm4518 = vmor %vm4516, %vm4517
    %v4519 = vsel %vm4518, %v4511, %v4515
    %v4520 = vand.u32 2147483647, %v4479
    %vm4521 = vcmp.eq.f32.partialorder %v4520, 8.507059e+37
    %v4522 = vand.u32 %v4479, 2147483648
    %v4523 = vor.u32 1.1754944e-38, %v4522
    %v4524 = vsel %vm4521, %v4523, %v4519
    %v4525 = vmul.f32 1.0, %v4524
    %v4526 = vrcp.pop %v4480
    %v4527 = vmul.f32 %v4480, %v4526
    %v4528 = vsub.f32 1.0, %v4527
    %v4529 = vmul.f32 %v4526, %v4528
    %v4530 = vadd.f32 %v4526, %v4529
    %vm4531 = vweird.f32 %v4480
    %vm4532 = vweird.f32 %v4526
    %vm4533 = vmor %vm4531, %vm4532
    %v4534 = vsel %vm4533, %v4526, %v4530
    %v4535 = vand.u32 2147483647, %v4480
    %vm4536 = vcmp.eq.f32.partialorder %v4535, 8.507059e+37
    %v4537 = vand.u32 %v4480, 2147483648
    %v4538 = vor.u32 1.1754944e-38, %v4537
    %v4539 = vsel %vm4536, %v4538, %v4534
    %v4540 = vmul.f32 1.0, %v4539
    %v4541 = vsub.f32 0.0, %v4451
    %v4542 = vsub.f32 0.0, %v4452
    %v4543 = vsub.f32 0.0, %v4459
    %v4544 = vsub.f32 0.0, %v4460
    %v4545 = vmul.f32 %v4541, 1.442695
    %v4546 = vpow.pop %v4545
    %v4547 = vmul.f32 %v4542, 1.442695
    %v4548 = vpow.pop %v4547
    %v4549 = vmul.f32 %v4543, 1.442695
    %v4550 = vpow.pop %v4549
    %v4551 = vmul.f32 %v4544, 1.442695
    %v4552 = vpow.pop %v4551
    %v4553 = vadd.f32 %v4546, 1.0
    %v4554 = vadd.f32 %v4548, 1.0
    %v4555 = vadd.f32 %v4550, 1.0
    %v4556 = vadd.f32 %v4552, 1.0
    %v4557 = vrcp.pop %v4553
    %v4558 = vmul.f32 %v4553, %v4557
    %v4559 = vsub.f32 1.0, %v4558
    %v4560 = vmul.f32 %v4557, %v4559
    %v4561 = vadd.f32 %v4557, %v4560
    %vm4562 = vweird.f32 %v4553
    %vm4563 = vweird.f32 %v4557
    %vm4564 = vmor %vm4562, %vm4563
    %v4565 = vsel %vm4564, %v4557, %v4561
    %v4566 = vand.u32 2147483647, %v4553
    %vm4567 = vcmp.eq.f32.partialorder %v4566, 8.507059e+37
    %v4568 = vand.u32 %v4553, 2147483648
    %v4569 = vor.u32 1.1754944e-38, %v4568
    %v4570 = vsel %vm4567, %v4569, %v4565
    %v4571 = vmul.f32 1.0, %v4570
    %v4572 = vrcp.pop %v4554
    %v4573 = vmul.f32 %v4554, %v4572
    %v4574 = vsub.f32 1.0, %v4573
    %v4575 = vmul.f32 %v4572, %v4574
    %v4576 = vadd.f32 %v4572, %v4575
    %vm4577 = vweird.f32 %v4554
    %vm4578 = vweird.f32 %v4572
    %vm4579 = vmor %vm4577, %vm4578
    %v4580 = vsel %vm4579, %v4572, %v4576
    %v4581 = vand.u32 2147483647, %v4554
    %vm4582 = vcmp.eq.f32.partialorder %v4581, 8.507059e+37
    %v4583 = vand.u32 %v4554, 2147483648
    %v4584 = vor.u32 1.1754944e-38, %v4583
    %v4585 = vsel %vm4582, %v4584, %v4580
    %v4586 = vmul.f32 1.0, %v4585
    %v4587 = vrcp.pop %v4555
    %v4588 = vmul.f32 %v4555, %v4587
    %v4589 = vsub.f32 1.0, %v4588
    %v4590 = vmul.f32 %v4587, %v4589
    %v4591 = vadd.f32 %v4587, %v4590
    %vm4592 = vweird.f32 %v4555
    %vm4593 = vweird.f32 %v4587
    %vm4594 = vmor %vm4592, %vm4593
    %v4595 = vsel %vm4594, %v4587, %v4591
    %v4596 = vand.u32 2147483647, %v4555
    %vm4597 = vcmp.eq.f32.partialorder %v4596, 8.507059e+37
    %v4598 = vand.u32 %v4555, 2147483648
    %v4599 = vor.u32 1.1754944e-38, %v4598
    %v4600 = vsel %vm4597, %v4599, %v4595
    %v4601 = vmul.f32 1.0, %v4600
    %v4602 = vrcp.pop %v4556
    %v4603 = vmul.f32 %v4556, %v4602
    %v4604 = vsub.f32 1.0, %v4603
    %v4605 = vmul.f32 %v4602, %v4604
    %v4606 = vadd.f32 %v4602, %v4605
    %vm4607 = vweird.f32 %v4556
    %vm4608 = vweird.f32 %v4602
    %vm4609 = vmor %vm4607, %vm4608
    %v4610 = vsel %vm4609, %v4602, %v4606
    %v4611 = vand.u32 2147483647, %v4556
    %vm4612 = vcmp.eq.f32.partialorder %v4611, 8.507059e+37
    %v4613 = vand.u32 %v4556, 2147483648
    %v4614 = vor.u32 1.1754944e-38, %v4613
    %v4615 = vsel %vm4612, %v4614, %v4610
    %v4616 = vmul.f32 1.0, %v4615
    %v4617 = vtanh.pop %v4453
    %v4618 = vtanh.pop %v4454
    %v4619 = vtanh.pop %v4461
    %v4620 = vtanh.pop %v4462
    %v4621 = vsub.f32 0.0, %v4455
    %v4622 = vsub.f32 0.0, %v4456
    %v4623 = vsub.f32 0.0, %v4463
    %v4624 = vsub.f32 0.0, %v4464
    %v4625 = vmul.f32 %v4621, 1.442695
    %v4626 = vpow.pop %v4625
    %v4627 = vmul.f32 %v4622, 1.442695
    %v4628 = vpow.pop %v4627
    %v4629 = vmul.f32 %v4623, 1.442695
    %v4630 = vpow.pop %v4629
    %v4631 = vmul.f32 %v4624, 1.442695
    %v4632 = vpow.pop %v4631
    %v4633 = vadd.f32 %v4626, 1.0
    %v4634 = vadd.f32 %v4628, 1.0
    %v4635 = vadd.f32 %v4630, 1.0
    %v4636 = vadd.f32 %v4632, 1.0
    %v4637 = vrcp.pop %v4633
    %v4638 = vmul.f32 %v4633, %v4637
    %v4639 = vsub.f32 1.0, %v4638
    %v4640 = vmul.f32 %v4637, %v4639
    %v4641 = vadd.f32 %v4637, %v4640
    %vm4642 = vweird.f32 %v4633
    %vm4643 = vweird.f32 %v4637
    %vm4644 = vmor %vm4642, %vm4643
    %v4645 = vsel %vm4644, %v4637, %v4641
    %v4646 = vand.u32 2147483647, %v4633
    %vm4647 = vcmp.eq.f32.partialorder %v4646, 8.507059e+37
    %v4648 = vand.u32 %v4633, 2147483648
    %v4649 = vor.u32 1.1754944e-38, %v4648
    %v4650 = vsel %vm4647, %v4649, %v4645
    %v4651 = vmul.f32 1.0, %v4650
    %v4652 = vrcp.pop %v4634
    %v4653 = vmul.f32 %v4634, %v4652
    %v4654 = vsub.f32 1.0, %v4653
    %v4655 = vmul.f32 %v4652, %v4654
    %v4656 = vadd.f32 %v4652, %v4655
    %vm4657 = vweird.f32 %v4634
    %vm4658 = vweird.f32 %v4652
    %vm4659 = vmor %vm4657, %vm4658
    %v4660 = vsel %vm4659, %v4652, %v4656
    %v4661 = vand.u32 2147483647, %v4634
    %vm4662 = vcmp.eq.f32.partialorder %v4661, 8.507059e+37
    %v4663 = vand.u32 %v4634, 2147483648
    %v4664 = vor.u32 1.1754944e-38, %v4663
    %v4665 = vsel %vm4662, %v4664, %v4660
    %v4666 = vmul.f32 1.0, %v4665
    %v4667 = vrcp.pop %v4635
    %v4668 = vmul.f32 %v4635, %v4667
    %v4669 = vsub.f32 1.0, %v4668
    %v4670 = vmul.f32 %v4667, %v4669
    %v4671 = vadd.f32 %v4667, %v4670
    %vm4672 = vweird.f32 %v4635
    %vm4673 = vweird.f32 %v4667
    %vm4674 = vmor %vm4672, %vm4673
    %v4675 = vsel %vm4674, %v4667, %v4671
    %v4676 = vand.u32 2147483647, %v4635
    %vm4677 = vcmp.eq.f32.partialorder %v4676, 8.507059e+37
    %v4678 = vand.u32 %v4635, 2147483648
    %v4679 = vor.u32 1.1754944e-38, %v4678
    %v4680 = vsel %vm4677, %v4679, %v4675
    %v4681 = vmul.f32 1.0, %v4680
    %v4682 = vrcp.pop %v4636
    %v4683 = vmul.f32 %v4636, %v4682
    %v4684 = vsub.f32 1.0, %v4683
    %v4685 = vmul.f32 %v4682, %v4684
    %v4686 = vadd.f32 %v4682, %v4685
    %vm4687 = vweird.f32 %v4636
    %vm4688 = vweird.f32 %v4682
    %vm4689 = vmor %vm4687, %vm4688
    %v4690 = vsel %vm4689, %v4682, %v4686
    %v4691 = vand.u32 2147483647, %v4636
    %vm4692 = vcmp.eq.f32.partialorder %v4691, 8.507059e+37
    %v4693 = vand.u32 %v4636, 2147483648
    %v4694 = vor.u32 1.1754944e-38, %v4693
    %v4695 = vsel %vm4692, %v4694, %v4690
    %v4696 = vmul.f32 1.0, %v4695
    %v4701 = vrot.slane %v4148, 7
    %v4702 = vrot.slane %v4149, 7
    %v4703 = vrot.slane %v4150, 7
    %v4704 = vrot.slane %v4151, 7
    %v4709 = vmul.f32 %v4571, %v4701
    %v4710 = vmul.f32 %v4586, %v4702
    %v4711 = vmul.f32 %v4601, %v4703
    %v4712 = vmul.f32 %v4616, %v4704
    %v4713 = vmul.f32 %v4495, %v4617
    %v4714 = vmul.f32 %v4510, %v4618
    %v4715 = vmul.f32 %v4525, %v4619
    %v4716 = vmul.f32 %v4540, %v4620
    %v4717 = vadd.f32 %v4709, %v4713
    %v4718 = vadd.f32 %v4710, %v4714
    %v4719 = vadd.f32 %v4711, %v4715
    %v4720 = vadd.f32 %v4712, %v4716
    %v4721 = vtanh.pop %v4717
    %v4722 = vtanh.pop %v4718
    %v4723 = vtanh.pop %v4719
    %v4724 = vtanh.pop %v4720
    %v4725 = vmul.f32 %v4651, %v4721
    %v4726 = vmul.f32 %v4666, %v4722
    %v4727 = vmul.f32 %v4681, %v4723
    %v4728 = vmul.f32 %v4696, %v4724
    %4733 = vst [vmem:[#allocation1] sm:$0xff] %v4725
    %4734 = vst [vmem:[#allocation1 + $0x9] sm:$0xff] %v4726
    %s4735 = scalar_lea.vmem [#allocation1], 5
    %v4736 = vld [vmem:[%s4735] ss:$9 sm:$0xff]
    %4737 = vst [vmem:[#allocation1] sm:$0xff] %v4727
    %4738 = vst [vmem:[#allocation1 + $0x9] sm:$0xff] %v4728
    %v4739 = vld [vmem:[%s4735] ss:$9 sm:$0xff]
    %s4742 = scalar_lea.vmem [#allocation2], 5
    %4743 = vst.msk [vmem:[%s4742] ss:$8 sm:$0x3] %vm1908, %v4736
    %4744 = vst.msk [vmem:[%s4742] ss:$8 sm:$0x0] %vm1908, %v4736
    %s4745 = scalar_lea.vmem [#allocation2], 21
    %4746 = vst.msk [vmem:[%s4745] ss:$8 sm:$0x3] %vm1908, %v4739
    %4747 = vst.msk [vmem:[%s4745] ss:$8 sm:$0x0] %vm1908, %v4739
    %v4748 = vpack.c.bf16 %v4725, %v4725
    %v4749 = vpack.c.bf16 %v4726, %v4726
    %v4750 = vpack.c.bf16 %v4727, %v4727
    %v4751 = vpack.c.bf16 %v4728, %v4728
    %v4756 = vunpack.c.l.b16 %v4748
    %v4757 = vunpack.c.l.b16 %v4749
    %v4758 = vunpack.c.l.b16 %v4750
    %v4759 = vunpack.c.l.b16 %v4751
    %v4760 = vrot.slane %v4756, 5
    %v4761 = vrot.slane %v4758, 4
    %v4762 = vsel %vm1927, %v4761, %v4760
    %v4763 = vrot.slane %v4757, 5
    %v4764 = vrot.slane %v4759, 4
    %v4765 = vsel %vm1927, %v4764, %v4763
    %v4766 = vpack.c.b16 %v4762, %v4762
    %v4767 = vpack.c.b16 %v4765, %v4765
    %4770 = vmatpush.bf16.msra.mxu0 %v1186
    %4771 = vmatpush.bf16.msra.mxu0 %v1178
    %4772 = vmatpush.bf16.msra.mxu0 %v1170
    %4773 = vmatpush.bf16.msra.mxu0 %v1162
    %4774 = vmatpush.bf16.msra.mxu0 %v1154
    %4775 = vmatpush.bf16.msra.mxu0 %v1146
    %4776 = vmatpush.bf16.msra.mxu0 %v1138
    %4777 = vmatpush.bf16.msra.mxu0 %v1130
    %4778 = vmatmul.bf16.gmra.mxu0 %v4766
    %v4779 = vpop.f32.mrf.mxu0
    %v4780 = vadd.f32 0.0, %v4779
    %v4781 = vpop.f32.mrf.mxu0
    %4782 = vdwg.mxu0
    %4783 = vmatpush.bf16.msra.mxu0 %v1250
    %4784 = vmatpush.bf16.msra.mxu0 %v1242
    %4785 = vmatpush.bf16.msra.mxu0 %v1234
    %4786 = vmatpush.bf16.msra.mxu0 %v1226
    %4787 = vmatpush.bf16.msra.mxu0 %v1218
    %4788 = vmatpush.bf16.msra.mxu0 %v1210
    %4789 = vmatpush.bf16.msra.mxu0 %v1202
    %4790 = vmatpush.bf16.msra.mxu0 %v1194
    %4791 = vmatmul.bf16.gmra.mxu0 %v4767
    %v4792 = vpop.f32.mrf.mxu0
    %v4793 = vadd.f32 %v4780, %v4792
    %v4794 = vpop.f32.mrf.mxu0
    %4795 = vdwg.mxu0
    %4796 = vmatpush.bf16.msra.mxu0 %v1187
    %4797 = vmatpush.bf16.msra.mxu0 %v1179
    %4798 = vmatpush.bf16.msra.mxu0 %v1171
    %4799 = vmatpush.bf16.msra.mxu0 %v1163
    %4800 = vmatpush.bf16.msra.mxu0 %v1155
    %4801 = vmatpush.bf16.msra.mxu0 %v1147
    %4802 = vmatpush.bf16.msra.mxu0 %v1139
    %4803 = vmatpush.bf16.msra.mxu0 %v1131
    %4804 = vmatmul.bf16.gmra.mxu0 %v4766
    %v4805 = vpop.f32.mrf.mxu0
    %v4806 = vadd.f32 0.0, %v4805
    %v4807 = vpop.f32.mrf.mxu0
    %4808 = vdwg.mxu0
    %4809 = vmatpush.bf16.msra.mxu0 %v1251
    %4810 = vmatpush.bf16.msra.mxu0 %v1243
    %4811 = vmatpush.bf16.msra.mxu0 %v1235
    %4812 = vmatpush.bf16.msra.mxu0 %v1227
    %4813 = vmatpush.bf16.msra.mxu0 %v1219
    %4814 = vmatpush.bf16.msra.mxu0 %v1211
    %4815 = vmatpush.bf16.msra.mxu0 %v1203
    %4816 = vmatpush.bf16.msra.mxu0 %v1195
    %4817 = vmatmul.bf16.gmra.mxu0 %v4767
    %v4818 = vpop.f32.mrf.mxu0
    %v4819 = vadd.f32 %v4806, %v4818
    %v4820 = vpop.f32.mrf.mxu0
    %4821 = vdwg.mxu0
    %4822 = vmatpush.bf16.msra.mxu0 %v1188
    %4823 = vmatpush.bf16.msra.mxu0 %v1180
    %4824 = vmatpush.bf16.msra.mxu0 %v1172
    %4825 = vmatpush.bf16.msra.mxu0 %v1164
    %4826 = vmatpush.bf16.msra.mxu0 %v1156
    %4827 = vmatpush.bf16.msra.mxu0 %v1148
    %4828 = vmatpush.bf16.msra.mxu0 %v1140
    %4829 = vmatpush.bf16.msra.mxu0 %v1132
    %4830 = vmatmul.bf16.gmra.mxu0 %v4766
    %v4831 = vpop.f32.mrf.mxu0
    %v4832 = vadd.f32 0.0, %v4831
    %v4833 = vpop.f32.mrf.mxu0
    %4834 = vdwg.mxu0
    %4835 = vmatpush.bf16.msra.mxu0 %v1252
    %4836 = vmatpush.bf16.msra.mxu0 %v1244
    %4837 = vmatpush.bf16.msra.mxu0 %v1236
    %4838 = vmatpush.bf16.msra.mxu0 %v1228
    %4839 = vmatpush.bf16.msra.mxu0 %v1220
    %4840 = vmatpush.bf16.msra.mxu0 %v1212
    %4841 = vmatpush.bf16.msra.mxu0 %v1204
    %4842 = vmatpush.bf16.msra.mxu0 %v1196
    %4843 = vmatmul.bf16.gmra.mxu0 %v4767
    %v4844 = vpop.f32.mrf.mxu0
    %v4845 = vadd.f32 %v4832, %v4844
    %v4846 = vpop.f32.mrf.mxu0
    %4847 = vdwg.mxu0
    %4848 = vmatpush.bf16.msra.mxu0 %v1189
    %4849 = vmatpush.bf16.msra.mxu0 %v1181
    %4850 = vmatpush.bf16.msra.mxu0 %v1173
    %4851 = vmatpush.bf16.msra.mxu0 %v1165
    %4852 = vmatpush.bf16.msra.mxu0 %v1157
    %4853 = vmatpush.bf16.msra.mxu0 %v1149
    %4854 = vmatpush.bf16.msra.mxu0 %v1141
    %4855 = vmatpush.bf16.msra.mxu0 %v1133
    %4856 = vmatmul.bf16.gmra.mxu0 %v4766
    %v4857 = vpop.f32.mrf.mxu0
    %v4858 = vadd.f32 0.0, %v4857
    %v4859 = vpop.f32.mrf.mxu0
    %4860 = vdwg.mxu0
    %4861 = vmatpush.bf16.msra.mxu0 %v1253
    %4862 = vmatpush.bf16.msra.mxu0 %v1245
    %4863 = vmatpush.bf16.msra.mxu0 %v1237
    %4864 = vmatpush.bf16.msra.mxu0 %v1229
    %4865 = vmatpush.bf16.msra.mxu0 %v1221
    %4866 = vmatpush.bf16.msra.mxu0 %v1213
    %4867 = vmatpush.bf16.msra.mxu0 %v1205
    %4868 = vmatpush.bf16.msra.mxu0 %v1197
    %4869 = vmatmul.bf16.gmra.mxu0 %v4767
    %v4870 = vpop.f32.mrf.mxu0
    %v4871 = vadd.f32 %v4858, %v4870
    %v4872 = vpop.f32.mrf.mxu0
    %4873 = vdwg.mxu0
    %4874 = vmatpush.bf16.msra.mxu0 %v1190
    %4875 = vmatpush.bf16.msra.mxu0 %v1182
    %4876 = vmatpush.bf16.msra.mxu0 %v1174
    %4877 = vmatpush.bf16.msra.mxu0 %v1166
    %4878 = vmatpush.bf16.msra.mxu0 %v1158
    %4879 = vmatpush.bf16.msra.mxu0 %v1150
    %4880 = vmatpush.bf16.msra.mxu0 %v1142
    %4881 = vmatpush.bf16.msra.mxu0 %v1134
    %4882 = vmatmul.bf16.gmra.mxu0 %v4766
    %v4883 = vpop.f32.mrf.mxu0
    %v4884 = vadd.f32 0.0, %v4883
    %v4885 = vpop.f32.mrf.mxu0
    %4886 = vdwg.mxu0
    %4887 = vmatpush.bf16.msra.mxu0 %v1254
    %4888 = vmatpush.bf16.msra.mxu0 %v1246
    %4889 = vmatpush.bf16.msra.mxu0 %v1238
    %4890 = vmatpush.bf16.msra.mxu0 %v1230
    %4891 = vmatpush.bf16.msra.mxu0 %v1222
    %4892 = vmatpush.bf16.msra.mxu0 %v1214
    %4893 = vmatpush.bf16.msra.mxu0 %v1206
    %4894 = vmatpush.bf16.msra.mxu0 %v1198
    %4895 = vmatmul.bf16.gmra.mxu0 %v4767
    %v4896 = vpop.f32.mrf.mxu0
    %v4897 = vadd.f32 %v4884, %v4896
    %v4898 = vpop.f32.mrf.mxu0
    %4899 = vdwg.mxu0
    %4900 = vmatpush.bf16.msra.mxu0 %v1191
    %4901 = vmatpush.bf16.msra.mxu0 %v1183
    %4902 = vmatpush.bf16.msra.mxu0 %v1175
    %4903 = vmatpush.bf16.msra.mxu0 %v1167
    %4904 = vmatpush.bf16.msra.mxu0 %v1159
    %4905 = vmatpush.bf16.msra.mxu0 %v1151
    %4906 = vmatpush.bf16.msra.mxu0 %v1143
    %4907 = vmatpush.bf16.msra.mxu0 %v1135
    %4908 = vmatmul.bf16.gmra.mxu0 %v4766
    %v4909 = vpop.f32.mrf.mxu0
    %v4910 = vadd.f32 0.0, %v4909
    %v4911 = vpop.f32.mrf.mxu0
    %4912 = vdwg.mxu0
    %4913 = vmatpush.bf16.msra.mxu0 %v1255
    %4914 = vmatpush.bf16.msra.mxu0 %v1247
    %4915 = vmatpush.bf16.msra.mxu0 %v1239
    %4916 = vmatpush.bf16.msra.mxu0 %v1231
    %4917 = vmatpush.bf16.msra.mxu0 %v1223
    %4918 = vmatpush.bf16.msra.mxu0 %v1215
    %4919 = vmatpush.bf16.msra.mxu0 %v1207
    %4920 = vmatpush.bf16.msra.mxu0 %v1199
    %4921 = vmatmul.bf16.gmra.mxu0 %v4767
    %v4922 = vpop.f32.mrf.mxu0
    %v4923 = vadd.f32 %v4910, %v4922
    %v4924 = vpop.f32.mrf.mxu0
    %4925 = vdwg.mxu0
    %4926 = vmatpush.bf16.msra.mxu0 %v1192
    %4927 = vmatpush.bf16.msra.mxu0 %v1184
    %4928 = vmatpush.bf16.msra.mxu0 %v1176
    %4929 = vmatpush.bf16.msra.mxu0 %v1168
    %4930 = vmatpush.bf16.msra.mxu0 %v1160
    %4931 = vmatpush.bf16.msra.mxu0 %v1152
    %4932 = vmatpush.bf16.msra.mxu0 %v1144
    %4933 = vmatpush.bf16.msra.mxu0 %v1136
    %4934 = vmatmul.bf16.gmra.mxu0 %v4766
    %v4935 = vpop.f32.mrf.mxu0
    %v4936 = vadd.f32 0.0, %v4935
    %v4937 = vpop.f32.mrf.mxu0
    %4938 = vdwg.mxu0
    %4939 = vmatpush.bf16.msra.mxu0 %v1256
    %4940 = vmatpush.bf16.msra.mxu0 %v1248
    %4941 = vmatpush.bf16.msra.mxu0 %v1240
    %4942 = vmatpush.bf16.msra.mxu0 %v1232
    %4943 = vmatpush.bf16.msra.mxu0 %v1224
    %4944 = vmatpush.bf16.msra.mxu0 %v1216
    %4945 = vmatpush.bf16.msra.mxu0 %v1208
    %4946 = vmatpush.bf16.msra.mxu0 %v1200
    %4947 = vmatmul.bf16.gmra.mxu0 %v4767
    %v4948 = vpop.f32.mrf.mxu0
    %v4949 = vadd.f32 %v4936, %v4948
    %v4950 = vpop.f32.mrf.mxu0
    %4951 = vdwg.mxu0
    %4952 = vmatpush.bf16.msra.mxu0 %v1193
    %4953 = vmatpush.bf16.msra.mxu0 %v1185
    %4954 = vmatpush.bf16.msra.mxu0 %v1177
    %4955 = vmatpush.bf16.msra.mxu0 %v1169
    %4956 = vmatpush.bf16.msra.mxu0 %v1161
    %4957 = vmatpush.bf16.msra.mxu0 %v1153
    %4958 = vmatpush.bf16.msra.mxu0 %v1145
    %4959 = vmatpush.bf16.msra.mxu0 %v1137
    %4960 = vmatmul.bf16.gmra.mxu0 %v4766
    %v4961 = vpop.f32.mrf.mxu0
    %v4962 = vadd.f32 0.0, %v4961
    %v4963 = vpop.f32.mrf.mxu0
    %4964 = vdwg.mxu0
    %4965 = vmatpush.bf16.msra.mxu0 %v1257
    %4966 = vmatpush.bf16.msra.mxu0 %v1249
    %4967 = vmatpush.bf16.msra.mxu0 %v1241
    %4968 = vmatpush.bf16.msra.mxu0 %v1233
    %4969 = vmatpush.bf16.msra.mxu0 %v1225
    %4970 = vmatpush.bf16.msra.mxu0 %v1217
    %4971 = vmatpush.bf16.msra.mxu0 %v1209
    %4972 = vmatpush.bf16.msra.mxu0 %v1201
    %4973 = vmatmul.bf16.gmra.mxu0 %v4767
    %v4974 = vpop.f32.mrf.mxu0
    %v4975 = vadd.f32 %v4962, %v4974
    %v4976 = vpop.f32.mrf.mxu0
    %4977 = vdwg.mxu0
    %v4986 = vrot.slane %v4793, 2
    %v4987 = vrot.slane %v4819, 2
    %v4988 = vrot.slane %v4845, 2
    %v4989 = vrot.slane %v4871, 2
    %v4990 = vrot.slane %v4897, 2
    %v4991 = vrot.slane %v4923, 2
    %v4992 = vrot.slane %v4949, 2
    %v4993 = vrot.slane %v4975, 2
    %v4994 = vrot.slane %v4793, 3
    %v4995 = vrot.slane %v4819, 3
    %v4996 = vrot.slane %v4845, 3
    %v4997 = vrot.slane %v4871, 3
    %v4998 = vrot.slane %v4897, 3
    %v4999 = vrot.slane %v4923, 3
    %v5000 = vrot.slane %v4949, 3
    %v5001 = vrot.slane %v4975, 3
    %v5018 = vadd.f32 %v516, %v4986
    %v5019 = vadd.f32 %v530, %v4987
    %v5020 = vadd.f32 %v544, %v4988
    %v5021 = vadd.f32 %v558, %v4989
    %v5022 = vadd.f32 %v572, %v4990
    %v5023 = vadd.f32 %v586, %v4991
    %v5024 = vadd.f32 %v600, %v4992
    %v5025 = vadd.f32 %v614, %v4993
    %v5026 = vadd.f32 %v518, %v4994
    %v5027 = vadd.f32 %v532, %v4995
    %v5028 = vadd.f32 %v546, %v4996
    %v5029 = vadd.f32 %v560, %v4997
    %v5030 = vadd.f32 %v574, %v4998
    %v5031 = vadd.f32 %v588, %v4999
    %v5032 = vadd.f32 %v602, %v5000
    %v5033 = vadd.f32 %v616, %v5001
    %v5034 = vsub.f32 0.0, %v5018
    %v5035 = vsub.f32 0.0, %v5019
    %v5036 = vsub.f32 0.0, %v5026
    %v5037 = vsub.f32 0.0, %v5027
    %v5038 = vmul.f32 %v5034, 1.442695
    %v5039 = vpow.pop %v5038
    %v5040 = vmul.f32 %v5035, 1.442695
    %v5041 = vpow.pop %v5040
    %v5042 = vmul.f32 %v5036, 1.442695
    %v5043 = vpow.pop %v5042
    %v5044 = vmul.f32 %v5037, 1.442695
    %v5045 = vpow.pop %v5044
    %v5046 = vadd.f32 %v5039, 1.0
    %v5047 = vadd.f32 %v5041, 1.0
    %v5048 = vadd.f32 %v5043, 1.0
    %v5049 = vadd.f32 %v5045, 1.0
    %v5050 = vrcp.pop %v5046
    %v5051 = vmul.f32 %v5046, %v5050
    %v5052 = vsub.f32 1.0, %v5051
    %v5053 = vmul.f32 %v5050, %v5052
    %v5054 = vadd.f32 %v5050, %v5053
    %vm5055 = vweird.f32 %v5046
    %vm5056 = vweird.f32 %v5050
    %vm5057 = vmor %vm5055, %vm5056
    %v5058 = vsel %vm5057, %v5050, %v5054
    %v5059 = vand.u32 2147483647, %v5046
    %vm5060 = vcmp.eq.f32.partialorder %v5059, 8.507059e+37
    %v5061 = vand.u32 %v5046, 2147483648
    %v5062 = vor.u32 1.1754944e-38, %v5061
    %v5063 = vsel %vm5060, %v5062, %v5058
    %v5064 = vmul.f32 1.0, %v5063
    %v5065 = vrcp.pop %v5047
    %v5066 = vmul.f32 %v5047, %v5065
    %v5067 = vsub.f32 1.0, %v5066
    %v5068 = vmul.f32 %v5065, %v5067
    %v5069 = vadd.f32 %v5065, %v5068
    %vm5070 = vweird.f32 %v5047
    %vm5071 = vweird.f32 %v5065
    %vm5072 = vmor %vm5070, %vm5071
    %v5073 = vsel %vm5072, %v5065, %v5069
    %v5074 = vand.u32 2147483647, %v5047
    %vm5075 = vcmp.eq.f32.partialorder %v5074, 8.507059e+37
    %v5076 = vand.u32 %v5047, 2147483648
    %v5077 = vor.u32 1.1754944e-38, %v5076
    %v5078 = vsel %vm5075, %v5077, %v5073
    %v5079 = vmul.f32 1.0, %v5078
    %v5080 = vrcp.pop %v5048
    %v5081 = vmul.f32 %v5048, %v5080
    %v5082 = vsub.f32 1.0, %v5081
    %v5083 = vmul.f32 %v5080, %v5082
    %v5084 = vadd.f32 %v5080, %v5083
    %vm5085 = vweird.f32 %v5048
    %vm5086 = vweird.f32 %v5080
    %vm5087 = vmor %vm5085, %vm5086
    %v5088 = vsel %vm5087, %v5080, %v5084
    %v5089 = vand.u32 2147483647, %v5048
    %vm5090 = vcmp.eq.f32.partialorder %v5089, 8.507059e+37
    %v5091 = vand.u32 %v5048, 2147483648
    %v5092 = vor.u32 1.1754944e-38, %v5091
    %v5093 = vsel %vm5090, %v5092, %v5088
    %v5094 = vmul.f32 1.0, %v5093
    %v5095 = vrcp.pop %v5049
    %v5096 = vmul.f32 %v5049, %v5095
    %v5097 = vsub.f32 1.0, %v5096
    %v5098 = vmul.f32 %v5095, %v5097
    %v5099 = vadd.f32 %v5095, %v5098
    %vm5100 = vweird.f32 %v5049
    %vm5101 = vweird.f32 %v5095
    %vm5102 = vmor %vm5100, %vm5101
    %v5103 = vsel %vm5102, %v5095, %v5099
    %v5104 = vand.u32 2147483647, %v5049
    %vm5105 = vcmp.eq.f32.partialorder %v5104, 8.507059e+37
    %v5106 = vand.u32 %v5049, 2147483648
    %v5107 = vor.u32 1.1754944e-38, %v5106
    %v5108 = vsel %vm5105, %v5107, %v5103
    %v5109 = vmul.f32 1.0, %v5108
    %v5110 = vsub.f32 0.0, %v5020
    %v5111 = vsub.f32 0.0, %v5021
    %v5112 = vsub.f32 0.0, %v5028
    %v5113 = vsub.f32 0.0, %v5029
    %v5114 = vmul.f32 %v5110, 1.442695
    %v5115 = vpow.pop %v5114
    %v5116 = vmul.f32 %v5111, 1.442695
    %v5117 = vpow.pop %v5116
    %v5118 = vmul.f32 %v5112, 1.442695
    %v5119 = vpow.pop %v5118
    %v5120 = vmul.f32 %v5113, 1.442695
    %v5121 = vpow.pop %v5120
    %v5122 = vadd.f32 %v5115, 1.0
    %v5123 = vadd.f32 %v5117, 1.0
    %v5124 = vadd.f32 %v5119, 1.0
    %v5125 = vadd.f32 %v5121, 1.0
    %v5126 = vrcp.pop %v5122
    %v5127 = vmul.f32 %v5122, %v5126
    %v5128 = vsub.f32 1.0, %v5127
    %v5129 = vmul.f32 %v5126, %v5128
    %v5130 = vadd.f32 %v5126, %v5129
    %vm5131 = vweird.f32 %v5122
    %vm5132 = vweird.f32 %v5126
    %vm5133 = vmor %vm5131, %vm5132
    %v5134 = vsel %vm5133, %v5126, %v5130
    %v5135 = vand.u32 2147483647, %v5122
    %vm5136 = vcmp.eq.f32.partialorder %v5135, 8.507059e+37
    %v5137 = vand.u32 %v5122, 2147483648
    %v5138 = vor.u32 1.1754944e-38, %v5137
    %v5139 = vsel %vm5136, %v5138, %v5134
    %v5140 = vmul.f32 1.0, %v5139
    %v5141 = vrcp.pop %v5123
    %v5142 = vmul.f32 %v5123, %v5141
    %v5143 = vsub.f32 1.0, %v5142
    %v5144 = vmul.f32 %v5141, %v5143
    %v5145 = vadd.f32 %v5141, %v5144
    %vm5146 = vweird.f32 %v5123
    %vm5147 = vweird.f32 %v5141
    %vm5148 = vmor %vm5146, %vm5147
    %v5149 = vsel %vm5148, %v5141, %v5145
    %v5150 = vand.u32 2147483647, %v5123
    %vm5151 = vcmp.eq.f32.partialorder %v5150, 8.507059e+37
    %v5152 = vand.u32 %v5123, 2147483648
    %v5153 = vor.u32 1.1754944e-38, %v5152
    %v5154 = vsel %vm5151, %v5153, %v5149
    %v5155 = vmul.f32 1.0, %v5154
    %v5156 = vrcp.pop %v5124
    %v5157 = vmul.f32 %v5124, %v5156
    %v5158 = vsub.f32 1.0, %v5157
    %v5159 = vmul.f32 %v5156, %v5158
    %v5160 = vadd.f32 %v5156, %v5159
    %vm5161 = vweird.f32 %v5124
    %vm5162 = vweird.f32 %v5156
    %vm5163 = vmor %vm5161, %vm5162
    %v5164 = vsel %vm5163, %v5156, %v5160
    %v5165 = vand.u32 2147483647, %v5124
    %vm5166 = vcmp.eq.f32.partialorder %v5165, 8.507059e+37
    %v5167 = vand.u32 %v5124, 2147483648
    %v5168 = vor.u32 1.1754944e-38, %v5167
    %v5169 = vsel %vm5166, %v5168, %v5164
    %v5170 = vmul.f32 1.0, %v5169
    %v5171 = vrcp.pop %v5125
    %v5172 = vmul.f32 %v5125, %v5171
    %v5173 = vsub.f32 1.0, %v5172
    %v5174 = vmul.f32 %v5171, %v5173
    %v5175 = vadd.f32 %v5171, %v5174
    %vm5176 = vweird.f32 %v5125
    %vm5177 = vweird.f32 %v5171
    %vm5178 = vmor %vm5176, %vm5177
    %v5179 = vsel %vm5178, %v5171, %v5175
    %v5180 = vand.u32 2147483647, %v5125
    %vm5181 = vcmp.eq.f32.partialorder %v5180, 8.507059e+37
    %v5182 = vand.u32 %v5125, 2147483648
    %v5183 = vor.u32 1.1754944e-38, %v5182
    %v5184 = vsel %vm5181, %v5183, %v5179
    %v5185 = vmul.f32 1.0, %v5184
    %v5186 = vtanh.pop %v5022
    %v5187 = vtanh.pop %v5023
    %v5188 = vtanh.pop %v5030
    %v5189 = vtanh.pop %v5031
    %v5190 = vsub.f32 0.0, %v5024
    %v5191 = vsub.f32 0.0, %v5025
    %v5192 = vsub.f32 0.0, %v5032
    %v5193 = vsub.f32 0.0, %v5033
    %v5194 = vmul.f32 %v5190, 1.442695
    %v5195 = vpow.pop %v5194
    %v5196 = vmul.f32 %v5191, 1.442695
    %v5197 = vpow.pop %v5196
    %v5198 = vmul.f32 %v5192, 1.442695
    %v5199 = vpow.pop %v5198
    %v5200 = vmul.f32 %v5193, 1.442695
    %v5201 = vpow.pop %v5200
    %v5202 = vadd.f32 %v5195, 1.0
    %v5203 = vadd.f32 %v5197, 1.0
    %v5204 = vadd.f32 %v5199, 1.0
    %v5205 = vadd.f32 %v5201, 1.0
    %v5206 = vrcp.pop %v5202
    %v5207 = vmul.f32 %v5202, %v5206
    %v5208 = vsub.f32 1.0, %v5207
    %v5209 = vmul.f32 %v5206, %v5208
    %v5210 = vadd.f32 %v5206, %v5209
    %vm5211 = vweird.f32 %v5202
    %vm5212 = vweird.f32 %v5206
    %vm5213 = vmor %vm5211, %vm5212
    %v5214 = vsel %vm5213, %v5206, %v5210
    %v5215 = vand.u32 2147483647, %v5202
    %vm5216 = vcmp.eq.f32.partialorder %v5215, 8.507059e+37
    %v5217 = vand.u32 %v5202, 2147483648
    %v5218 = vor.u32 1.1754944e-38, %v5217
    %v5219 = vsel %vm5216, %v5218, %v5214
    %v5220 = vmul.f32 1.0, %v5219
    %v5221 = vrcp.pop %v5203
    %v5222 = vmul.f32 %v5203, %v5221
    %v5223 = vsub.f32 1.0, %v5222
    %v5224 = vmul.f32 %v5221, %v5223
    %v5225 = vadd.f32 %v5221, %v5224
    %vm5226 = vweird.f32 %v5203
    %vm5227 = vweird.f32 %v5221
    %vm5228 = vmor %vm5226, %vm5227
    %v5229 = vsel %vm5228, %v5221, %v5225
    %v5230 = vand.u32 2147483647, %v5203
    %vm5231 = vcmp.eq.f32.partialorder %v5230, 8.507059e+37
    %v5232 = vand.u32 %v5203, 2147483648
    %v5233 = vor.u32 1.1754944e-38, %v5232
    %v5234 = vsel %vm5231, %v5233, %v5229
    %v5235 = vmul.f32 1.0, %v5234
    %v5236 = vrcp.pop %v5204
    %v5237 = vmul.f32 %v5204, %v5236
    %v5238 = vsub.f32 1.0, %v5237
    %v5239 = vmul.f32 %v5236, %v5238
    %v5240 = vadd.f32 %v5236, %v5239
    %vm5241 = vweird.f32 %v5204
    %vm5242 = vweird.f32 %v5236
    %vm5243 = vmor %vm5241, %vm5242
    %v5244 = vsel %vm5243, %v5236, %v5240
    %v5245 = vand.u32 2147483647, %v5204
    %vm5246 = vcmp.eq.f32.partialorder %v5245, 8.507059e+37
    %v5247 = vand.u32 %v5204, 2147483648
    %v5248 = vor.u32 1.1754944e-38, %v5247
    %v5249 = vsel %vm5246, %v5248, %v5244
    %v5250 = vmul.f32 1.0, %v5249
    %v5251 = vrcp.pop %v5205
    %v5252 = vmul.f32 %v5205, %v5251
    %v5253 = vsub.f32 1.0, %v5252
    %v5254 = vmul.f32 %v5251, %v5253
    %v5255 = vadd.f32 %v5251, %v5254
    %vm5256 = vweird.f32 %v5205
    %vm5257 = vweird.f32 %v5251
    %vm5258 = vmor %vm5256, %vm5257
    %v5259 = vsel %vm5258, %v5251, %v5255
    %v5260 = vand.u32 2147483647, %v5205
    %vm5261 = vcmp.eq.f32.partialorder %v5260, 8.507059e+37
    %v5262 = vand.u32 %v5205, 2147483648
    %v5263 = vor.u32 1.1754944e-38, %v5262
    %v5264 = vsel %vm5261, %v5263, %v5259
    %v5265 = vmul.f32 1.0, %v5264
    %v5270 = vrot.slane %v4717, 7
    %v5271 = vrot.slane %v4718, 7
    %v5272 = vrot.slane %v4719, 7
    %v5273 = vrot.slane %v4720, 7
    %v5278 = vmul.f32 %v5140, %v5270
    %v5279 = vmul.f32 %v5155, %v5271
    %v5280 = vmul.f32 %v5170, %v5272
    %v5281 = vmul.f32 %v5185, %v5273
    %v5282 = vmul.f32 %v5064, %v5186
    %v5283 = vmul.f32 %v5079, %v5187
    %v5284 = vmul.f32 %v5094, %v5188
    %v5285 = vmul.f32 %v5109, %v5189
    %v5286 = vadd.f32 %v5278, %v5282
    %v5287 = vadd.f32 %v5279, %v5283
    %v5288 = vadd.f32 %v5280, %v5284
    %v5289 = vadd.f32 %v5281, %v5285
    %v5290 = vtanh.pop %v5286
    %v5291 = vtanh.pop %v5287
    %v5292 = vtanh.pop %v5288
    %v5293 = vtanh.pop %v5289
    %v5294 = vmul.f32 %v5220, %v5290
    %v5295 = vmul.f32 %v5235, %v5291
    %v5296 = vmul.f32 %v5250, %v5292
    %v5297 = vmul.f32 %v5265, %v5293
    %5302 = vst [vmem:[#allocation1] sm:$0xff] %v5294
    %5303 = vst [vmem:[#allocation1 + $0x9] sm:$0xff] %v5295
    %s5304 = scalar_lea.vmem [#allocation1], 6
    %v5305 = vld [vmem:[%s5304] ss:$9 sm:$0xff]
    %5306 = vst [vmem:[#allocation1] sm:$0xff] %v5296
    %5307 = vst [vmem:[#allocation1 + $0x9] sm:$0xff] %v5297
    %v5308 = vld [vmem:[%s5304] ss:$9 sm:$0xff]
    %s5311 = scalar_lea.vmem [#allocation2], 6
    %5312 = vst.msk [vmem:[%s5311] ss:$8 sm:$0x3] %vm1908, %v5305
    %5313 = vst.msk [vmem:[%s5311] ss:$8 sm:$0x0] %vm1908, %v5305
    %s5314 = scalar_lea.vmem [#allocation2], 22
    %5315 = vst.msk [vmem:[%s5314] ss:$8 sm:$0x3] %vm1908, %v5308
    %5316 = vst.msk [vmem:[%s5314] ss:$8 sm:$0x0] %vm1908, %v5308
    %v5317 = vpack.c.bf16 %v5294, %v5294
    %v5318 = vpack.c.bf16 %v5295, %v5295
    %v5319 = vpack.c.bf16 %v5296, %v5296
    %v5320 = vpack.c.bf16 %v5297, %v5297
    %v5325 = vunpack.c.l.b16 %v5317
    %v5326 = vunpack.c.l.b16 %v5318
    %v5327 = vunpack.c.l.b16 %v5319
    %v5328 = vunpack.c.l.b16 %v5320
    %v5329 = vrot.slane %v5325, 6
    %v5330 = vrot.slane %v5327, 5
    %v5331 = vsel %vm1927, %v5330, %v5329
    %v5332 = vrot.slane %v5326, 6
    %v5333 = vrot.slane %v5328, 5
    %v5334 = vsel %vm1927, %v5333, %v5332
    %v5335 = vpack.c.b16 %v5331, %v5331
    %v5336 = vpack.c.b16 %v5334, %v5334
    %5339 = vmatpush.bf16.msra.mxu0 %v1186
    %5340 = vmatpush.bf16.msra.mxu0 %v1178
    %5341 = vmatpush.bf16.msra.mxu0 %v1170
    %5342 = vmatpush.bf16.msra.mxu0 %v1162
    %5343 = vmatpush.bf16.msra.mxu0 %v1154
    %5344 = vmatpush.bf16.msra.mxu0 %v1146
    %5345 = vmatpush.bf16.msra.mxu0 %v1138
    %5346 = vmatpush.bf16.msra.mxu0 %v1130
    %5347 = vmatmul.bf16.gmra.mxu0 %v5335
    %v5348 = vpop.f32.mrf.mxu0
    %v5349 = vadd.f32 0.0, %v5348
    %v5350 = vpop.f32.mrf.mxu0
    %5351 = vdwg.mxu0
    %5352 = vmatpush.bf16.msra.mxu0 %v1250
    %5353 = vmatpush.bf16.msra.mxu0 %v1242
    %5354 = vmatpush.bf16.msra.mxu0 %v1234
    %5355 = vmatpush.bf16.msra.mxu0 %v1226
    %5356 = vmatpush.bf16.msra.mxu0 %v1218
    %5357 = vmatpush.bf16.msra.mxu0 %v1210
    %5358 = vmatpush.bf16.msra.mxu0 %v1202
    %5359 = vmatpush.bf16.msra.mxu0 %v1194
    %5360 = vmatmul.bf16.gmra.mxu0 %v5336
    %v5361 = vpop.f32.mrf.mxu0
    %v5362 = vadd.f32 %v5349, %v5361
    %v5363 = vpop.f32.mrf.mxu0
    %5364 = vdwg.mxu0
    %5365 = vmatpush.bf16.msra.mxu0 %v1187
    %5366 = vmatpush.bf16.msra.mxu0 %v1179
    %5367 = vmatpush.bf16.msra.mxu0 %v1171
    %5368 = vmatpush.bf16.msra.mxu0 %v1163
    %5369 = vmatpush.bf16.msra.mxu0 %v1155
    %5370 = vmatpush.bf16.msra.mxu0 %v1147
    %5371 = vmatpush.bf16.msra.mxu0 %v1139
    %5372 = vmatpush.bf16.msra.mxu0 %v1131
    %5373 = vmatmul.bf16.gmra.mxu0 %v5335
    %v5374 = vpop.f32.mrf.mxu0
    %v5375 = vadd.f32 0.0, %v5374
    %v5376 = vpop.f32.mrf.mxu0
    %5377 = vdwg.mxu0
    %5378 = vmatpush.bf16.msra.mxu0 %v1251
    %5379 = vmatpush.bf16.msra.mxu0 %v1243
    %5380 = vmatpush.bf16.msra.mxu0 %v1235
    %5381 = vmatpush.bf16.msra.mxu0 %v1227
    %5382 = vmatpush.bf16.msra.mxu0 %v1219
    %5383 = vmatpush.bf16.msra.mxu0 %v1211
    %5384 = vmatpush.bf16.msra.mxu0 %v1203
    %5385 = vmatpush.bf16.msra.mxu0 %v1195
    %5386 = vmatmul.bf16.gmra.mxu0 %v5336
    %v5387 = vpop.f32.mrf.mxu0
    %v5388 = vadd.f32 %v5375, %v5387
    %v5389 = vpop.f32.mrf.mxu0
    %5390 = vdwg.mxu0
    %5391 = vmatpush.bf16.msra.mxu0 %v1188
    %5392 = vmatpush.bf16.msra.mxu0 %v1180
    %5393 = vmatpush.bf16.msra.mxu0 %v1172
    %5394 = vmatpush.bf16.msra.mxu0 %v1164
    %5395 = vmatpush.bf16.msra.mxu0 %v1156
    %5396 = vmatpush.bf16.msra.mxu0 %v1148
    %5397 = vmatpush.bf16.msra.mxu0 %v1140
    %5398 = vmatpush.bf16.msra.mxu0 %v1132
    %5399 = vmatmul.bf16.gmra.mxu0 %v5335
    %v5400 = vpop.f32.mrf.mxu0
    %v5401 = vadd.f32 0.0, %v5400
    %v5402 = vpop.f32.mrf.mxu0
    %5403 = vdwg.mxu0
    %5404 = vmatpush.bf16.msra.mxu0 %v1252
    %5405 = vmatpush.bf16.msra.mxu0 %v1244
    %5406 = vmatpush.bf16.msra.mxu0 %v1236
    %5407 = vmatpush.bf16.msra.mxu0 %v1228
    %5408 = vmatpush.bf16.msra.mxu0 %v1220
    %5409 = vmatpush.bf16.msra.mxu0 %v1212
    %5410 = vmatpush.bf16.msra.mxu0 %v1204
    %5411 = vmatpush.bf16.msra.mxu0 %v1196
    %5412 = vmatmul.bf16.gmra.mxu0 %v5336
    %v5413 = vpop.f32.mrf.mxu0
    %v5414 = vadd.f32 %v5401, %v5413
    %v5415 = vpop.f32.mrf.mxu0
    %5416 = vdwg.mxu0
    %5417 = vmatpush.bf16.msra.mxu0 %v1189
    %5418 = vmatpush.bf16.msra.mxu0 %v1181
    %5419 = vmatpush.bf16.msra.mxu0 %v1173
    %5420 = vmatpush.bf16.msra.mxu0 %v1165
    %5421 = vmatpush.bf16.msra.mxu0 %v1157
    %5422 = vmatpush.bf16.msra.mxu0 %v1149
    %5423 = vmatpush.bf16.msra.mxu0 %v1141
    %5424 = vmatpush.bf16.msra.mxu0 %v1133
    %5425 = vmatmul.bf16.gmra.mxu0 %v5335
    %v5426 = vpop.f32.mrf.mxu0
    %v5427 = vadd.f32 0.0, %v5426
    %v5428 = vpop.f32.mrf.mxu0
    %5429 = vdwg.mxu0
    %5430 = vmatpush.bf16.msra.mxu0 %v1253
    %5431 = vmatpush.bf16.msra.mxu0 %v1245
    %5432 = vmatpush.bf16.msra.mxu0 %v1237
    %5433 = vmatpush.bf16.msra.mxu0 %v1229
    %5434 = vmatpush.bf16.msra.mxu0 %v1221
    %5435 = vmatpush.bf16.msra.mxu0 %v1213
    %5436 = vmatpush.bf16.msra.mxu0 %v1205
    %5437 = vmatpush.bf16.msra.mxu0 %v1197
    %5438 = vmatmul.bf16.gmra.mxu0 %v5336
    %v5439 = vpop.f32.mrf.mxu0
    %v5440 = vadd.f32 %v5427, %v5439
    %v5441 = vpop.f32.mrf.mxu0
    %5442 = vdwg.mxu0
    %5443 = vmatpush.bf16.msra.mxu0 %v1190
    %5444 = vmatpush.bf16.msra.mxu0 %v1182
    %5445 = vmatpush.bf16.msra.mxu0 %v1174
    %5446 = vmatpush.bf16.msra.mxu0 %v1166
    %5447 = vmatpush.bf16.msra.mxu0 %v1158
    %5448 = vmatpush.bf16.msra.mxu0 %v1150
    %5449 = vmatpush.bf16.msra.mxu0 %v1142
    %5450 = vmatpush.bf16.msra.mxu0 %v1134
    %5451 = vmatmul.bf16.gmra.mxu0 %v5335
    %v5452 = vpop.f32.mrf.mxu0
    %v5453 = vadd.f32 0.0, %v5452
    %v5454 = vpop.f32.mrf.mxu0
    %5455 = vdwg.mxu0
    %5456 = vmatpush.bf16.msra.mxu0 %v1254
    %5457 = vmatpush.bf16.msra.mxu0 %v1246
    %5458 = vmatpush.bf16.msra.mxu0 %v1238
    %5459 = vmatpush.bf16.msra.mxu0 %v1230
    %5460 = vmatpush.bf16.msra.mxu0 %v1222
    %5461 = vmatpush.bf16.msra.mxu0 %v1214
    %5462 = vmatpush.bf16.msra.mxu0 %v1206
    %5463 = vmatpush.bf16.msra.mxu0 %v1198
    %5464 = vmatmul.bf16.gmra.mxu0 %v5336
    %v5465 = vpop.f32.mrf.mxu0
    %v5466 = vadd.f32 %v5453, %v5465
    %v5467 = vpop.f32.mrf.mxu0
    %5468 = vdwg.mxu0
    %5469 = vmatpush.bf16.msra.mxu0 %v1191
    %5470 = vmatpush.bf16.msra.mxu0 %v1183
    %5471 = vmatpush.bf16.msra.mxu0 %v1175
    %5472 = vmatpush.bf16.msra.mxu0 %v1167
    %5473 = vmatpush.bf16.msra.mxu0 %v1159
    %5474 = vmatpush.bf16.msra.mxu0 %v1151
    %5475 = vmatpush.bf16.msra.mxu0 %v1143
    %5476 = vmatpush.bf16.msra.mxu0 %v1135
    %5477 = vmatmul.bf16.gmra.mxu0 %v5335
    %v5478 = vpop.f32.mrf.mxu0
    %v5479 = vadd.f32 0.0, %v5478
    %v5480 = vpop.f32.mrf.mxu0
    %5481 = vdwg.mxu0
    %5482 = vmatpush.bf16.msra.mxu0 %v1255
    %5483 = vmatpush.bf16.msra.mxu0 %v1247
    %5484 = vmatpush.bf16.msra.mxu0 %v1239
    %5485 = vmatpush.bf16.msra.mxu0 %v1231
    %5486 = vmatpush.bf16.msra.mxu0 %v1223
    %5487 = vmatpush.bf16.msra.mxu0 %v1215
    %5488 = vmatpush.bf16.msra.mxu0 %v1207
    %5489 = vmatpush.bf16.msra.mxu0 %v1199
    %5490 = vmatmul.bf16.gmra.mxu0 %v5336
    %v5491 = vpop.f32.mrf.mxu0
    %v5492 = vadd.f32 %v5479, %v5491
    %v5493 = vpop.f32.mrf.mxu0
    %5494 = vdwg.mxu0
    %5495 = vmatpush.bf16.msra.mxu0 %v1192
    %5496 = vmatpush.bf16.msra.mxu0 %v1184
    %5497 = vmatpush.bf16.msra.mxu0 %v1176
    %5498 = vmatpush.bf16.msra.mxu0 %v1168
    %5499 = vmatpush.bf16.msra.mxu0 %v1160
    %5500 = vmatpush.bf16.msra.mxu0 %v1152
    %5501 = vmatpush.bf16.msra.mxu0 %v1144
    %5502 = vmatpush.bf16.msra.mxu0 %v1136
    %5503 = vmatmul.bf16.gmra.mxu0 %v5335
    %v5504 = vpop.f32.mrf.mxu0
    %v5505 = vadd.f32 0.0, %v5504
    %v5506 = vpop.f32.mrf.mxu0
    %5507 = vdwg.mxu0
    %5508 = vmatpush.bf16.msra.mxu0 %v1256
    %5509 = vmatpush.bf16.msra.mxu0 %v1248
    %5510 = vmatpush.bf16.msra.mxu0 %v1240
    %5511 = vmatpush.bf16.msra.mxu0 %v1232
    %5512 = vmatpush.bf16.msra.mxu0 %v1224
    %5513 = vmatpush.bf16.msra.mxu0 %v1216
    %5514 = vmatpush.bf16.msra.mxu0 %v1208
    %5515 = vmatpush.bf16.msra.mxu0 %v1200
    %5516 = vmatmul.bf16.gmra.mxu0 %v5336
    %v5517 = vpop.f32.mrf.mxu0
    %v5518 = vadd.f32 %v5505, %v5517
    %v5519 = vpop.f32.mrf.mxu0
    %5520 = vdwg.mxu0
    %5521 = vmatpush.bf16.msra.mxu0 %v1193
    %5522 = vmatpush.bf16.msra.mxu0 %v1185
    %5523 = vmatpush.bf16.msra.mxu0 %v1177
    %5524 = vmatpush.bf16.msra.mxu0 %v1169
    %5525 = vmatpush.bf16.msra.mxu0 %v1161
    %5526 = vmatpush.bf16.msra.mxu0 %v1153
    %5527 = vmatpush.bf16.msra.mxu0 %v1145
    %5528 = vmatpush.bf16.msra.mxu0 %v1137
    %5529 = vmatmul.bf16.gmra.mxu0 %v5335
    %v5530 = vpop.f32.mrf.mxu0
    %v5531 = vadd.f32 0.0, %v5530
    %v5532 = vpop.f32.mrf.mxu0
    %5533 = vdwg.mxu0
    %5534 = vmatpush.bf16.msra.mxu0 %v1257
    %5535 = vmatpush.bf16.msra.mxu0 %v1249
    %5536 = vmatpush.bf16.msra.mxu0 %v1241
    %5537 = vmatpush.bf16.msra.mxu0 %v1233
    %5538 = vmatpush.bf16.msra.mxu0 %v1225
    %5539 = vmatpush.bf16.msra.mxu0 %v1217
    %5540 = vmatpush.bf16.msra.mxu0 %v1209
    %5541 = vmatpush.bf16.msra.mxu0 %v1201
    %5542 = vmatmul.bf16.gmra.mxu0 %v5336
    %v5543 = vpop.f32.mrf.mxu0
    %v5544 = vadd.f32 %v5531, %v5543
    %v5545 = vpop.f32.mrf.mxu0
    %5546 = vdwg.mxu0
    %v5555 = vrot.slane %v5362, 1
    %v5556 = vrot.slane %v5388, 1
    %v5557 = vrot.slane %v5414, 1
    %v5558 = vrot.slane %v5440, 1
    %v5559 = vrot.slane %v5466, 1
    %v5560 = vrot.slane %v5492, 1
    %v5561 = vrot.slane %v5518, 1
    %v5562 = vrot.slane %v5544, 1
    %v5563 = vrot.slane %v5362, 2
    %v5564 = vrot.slane %v5388, 2
    %v5565 = vrot.slane %v5414, 2
    %v5566 = vrot.slane %v5440, 2
    %v5567 = vrot.slane %v5466, 2
    %v5568 = vrot.slane %v5492, 2
    %v5569 = vrot.slane %v5518, 2
    %v5570 = vrot.slane %v5544, 2
    %v5587 = vadd.f32 %v516, %v5555
    %v5588 = vadd.f32 %v530, %v5556
    %v5589 = vadd.f32 %v544, %v5557
    %v5590 = vadd.f32 %v558, %v5558
    %v5591 = vadd.f32 %v572, %v5559
    %v5592 = vadd.f32 %v586, %v5560
    %v5593 = vadd.f32 %v600, %v5561
    %v5594 = vadd.f32 %v614, %v5562
    %v5595 = vadd.f32 %v518, %v5563
    %v5596 = vadd.f32 %v532, %v5564
    %v5597 = vadd.f32 %v546, %v5565
    %v5598 = vadd.f32 %v560, %v5566
    %v5599 = vadd.f32 %v574, %v5567
    %v5600 = vadd.f32 %v588, %v5568
    %v5601 = vadd.f32 %v602, %v5569
    %v5602 = vadd.f32 %v616, %v5570
    %v5603 = vsub.f32 0.0, %v5587
    %v5604 = vsub.f32 0.0, %v5588
    %v5605 = vsub.f32 0.0, %v5595
    %v5606 = vsub.f32 0.0, %v5596
    %v5607 = vmul.f32 %v5603, 1.442695
    %v5608 = vpow.pop %v5607
    %v5609 = vmul.f32 %v5604, 1.442695
    %v5610 = vpow.pop %v5609
    %v5611 = vmul.f32 %v5605, 1.442695
    %v5612 = vpow.pop %v5611
    %v5613 = vmul.f32 %v5606, 1.442695
    %v5614 = vpow.pop %v5613
    %v5615 = vadd.f32 %v5608, 1.0
    %v5616 = vadd.f32 %v5610, 1.0
    %v5617 = vadd.f32 %v5612, 1.0
    %v5618 = vadd.f32 %v5614, 1.0
    %v5619 = vrcp.pop %v5615
    %v5620 = vmul.f32 %v5615, %v5619
    %v5621 = vsub.f32 1.0, %v5620
    %v5622 = vmul.f32 %v5619, %v5621
    %v5623 = vadd.f32 %v5619, %v5622
    %vm5624 = vweird.f32 %v5615
    %vm5625 = vweird.f32 %v5619
    %vm5626 = vmor %vm5624, %vm5625
    %v5627 = vsel %vm5626, %v5619, %v5623
    %v5628 = vand.u32 2147483647, %v5615
    %vm5629 = vcmp.eq.f32.partialorder %v5628, 8.507059e+37
    %v5630 = vand.u32 %v5615, 2147483648
    %v5631 = vor.u32 1.1754944e-38, %v5630
    %v5632 = vsel %vm5629, %v5631, %v5627
    %v5633 = vmul.f32 1.0, %v5632
    %v5634 = vrcp.pop %v5616
    %v5635 = vmul.f32 %v5616, %v5634
    %v5636 = vsub.f32 1.0, %v5635
    %v5637 = vmul.f32 %v5634, %v5636
    %v5638 = vadd.f32 %v5634, %v5637
    %vm5639 = vweird.f32 %v5616
    %vm5640 = vweird.f32 %v5634
    %vm5641 = vmor %vm5639, %vm5640
    %v5642 = vsel %vm5641, %v5634, %v5638
    %v5643 = vand.u32 2147483647, %v5616
    %vm5644 = vcmp.eq.f32.partialorder %v5643, 8.507059e+37
    %v5645 = vand.u32 %v5616, 2147483648
    %v5646 = vor.u32 1.1754944e-38, %v5645
    %v5647 = vsel %vm5644, %v5646, %v5642
    %v5648 = vmul.f32 1.0, %v5647
    %v5649 = vrcp.pop %v5617
    %v5650 = vmul.f32 %v5617, %v5649
    %v5651 = vsub.f32 1.0, %v5650
    %v5652 = vmul.f32 %v5649, %v5651
    %v5653 = vadd.f32 %v5649, %v5652
    %vm5654 = vweird.f32 %v5617
    %vm5655 = vweird.f32 %v5649
    %vm5656 = vmor %vm5654, %vm5655
    %v5657 = vsel %vm5656, %v5649, %v5653
    %v5658 = vand.u32 2147483647, %v5617
    %vm5659 = vcmp.eq.f32.partialorder %v5658, 8.507059e+37
    %v5660 = vand.u32 %v5617, 2147483648
    %v5661 = vor.u32 1.1754944e-38, %v5660
    %v5662 = vsel %vm5659, %v5661, %v5657
    %v5663 = vmul.f32 1.0, %v5662
    %v5664 = vrcp.pop %v5618
    %v5665 = vmul.f32 %v5618, %v5664
    %v5666 = vsub.f32 1.0, %v5665
    %v5667 = vmul.f32 %v5664, %v5666
    %v5668 = vadd.f32 %v5664, %v5667
    %vm5669 = vweird.f32 %v5618
    %vm5670 = vweird.f32 %v5664
    %vm5671 = vmor %vm5669, %vm5670
    %v5672 = vsel %vm5671, %v5664, %v5668
    %v5673 = vand.u32 2147483647, %v5618
    %vm5674 = vcmp.eq.f32.partialorder %v5673, 8.507059e+37
    %v5675 = vand.u32 %v5618, 2147483648
    %v5676 = vor.u32 1.1754944e-38, %v5675
    %v5677 = vsel %vm5674, %v5676, %v5672
    %v5678 = vmul.f32 1.0, %v5677
    %v5679 = vsub.f32 0.0, %v5589
    %v5680 = vsub.f32 0.0, %v5590
    %v5681 = vsub.f32 0.0, %v5597
    %v5682 = vsub.f32 0.0, %v5598
    %v5683 = vmul.f32 %v5679, 1.442695
    %v5684 = vpow.pop %v5683
    %v5685 = vmul.f32 %v5680, 1.442695
    %v5686 = vpow.pop %v5685
    %v5687 = vmul.f32 %v5681, 1.442695
    %v5688 = vpow.pop %v5687
    %v5689 = vmul.f32 %v5682, 1.442695
    %v5690 = vpow.pop %v5689
    %v5691 = vadd.f32 %v5684, 1.0
    %v5692 = vadd.f32 %v5686, 1.0
    %v5693 = vadd.f32 %v5688, 1.0
    %v5694 = vadd.f32 %v5690, 1.0
    %v5695 = vrcp.pop %v5691
    %v5696 = vmul.f32 %v5691, %v5695
    %v5697 = vsub.f32 1.0, %v5696
    %v5698 = vmul.f32 %v5695, %v5697
    %v5699 = vadd.f32 %v5695, %v5698
    %vm5700 = vweird.f32 %v5691
    %vm5701 = vweird.f32 %v5695
    %vm5702 = vmor %vm5700, %vm5701
    %v5703 = vsel %vm5702, %v5695, %v5699
    %v5704 = vand.u32 2147483647, %v5691
    %vm5705 = vcmp.eq.f32.partialorder %v5704, 8.507059e+37
    %v5706 = vand.u32 %v5691, 2147483648
    %v5707 = vor.u32 1.1754944e-38, %v5706
    %v5708 = vsel %vm5705, %v5707, %v5703
    %v5709 = vmul.f32 1.0, %v5708
    %v5710 = vrcp.pop %v5692
    %v5711 = vmul.f32 %v5692, %v5710
    %v5712 = vsub.f32 1.0, %v5711
    %v5713 = vmul.f32 %v5710, %v5712
    %v5714 = vadd.f32 %v5710, %v5713
    %vm5715 = vweird.f32 %v5692
    %vm5716 = vweird.f32 %v5710
    %vm5717 = vmor %vm5715, %vm5716
    %v5718 = vsel %vm5717, %v5710, %v5714
    %v5719 = vand.u32 2147483647, %v5692
    %vm5720 = vcmp.eq.f32.partialorder %v5719, 8.507059e+37
    %v5721 = vand.u32 %v5692, 2147483648
    %v5722 = vor.u32 1.1754944e-38, %v5721
    %v5723 = vsel %vm5720, %v5722, %v5718
    %v5724 = vmul.f32 1.0, %v5723
    %v5725 = vrcp.pop %v5693
    %v5726 = vmul.f32 %v5693, %v5725
    %v5727 = vsub.f32 1.0, %v5726
    %v5728 = vmul.f32 %v5725, %v5727
    %v5729 = vadd.f32 %v5725, %v5728
    %vm5730 = vweird.f32 %v5693
    %vm5731 = vweird.f32 %v5725
    %vm5732 = vmor %vm5730, %vm5731
    %v5733 = vsel %vm5732, %v5725, %v5729
    %v5734 = vand.u32 2147483647, %v5693
    %vm5735 = vcmp.eq.f32.partialorder %v5734, 8.507059e+37
    %v5736 = vand.u32 %v5693, 2147483648
    %v5737 = vor.u32 1.1754944e-38, %v5736
    %v5738 = vsel %vm5735, %v5737, %v5733
    %v5739 = vmul.f32 1.0, %v5738
    %v5740 = vrcp.pop %v5694
    %v5741 = vmul.f32 %v5694, %v5740
    %v5742 = vsub.f32 1.0, %v5741
    %v5743 = vmul.f32 %v5740, %v5742
    %v5744 = vadd.f32 %v5740, %v5743
    %vm5745 = vweird.f32 %v5694
    %vm5746 = vweird.f32 %v5740
    %vm5747 = vmor %vm5745, %vm5746
    %v5748 = vsel %vm5747, %v5740, %v5744
    %v5749 = vand.u32 2147483647, %v5694
    %vm5750 = vcmp.eq.f32.partialorder %v5749, 8.507059e+37
    %v5751 = vand.u32 %v5694, 2147483648
    %v5752 = vor.u32 1.1754944e-38, %v5751
    %v5753 = vsel %vm5750, %v5752, %v5748
    %v5754 = vmul.f32 1.0, %v5753
    %v5755 = vtanh.pop %v5591
    %v5756 = vtanh.pop %v5592
    %v5757 = vtanh.pop %v5599
    %v5758 = vtanh.pop %v5600
    %v5759 = vsub.f32 0.0, %v5593
    %v5760 = vsub.f32 0.0, %v5594
    %v5761 = vsub.f32 0.0, %v5601
    %v5762 = vsub.f32 0.0, %v5602
    %v5763 = vmul.f32 %v5759, 1.442695
    %v5764 = vpow.pop %v5763
    %v5765 = vmul.f32 %v5760, 1.442695
    %v5766 = vpow.pop %v5765
    %v5767 = vmul.f32 %v5761, 1.442695
    %v5768 = vpow.pop %v5767
    %v5769 = vmul.f32 %v5762, 1.442695
    %v5770 = vpow.pop %v5769
    %v5771 = vadd.f32 %v5764, 1.0
    %v5772 = vadd.f32 %v5766, 1.0
    %v5773 = vadd.f32 %v5768, 1.0
    %v5774 = vadd.f32 %v5770, 1.0
    %v5775 = vrcp.pop %v5771
    %v5776 = vmul.f32 %v5771, %v5775
    %v5777 = vsub.f32 1.0, %v5776
    %v5778 = vmul.f32 %v5775, %v5777
    %v5779 = vadd.f32 %v5775, %v5778
    %vm5780 = vweird.f32 %v5771
    %vm5781 = vweird.f32 %v5775
    %vm5782 = vmor %vm5780, %vm5781
    %v5783 = vsel %vm5782, %v5775, %v5779
    %v5784 = vand.u32 2147483647, %v5771
    %vm5785 = vcmp.eq.f32.partialorder %v5784, 8.507059e+37
    %v5786 = vand.u32 %v5771, 2147483648
    %v5787 = vor.u32 1.1754944e-38, %v5786
    %v5788 = vsel %vm5785, %v5787, %v5783
    %v5789 = vmul.f32 1.0, %v5788
    %v5790 = vrcp.pop %v5772
    %v5791 = vmul.f32 %v5772, %v5790
    %v5792 = vsub.f32 1.0, %v5791
    %v5793 = vmul.f32 %v5790, %v5792
    %v5794 = vadd.f32 %v5790, %v5793
    %vm5795 = vweird.f32 %v5772
    %vm5796 = vweird.f32 %v5790
    %vm5797 = vmor %vm5795, %vm5796
    %v5798 = vsel %vm5797, %v5790, %v5794
    %v5799 = vand.u32 2147483647, %v5772
    %vm5800 = vcmp.eq.f32.partialorder %v5799, 8.507059e+37
    %v5801 = vand.u32 %v5772, 2147483648
    %v5802 = vor.u32 1.1754944e-38, %v5801
    %v5803 = vsel %vm5800, %v5802, %v5798
    %v5804 = vmul.f32 1.0, %v5803
    %v5805 = vrcp.pop %v5773
    %v5806 = vmul.f32 %v5773, %v5805
    %v5807 = vsub.f32 1.0, %v5806
    %v5808 = vmul.f32 %v5805, %v5807
    %v5809 = vadd.f32 %v5805, %v5808
    %vm5810 = vweird.f32 %v5773
    %vm5811 = vweird.f32 %v5805
    %vm5812 = vmor %vm5810, %vm5811
    %v5813 = vsel %vm5812, %v5805, %v5809
    %v5814 = vand.u32 2147483647, %v5773
    %vm5815 = vcmp.eq.f32.partialorder %v5814, 8.507059e+37
    %v5816 = vand.u32 %v5773, 2147483648
    %v5817 = vor.u32 1.1754944e-38, %v5816
    %v5818 = vsel %vm5815, %v5817, %v5813
    %v5819 = vmul.f32 1.0, %v5818
    %v5820 = vrcp.pop %v5774
    %v5821 = vmul.f32 %v5774, %v5820
    %v5822 = vsub.f32 1.0, %v5821
    %v5823 = vmul.f32 %v5820, %v5822
    %v5824 = vadd.f32 %v5820, %v5823
    %vm5825 = vweird.f32 %v5774
    %vm5826 = vweird.f32 %v5820
    %vm5827 = vmor %vm5825, %vm5826
    %v5828 = vsel %vm5827, %v5820, %v5824
    %v5829 = vand.u32 2147483647, %v5774
    %vm5830 = vcmp.eq.f32.partialorder %v5829, 8.507059e+37
    %v5831 = vand.u32 %v5774, 2147483648
    %v5832 = vor.u32 1.1754944e-38, %v5831
    %v5833 = vsel %vm5830, %v5832, %v5828
    %v5834 = vmul.f32 1.0, %v5833
    %v5839 = vrot.slane %v5286, 7
    %v5840 = vrot.slane %v5287, 7
    %v5841 = vrot.slane %v5288, 7
    %v5842 = vrot.slane %v5289, 7
    %v5847 = vmul.f32 %v5709, %v5839
    %v5848 = vmul.f32 %v5724, %v5840
    %v5849 = vmul.f32 %v5739, %v5841
    %v5850 = vmul.f32 %v5754, %v5842
    %v5851 = vmul.f32 %v5633, %v5755
    %v5852 = vmul.f32 %v5648, %v5756
    %v5853 = vmul.f32 %v5663, %v5757
    %v5854 = vmul.f32 %v5678, %v5758
    %v5855 = vadd.f32 %v5847, %v5851
    %v5856 = vadd.f32 %v5848, %v5852
    %v5857 = vadd.f32 %v5849, %v5853
    %v5858 = vadd.f32 %v5850, %v5854
    %v5859 = vtanh.pop %v5855
    %v5860 = vtanh.pop %v5856
    %v5861 = vtanh.pop %v5857
    %v5862 = vtanh.pop %v5858
    %v5863 = vmul.f32 %v5789, %v5859
    %v5864 = vmul.f32 %v5804, %v5860
    %v5865 = vmul.f32 %v5819, %v5861
    %v5866 = vmul.f32 %v5834, %v5862
    %5871 = vst [vmem:[#allocation1] sm:$0xff] %v5863
    %5872 = vst [vmem:[#allocation1 + $0x9] sm:$0xff] %v5864
    %s5873 = scalar_lea.vmem [#allocation1], 7
    %v5874 = vld [vmem:[%s5873] ss:$9 sm:$0xff]
    %5875 = vst [vmem:[#allocation1] sm:$0xff] %v5865
    %5876 = vst [vmem:[#allocation1 + $0x9] sm:$0xff] %v5866
    %v5877 = vld [vmem:[%s5873] ss:$9 sm:$0xff]
    %s5880 = scalar_lea.vmem [#allocation2], 7
    %5881 = vst.msk [vmem:[%s5880] ss:$8 sm:$0x3] %vm1908, %v5874
    %5882 = vst.msk [vmem:[%s5880] ss:$8 sm:$0x0] %vm1908, %v5874
    %s5883 = scalar_lea.vmem [#allocation2], 23
    %5884 = vst.msk [vmem:[%s5883] ss:$8 sm:$0x3] %vm1908, %v5877
    %5885 = vst.msk [vmem:[%s5883] ss:$8 sm:$0x0] %vm1908, %v5877
    %v5886 = vld [vmem:[#allocation2] sm:$0xff]
    %v5887 = vld [vmem:[#allocation2 + $0x8] sm:$0xff]
    %v5888 = vld [vmem:[#allocation2 + $0x10] sm:$0xff]
    %v5889 = vld [vmem:[#allocation2 + $0x18] sm:$0xff]
    %v5890 = vpack.c.bf16 %v5888, %v5886
    %v5891 = vpack.c.bf16 %v5889, %v5887
    %v5892 = vld [vmem:[#allocation11] sm:$0xf]
    %v5893 = vld [vmem:[#allocation11 + $0x4] sm:$0xf]
    %v5894 = vld [vmem:[#allocation11 + $0x8] sm:$0xf]
    %v5895 = vld [vmem:[#allocation11 + $0xc] sm:$0xf]
    %v5896 = vld [vmem:[#allocation11 + $0x10] sm:$0xf]
    %v5897 = vld [vmem:[#allocation11 + $0x14] sm:$0xf]
    %v5898 = vld [vmem:[#allocation11 + $0x18] sm:$0xf]
    %v5899 = vld [vmem:[#allocation11 + $0x1c] sm:$0xf]
    %v5900 = vld [vmem:[#allocation11 + $0x20] sm:$0xf]
    %v5901 = vld [vmem:[#allocation11 + $0x24] sm:$0xf]
    %v5902 = vld [vmem:[#allocation11 + $0x28] sm:$0xf]
    %v5903 = vld [vmem:[#allocation11 + $0x2c] sm:$0xf]
    %v5904 = vld [vmem:[#allocation11 + $0x30] sm:$0xf]
    %v5905 = vld [vmem:[#allocation11 + $0x34] sm:$0xf]
    %v5906 = vld [vmem:[#allocation11 + $0x38] sm:$0xf]
    %v5907 = vld [vmem:[#allocation11 + $0x3c] sm:$0xf]
    %v5908 = vld [vmem:[#allocation11 + $0x40] sm:$0xf]
    %v5909 = vld [vmem:[#allocation11 + $0x44] sm:$0xf]
    %v5910 = vld [vmem:[#allocation11 + $0x48] sm:$0xf]
    %v5911 = vld [vmem:[#allocation11 + $0x4c] sm:$0xf]
    %v5912 = vld [vmem:[#allocation11 + $0x50] sm:$0xf]
    %v5913 = vld [vmem:[#allocation11 + $0x54] sm:$0xf]
    %v5914 = vld [vmem:[#allocation11 + $0x58] sm:$0xf]
    %v5915 = vld [vmem:[#allocation11 + $0x5c] sm:$0xf]
    %v5916 = vld [vmem:[#allocation11 + $0x60] sm:$0xf]
    %v5917 = vld [vmem:[#allocation11 + $0x64] sm:$0xf]
    %v5918 = vld [vmem:[#allocation11 + $0x68] sm:$0xf]
    %v5919 = vld [vmem:[#allocation11 + $0x6c] sm:$0xf]
    %v5920 = vld [vmem:[#allocation11 + $0x70] sm:$0xf]
    %v5921 = vld [vmem:[#allocation11 + $0x74] sm:$0xf]
    %v5922 = vld [vmem:[#allocation11 + $0x78] sm:$0xf]
    %v5923 = vld [vmem:[#allocation11 + $0x7c] sm:$0xf]
    %v5924 = vld [vmem:[%s5] sm:$0x1]
    %v5926 = vperm.slane %v5924, 0
    %v5960 = vunpack.c.l.b16 %v5892
    %v5961 = vunpack.c.l.b16 %v5893
    %v5962 = vunpack.c.l.b16 %v5894
    %v5963 = vunpack.c.l.b16 %v5895
    %v5964 = vunpack.c.l.b16 %v5896
    %v5965 = vunpack.c.l.b16 %v5897
    %v5966 = vunpack.c.l.b16 %v5898
    %v5967 = vunpack.c.l.b16 %v5899
    %v5968 = vunpack.c.l.b16 %v5900
    %v5969 = vunpack.c.l.b16 %v5901
    %v5970 = vunpack.c.l.b16 %v5902
    %v5971 = vunpack.c.l.b16 %v5903
    %v5972 = vunpack.c.l.b16 %v5904
    %v5973 = vunpack.c.l.b16 %v5905
    %v5974 = vunpack.c.l.b16 %v5906
    %v5975 = vunpack.c.l.b16 %v5907
    %v5976 = vunpack.c.l.b16 %v5908
    %v5977 = vunpack.c.l.b16 %v5909
    %v5978 = vunpack.c.l.b16 %v5910
    %v5979 = vunpack.c.l.b16 %v5911
    %v5980 = vunpack.c.l.b16 %v5912
    %v5981 = vunpack.c.l.b16 %v5913
    %v5982 = vunpack.c.l.b16 %v5914
    %v5983 = vunpack.c.l.b16 %v5915
    %v5984 = vunpack.c.l.b16 %v5916
    %v5985 = vunpack.c.l.b16 %v5917
    %v5986 = vunpack.c.l.b16 %v5918
    %v5987 = vunpack.c.l.b16 %v5919
    %v5988 = vunpack.c.l.b16 %v5920
    %v5989 = vunpack.c.l.b16 %v5921
    %v5990 = vunpack.c.l.b16 %v5922
    %v5991 = vunpack.c.l.b16 %v5923
    %v5992 = vpack.c.b16 %v5961, %v5960
    %v5993 = vpack.c.b16 %v5963, %v5962
    %v5994 = vpack.c.b16 %v5965, %v5964
    %v5995 = vpack.c.b16 %v5967, %v5966
    %v5996 = vpack.c.b16 %v5969, %v5968
    %v5997 = vpack.c.b16 %v5971, %v5970
    %v5998 = vpack.c.b16 %v5973, %v5972
    %v5999 = vpack.c.b16 %v5975, %v5974
    %v6000 = vpack.c.b16 %v5977, %v5976
    %v6001 = vpack.c.b16 %v5979, %v5978
    %v6002 = vpack.c.b16 %v5981, %v5980
    %v6003 = vpack.c.b16 %v5983, %v5982
    %v6004 = vpack.c.b16 %v5985, %v5984
    %v6005 = vpack.c.b16 %v5987, %v5986
    %v6006 = vpack.c.b16 %v5989, %v5988
    %v6007 = vpack.c.b16 %v5991, %v5990
    %6024 = vmatpush.bf16.msra.mxu0 %v5999
    %6025 = vmatpush.bf16.msra.mxu0 %v5998
    %6026 = vmatpush.bf16.msra.mxu0 %v5997
    %6027 = vmatpush.bf16.msra.mxu0 %v5996
    %6028 = vmatpush.bf16.msra.mxu0 %v5995
    %6029 = vmatpush.bf16.msra.mxu0 %v5994
    %6030 = vmatpush.bf16.msra.mxu0 %v5993
    %6031 = vmatpush.bf16.msra.mxu0 %v5992
    %6032 = vmatmul.bf16.gmra.mxu0 %v5890
    %v6033 = vpop.f32.mrf.mxu0
    %v6034 = vadd.f32 %v5926, %v6033
    %v6035 = vpop.f32.mrf.mxu0
    %v6036 = vadd.f32 %v5926, %v6035
    %6037 = vdwg.mxu0
    %6038 = vmatpush.bf16.msra.mxu0 %v6007
    %6039 = vmatpush.bf16.msra.mxu0 %v6006
    %6040 = vmatpush.bf16.msra.mxu0 %v6005
    %6041 = vmatpush.bf16.msra.mxu0 %v6004
    %6042 = vmatpush.bf16.msra.mxu0 %v6003
    %6043 = vmatpush.bf16.msra.mxu0 %v6002
    %6044 = vmatpush.bf16.msra.mxu0 %v6001
    %6045 = vmatpush.bf16.msra.mxu0 %v6000
    %6046 = vmatmul.bf16.gmra.mxu0 %v5891
    %v6047 = vpop.f32.mrf.mxu0
    %v6048 = vadd.f32 %v6034, %v6047
    %v6049 = vpop.f32.mrf.mxu0
    %v6050 = vadd.f32 %v6036, %v6049
    %6051 = vdwg.mxu0
    %6052 = vst [vmem:[#allocation12] sm:$0xff] %v6048
    %6053 = vst [vmem:[#allocation12 + $0x8] sm:$0xff] %v6050
    // Predicated region
    $region46: #{tpu_custom_call.1} parent=1 // pred_check
      _
    $region47: #{tpu_custom_call.1} parent=1 // pred_check_branch
      %6055 = sbr.rel (0) target = $region49
    $region48: #{tpu_custom_call.1} parent=1 // pred_region
      %6057 = vsyncadd [#allocation5], 0
      %s6058 = sshll.u32 [#allocation12], 4
      %s6059 = int_to_ptr.vmem [resolvable:$true] %s6058
      %s6060 = sshll.u32 %s6, 4
      %s6061 = int_to_ptr.hbm [resolvable:$true] %s6060
      %6066 = dma.vmem_to_hbm [thread:$0]  %s6059, 256, %s6061, [#allocation5], 128, 128, 8
    $region49: #{tpu_custom_call.1} parent=1 // pred_fallthru
      _
    // Predicated region
    $region50: #{tpu_custom_call.1} parent=1 // pred_check
      _
    $region51: #{tpu_custom_call.1} parent=1 // pred_check_branch
      %6068 = sbr.rel (0) target = $region53
    $region52: #{tpu_custom_call.1} parent=1 // pred_region
      %6070 = dma.done [#allocation5], 256
    $region53: #{tpu_custom_call.1} parent=1 // pred_fallthru
      _
    %6071 = vsyncpa [#allocation4], 1
    %6072 = vsyncpa [#allocation7], 1
    %6073 = vsyncpa [#allocation10], 1
    %6074 = vsyncpa [#allocation5], 1

</llo_original>
